<compile_context>
chip_gen: v5e
topology: v5e:2x2
jax: 0.10.0
libtpu: 0.0.40
codegen_flags: <defaults>
</compile_context>

<pallas_src>
import numpy as np
import jax
import jax.numpy as jnp
from jax import lax
from jax.experimental import pallas as pl
from jax.experimental.pallas import tpu as pltpu

CHANNELS = (1, 4, 8)
N_CONVS = (2, 1)
N_BINS = 10
KSIZE = 3
N_TAPS = KSIZE ** 3          # 27
TAP_PAD = 32                 # taps padded to 32 -> K = 32*Cin (128 for Cin=4 layers)
EPS = 1e-5


# --------------------------------------------------------------------------- #
# Fused kernel builder: encoder (conv+BN+ReLU, in-VMEM stride-2) + SFCN head
# --------------------------------------------------------------------------- #
def _make_fused_sfcn_kernel(geoms, n_masks, n_sel, b_tile, n_bins):
    n_layers = len(geoms)

    def kernel(*refs):
        i = 0
        x_ref = refs[i]; i += 1                        # (C0, b_tile*DHW0) lane-dense
        aff_ref = refs[i]; i += 1                      # (C_max, 2L) packed BN scale|shift
        mask_refs = refs[i:i + n_masks]; i += n_masks  # (27, S) per distinct geometry
        w_refs = refs[i:i + n_layers]; i += n_layers   # (Cout, 32*Cin) per layer
        sel_refs = refs[i:i + n_sel]; i += n_sel       # (S_in, S_out) per mid stride-2
        pool_ref = refs[i]; i += 1                     # (S_last, b_tile) fused sel+avgpool
        wh_ref = refs[i]; i += 1                       # (NB, C_last)
        bh_ref = refs[i]; i += 1                       # (NB, 1)
        o_ref = refs[i]; i += 1                        # (1, NB, b_tile)
        slab_refs = refs[i:i + n_layers]               # (32*Cin, S) VMEM slab per layer

        act = x_ref[...]                               # (C0, S0)

        for l, g in enumerate(geoms):
            cin, cout = g["cin"], g["cout"]
            d, h, w = g["d"], g["h"], g["w"]
            S = b_tile * d * h * w
            slab_ref = slab_refs[l]
            mask_ref = mask_refs[g["mask_idx"]]

            # Zero only the zero-weight pad-tap rows (scratch is uninitialized and
            # 0-weight * Inf/NaN garbage would poison the matmul). <=20 rows, ~free.
            slab_ref[N_TAPS * cin:, :] = jnp.zeros(
                ((TAP_PAD - N_TAPS) * cin, S), jnp.float32)

            # Lane-dense im2col: per tap, an XLU roll along the flat lane axis plus a
            # 0/1 boundary mask (VPU); lane-dense stores into the slab scratch.
            t = 0
            for kd in range(KSIZE):
                for kh in range(KSIZE):
                    for kw in range(KSIZE):
                        off = (kd - 1) * h * w + (kh - 1) * w + (kw - 1)
                        blk = act if off == 0 else pltpu.roll(
                            act, shift=(-off) % S, axis=1)
                        if not (kd == 1 and kh == 1 and kw == 1):  # center tap: all-valid
                            blk = blk * mask_ref[t:t + 1, :]
                        slab_ref[t * cin:(t + 1) * cin, :] = blk
                        t += 1

            # One wide-K MXU matmul per conv layer: (Cout, 32*Cin) @ (32*Cin, S).
            y = jnp.dot(w_refs[l][...], slab_ref[...],
                        preferred_element_type=jnp.float32)

            sc = aff_ref[:cout, 2 * l:2 * l + 1]       # BN(eval) + conv-bias affine
            sh = aff_ref[:cout, 2 * l + 1:2 * l + 2]

            if g["stride2"] and not g["is_last"]:
                # stride-2 conv == same-conv + even-index selection (0/1 matmul);
                # affine/ReLU are pointwise, so run them after on 8x fewer lanes.
                y = jnp.dot(y, sel_refs[g["sel_idx"]][...],
                            preferred_element_type=jnp.float32)
            act = jnp.maximum(y * sc + sh, 0.0)
            # Last layer: act stays at full resolution; its stride-2 selection is
            # fused into the pooling matvec below.

        # SFCNHeadBlock: AdaptiveAvgPool3d(1) (+ last layer's stride-2 selection) fused
        # into one weighted-sum matvec -> Dropout -> 1x1 Conv3d -> Flatten -> LogSoftmax.
        # TODO(synk): nn.Dropout is stochastic in training; inference-mode identity here.
        pooled = jnp.dot(act, pool_ref[...],
                         preferred_element_type=jnp.float32)            # (C_last, b_tile)
        logits = jnp.dot(wh_ref[...], pooled,
                         preferred_element_type=jnp.float32) + bh_ref[...]  # (NB, b_tile)
        m = jnp.max(logits, axis=0, keepdims=True)
        z = logits - m
        lse = jnp.log(jnp.sum(jnp.exp(z), axis=0, keepdims=True))
        o_ref[...] = (z - lse).reshape(1, n_bins, b_tile)

    return kernel


# --------------------------------------------------------------------------- #
# numpy-built trace-time constants (no jnp device ops at build time)
# --------------------------------------------------------------------------- #
def _tap_masks_np(d, h, w, b_tile):
    """(27, b_tile*d*h*w) 0/1 mask per tap: 1 where the pad=1 tap is in-bounds."""
    dd, hh, ww = np.meshgrid(np.arange(d), np.arange(h), np.arange(w), indexing="ij")
    rows = []
    for kd in range(KSIZE):
        for kh in range(KSIZE):
            for kw in range(KSIZE):
                valid = ((dd + kd - 1 >= 0) & (dd + kd - 1 < d) &
                         (hh + kh - 1 >= 0) & (hh + kh - 1 < h) &
                         (ww + kw - 1 >= 0) & (ww + kw - 1 < w))
                rows.append(np.tile(valid.reshape(-1), b_tile))
    return np.stack(rows).astype(np.float32)


def _even_index_flat_np(d, h, w):
    """Flat indices of the even (d,h,w) positions, in downsampled output order."""
    dd, hh, ww = np.meshgrid(np.arange(d // 2), np.arange(h // 2), np.arange(w // 2),
                             indexing="ij")
    return ((2 * dd) * h * w + (2 * hh) * w + 2 * ww).reshape(-1)


def _sel_matrix_np(d, h, w, b_tile):
    """(b_tile*DHW, b_tile*DHW/8) 0/1 even-index selection, block-diagonal over the
    packed batch. NOTE: O(DHW^2) memory -- fine at toy sizes; use a spatially tiled
    grid / gather instead at realistic SFCN resolutions."""
    s_in = d * h * w
    src = _even_index_flat_np(d, h, w)
    s_out = src.size
    m = np.zeros((b_tile * s_in, b_tile * s_out), np.float32)
    for b in range(b_tile):
        m[b * s_in + src, b * s_out + np.arange(s_out)] = 1.0
    return m


def _pool_matrix_np(d, h, w, stride2, b_tile):
    """(b_tile*DHW, b_tile): fused last-layer stride-2 selection + AdaptiveAvgPool3d(1)."""
    s_in = d * h * w
    src = _even_index_flat_np(d, h, w) if stride2 else np.arange(s_in)
    m = np.zeros((b_tile * s_in, b_tile), np.float32)
    for b in range(b_tile):
        m[b * s_in + src, b] = 1.0 / src.size
    return m


# --------------------------------------------------------------------------- #
# Wrapper: fold BN, build constants/specs, one fused pallas_call
# --------------------------------------------------------------------------- #
def sfcn_forward(x_ncdhw, params, b_tile=None):
    """GenericSFCNModel forward. x_ncdhw: (N, C, D, H, W), like PyTorch."""
    N, c0, D, H, W = x_ncdhw.shape
    if b_tile is None:
        # Pack 2 batch elements per grid step when that still leaves >=2 grid steps
        # ("parallel" steps are sharded across v7x's 2 TensorCores).
        b_tile = 2 if (N % 2 == 0 and N >= 4) else 1
    assert N % b_tile == 0
    grid_n = N // b_tile
    dhw0 = D * H * W

    # Lane-dense packing: (N, C0, D, H, W) -> (C0, N*DHW): batch+spatial on lanes.
    x_packed = jnp.transpose(
        x_ncdhw.reshape(N, c0, dhw0).astype(jnp.float32), (1, 0, 2)
    ).reshape(c0, N * dhw0)

    layers = [l for block in params["blocks"] for l in block]
    n_layers = len(layers)
    c_max = max(layer["w"].shape[4] for layer in layers)

    geoms, w_mats, aff_cols = [], [], []
    d, h, w = D, H, W
    for li, layer in enumerate(layers):
        cin, cout = layer["w"].shape[3], layer["w"].shape[4]
        stride2 = bool(layer["stride2"])
        if stride2:
            assert d % 2 == 0 and h % 2 == 0 and w % 2 == 0, (
                "stride-2 == even-index selection requires even spatial dims")
        geoms.append(dict(cin=cin, cout=cout, d=d, h=h, w=w,
                          stride2=stride2, is_last=(li == n_layers - 1)))
        # BatchNorm3d(eval) + conv bias folded into a per-channel affine.
        scale = layer["gamma"] / jnp.sqrt(layer["var"] + EPS)
        shift = (layer["b"] - layer["mean"]) * scale + layer["beta"]
        aff_cols += [jnp.pad(scale, (0, c_max - cout))[:, None],
                     jnp.pad(shift, (0, c_max - cout))[:, None]]
        # (kd,kh,kw,cin,cout) -> (cout, 27*cin), tap-padded to (cout, 32*cin).
        wm = jnp.transpose(layer["w"].reshape(N_TAPS * cin, cout))
        w_mats.append(jnp.pad(wm, ((0, 0), (0, (TAP_PAD - N_TAPS) * cin))))
        if stride2:
            d, h, w = d // 2, h // 2, w // 2
    affine = jnp.concatenate(aff_cols, axis=1)                      # (c_max, 2L)

    # numpy trace-time constants: tap masks per distinct geometry, selection matrices
    # for intermediate stride-2 layers, fused selection+avgpool matrix for the head.
    geom_keys, mask_arrays, sel_arrays = [], [], []
    for g in geoms:
        key = (g["d"], g["h"], g["w"])
        if key not in geom_keys:
            geom_keys.append(key)
            mask_arrays.append(_tap_masks_np(*key, b_tile))
        g["mask_idx"] = geom_keys.index(key)
        if g["stride2"] and not g["is_last"]:
            g["sel_idx"] = len(sel_arrays)
            sel_arrays.append(_sel_matrix_np(g["d"], g["h"], g["w"], b_tile))
        else:
            g["sel_idx"] = None
    gl = geoms[-1]
    pool = _pool_matrix_np(gl["d"], gl["h"], gl["w"], gl["stride2"], b_tile)
    c_last = gl["cout"]

    inputs = ([x_packed, affine]
              + [jnp.asarray(m) for m in mask_arrays]
              + w_mats
              + [jnp.asarray(s) for s in sel_arrays]
              + [jnp.asarray(pool),
                 jnp.transpose(params["w_head"]),              # (NB, C_last)
                 params["b_head"].reshape(N_BINS, 1)])
    in_specs = ([pl.BlockSpec((c0, b_tile * dhw0), lambda n: (0, n)),
                 pl.BlockSpec(affine.shape, lambda n: (0, 0))]
                + [pl.BlockSpec(m.shape, lambda n: (0, 0)) for m in mask_arrays]
                + [pl.BlockSpec(wm.shape, lambda n: (0, 0)) for wm in w_mats]
                + [pl.BlockSpec(s.shape, lambda n: (0, 0)) for s in sel_arrays]
                + [pl.BlockSpec(pool.shape, lambda n: (0, 0)),
                   pl.BlockSpec((N_BINS, c_last), lambda n: (0, 0)),
                   pl.BlockSpec((N_BINS, 1), lambda n: (0, 0))])
    scratch_shapes = [
        pltpu.VMEM((TAP_PAD * g["cin"], b_tile * g["d"] * g["h"] * g["w"]), jnp.float32)
        for g in geoms]

    kernel = _make_fused_sfcn_kernel(
        tuple(geoms), len(mask_arrays), len(sel_arrays), b_tile, N_BINS)
    out = pl.pallas_call(
        kernel,
        out_shape=jax.ShapeDtypeStruct((grid_n, N_BINS, b_tile), jnp.float32),
        grid=(grid_n,),
        in_specs=in_specs,
        out_specs=pl.BlockSpec((1, N_BINS, b_tile), lambda n: (n, 0, 0)),
        scratch_shapes=scratch_shapes,
        compiler_params=pltpu.CompilerParams(
            dimension_semantics=("parallel",),
            vmem_limit_bytes=32 * 1024 * 1024),
    )(*inputs)
    # (grid_n, NB, b_tile) -> (N, NB)
    return out.transpose(0, 2, 1).reshape(N, N_BINS)


# --------------------------------------------------------------------------- #
# Deterministic synthetic parameters and a pure-JAX reference
# --------------------------------------------------------------------------- #
def init_params(key):
    keys = jax.random.split(key, 64)
    ki = 0
    params = {"blocks": []}
    in_ch = CHANNELS[0]
    for bi, ncv in enumerate(N_CONVS):
        out_ch = CHANNELS[bi + 1]
        block = []
        for ci in range(ncv):
            cin = in_ch if ci == 0 else out_ch
            stride2 = (ci == ncv - 1)   # DownsampleType.STRIDE: last conv of each block
            w = 0.2 * jax.random.normal(keys[ki], (KSIZE, KSIZE, KSIZE, cin, out_ch), jnp.float32); ki += 1
            b = 0.1 * jax.random.normal(keys[ki], (out_ch,), jnp.float32); ki += 1
            gamma = 1.0 + 0.1 * jax.random.normal(keys[ki], (out_ch,), jnp.float32); ki += 1
            beta = 0.1 * jax.random.normal(keys[ki], (out_ch,), jnp.float32); ki += 1
            mean = 0.05 * jax.random.normal(keys[ki], (out_ch,), jnp.float32); ki += 1
            var = 1.0 + 0.1 * jax.random.uniform(keys[ki], (out_ch,), jnp.float32); ki += 1
            block.append(dict(w=w, b=b, gamma=gamma, beta=beta,
                              mean=mean, var=var, stride2=stride2))
        params["blocks"].append(block)
        in_ch = out_ch
    params["w_head"] = 0.2 * jax.random.normal(keys[ki], (CHANNELS[-1], N_BINS), jnp.float32); ki += 1
    params["b_head"] = 0.1 * jax.random.normal(keys[ki], (N_BINS,), jnp.float32); ki += 1
    return params


def ref_forward(x_ncdhw, params):
    x = jnp.transpose(x_ncdhw, (0, 2, 3, 4, 1)).astype(jnp.float32)
    for block in params["blocks"]:
        for layer in block:
            y = lax.conv_general_dilated(
                x, layer["w"], window_strides=(1, 1, 1), padding="SAME",
                dimension_numbers=("NDHWC", "DHWIO", "NDHWC")) + layer["b"]
            y = (y - layer["mean"]) / jnp.sqrt(layer["var"] + EPS) * layer["gamma"] + layer["beta"]
            y = jnp.maximum(y, 0.0)
            if layer["stride2"]:
                y = y[:, ::2, ::2, ::2, :]
            x = y
    pooled = x.mean(axis=(1, 2, 3))
    logits = pooled @ params["w_head"] + params["b_head"]
    return jax.nn.log_softmax(logits, axis=1)


if __name__ == "__main__":
    key = jax.random.PRNGKey(0)
    kp, kx = jax.random.split(key)
    params = init_params(kp)
    # N=4 so batch-packing (B_TILE=2) still leaves 2 parallel grid steps for v7x.
    x = jax.random.normal(kx, (4, 1, 8, 8, 8), jnp.float32)   # NCDHW, like PyTorch

    out = jax.block_until_ready(sfcn_forward(x, params))
    ref = jax.block_until_ready(ref_forward(x, params))

    assert out.shape == (4, N_BINS), out.shape
    assert bool(jnp.allclose(out, ref, atol=5e-4, rtol=5e-4)), (out, ref)
    print("KERNEL_OK")
</pallas_src>

<mosaic_0001>
module attributes {stable_mosaic.version = 11 : i64} {
  func.func @kernel(%arg0: i32, %arg1: memref<1x1024xf32, #tpu.memory_space<vmem>>, %arg2: memref<8x6xf32, #tpu.memory_space<vmem>>, %arg3: memref<27x1024xf32, #tpu.memory_space<vmem>>, %arg4: memref<27x128xf32, #tpu.memory_space<vmem>>, %arg5: memref<4x32xf32, #tpu.memory_space<vmem>>, %arg6: memref<4x128xf32, #tpu.memory_space<vmem>>, %arg7: memref<8x128xf32, #tpu.memory_space<vmem>>, %arg8: memref<1024x128xf32, #tpu.memory_space<vmem>>, %arg9: memref<128x2xf32, #tpu.memory_space<vmem>>, %arg10: memref<10x8xf32, #tpu.memory_space<vmem>>, %arg11: memref<10x1xf32, #tpu.memory_space<vmem>>, %arg12: memref<1x10x2xf32, #tpu.memory_space<vmem>>, %arg13: memref<32x1024xf32, #tpu.memory_space<vmem>>, %arg14: memref<128x1024xf32, #tpu.memory_space<vmem>>, %arg15: memref<128x128xf32, #tpu.memory_space<vmem>>) attributes {dimension_semantics = [#tpu.dimension_semantics<parallel>], iteration_bounds = array<i64: 2>, scalar_prefetch = 0 : i64, scratch_operands = 3 : i64, tpu.core_type = #tpu.core_type<tc>, window_params = [{transform_indices = @transform_0, window_bounds = array<i64: 1, 1024>}, {pipeline_mode = #tpu.pipeline_mode<synchronous>, transform_indices = @transform_1, window_bounds = array<i64: 8, 6>}, {pipeline_mode = #tpu.pipeline_mode<synchronous>, transform_indices = @transform_2, window_bounds = array<i64: 27, 1024>}, {pipeline_mode = #tpu.pipeline_mode<synchronous>, transform_indices = @transform_3, window_bounds = array<i64: 27, 128>}, {pipeline_mode = #tpu.pipeline_mode<synchronous>, transform_indices = @transform_4, window_bounds = array<i64: 4, 32>}, {pipeline_mode = #tpu.pipeline_mode<synchronous>, transform_indices = @transform_5, window_bounds = array<i64: 4, 128>}, {pipeline_mode = #tpu.pipeline_mode<synchronous>, transform_indices = @transform_6, window_bounds = array<i64: 8, 128>}, {pipeline_mode = #tpu.pipeline_mode<synchronous>, transform_indices = @transform_7, window_bounds = array<i64: 1024, 128>}, {pipeline_mode = #tpu.pipeline_mode<synchronous>, transform_indices = @transform_8, window_bounds = array<i64: 128, 2>}, {pipeline_mode = #tpu.pipeline_mode<synchronous>, transform_indices = @transform_9, window_bounds = array<i64: 10, 8>}, {pipeline_mode = #tpu.pipeline_mode<synchronous>, transform_indices = @transform_10, window_bounds = array<i64: 10, 1>}, {transform_indices = @transform_11, window_bounds = array<i64: 1, 10, 2>}]} {
    %c0 = arith.constant 0 : index
    %c0_0 = arith.constant 0 : index
    %0 = vector.load %arg1[%c0, %c0_0] : memref<1x1024xf32, #tpu.memory_space<vmem>>, vector<1x1024xf32>
    %cst = arith.constant 0.000000e+00 : f32
    %1 = vector.broadcast %cst : f32 to vector<5x1024xf32>
    %c27 = arith.constant 27 : index
    %c0_1 = arith.constant 0 : index
    %2 = vector.load %arg13[%c27, %c0_1] : memref<32x1024xf32, #tpu.memory_space<vmem>>, vector<5x1024xf32>
    tpu.vector_store %arg13[%c27, %c0_1], %1 {strides = array<i32>} : memref<32x1024xf32, #tpu.memory_space<vmem>>, vector<5x1024xf32>,
    %c73_i32 = arith.constant 73 : i32
    %3 = tpu.dynamic_rotate %0 by %c73_i32 dim 1 : vector<1x1024xf32>, i32 -> vector<1x1024xf32>
    %c0_2 = arith.constant 0 : index
    %c0_3 = arith.constant 0 : index
    %4 = vector.load %arg3[%c0_2, %c0_3] : memref<27x1024xf32, #tpu.memory_space<vmem>>, vector<1x1024xf32>
    %5 = arith.mulf %3, %4 : vector<1x1024xf32>
    %c0_4 = arith.constant 0 : index
    %c0_5 = arith.constant 0 : index
    %6 = vector.load %arg13[%c0_4, %c0_5] : memref<32x1024xf32, #tpu.memory_space<vmem>>, vector<1x1024xf32>
    tpu.vector_store %arg13[%c0_4, %c0_5], %5 {strides = array<i32>} : memref<32x1024xf32, #tpu.memory_space<vmem>>, vector<1x1024xf32>,
    %c72_i32 = arith.constant 72 : i32
    %7 = tpu.dynamic_rotate %0 by %c72_i32 dim 1 : vector<1x1024xf32>, i32 -> vector<1x1024xf32>
    %c1 = arith.constant 1 : index
    %c0_6 = arith.constant 0 : index
    %8 = vector.load %arg3[%c1, %c0_6] : memref<27x1024xf32, #tpu.memory_space<vmem>>, vector<1x1024xf32>
    %9 = arith.mulf %7, %8 : vector<1x1024xf32>
    %c1_7 = arith.constant 1 : index
    %c0_8 = arith.constant 0 : index
    %10 = vector.load %arg13[%c1_7, %c0_8] : memref<32x1024xf32, #tpu.memory_space<vmem>>, vector<1x1024xf32>
    tpu.vector_store %arg13[%c1_7, %c0_8], %9 {strides = array<i32>} : memref<32x1024xf32, #tpu.memory_space<vmem>>, vector<1x1024xf32>,
    %c71_i32 = arith.constant 71 : i32
    %11 = tpu.dynamic_rotate %0 by %c71_i32 dim 1 : vector<1x1024xf32>, i32 -> vector<1x1024xf32>
    %c2 = arith.constant 2 : index
    %c0_9 = arith.constant 0 : index
    %12 = vector.load %arg3[%c2, %c0_9] : memref<27x1024xf32, #tpu.memory_space<vmem>>, vector<1x1024xf32>
    %13 = arith.mulf %11, %12 : vector<1x1024xf32>
    %c2_10 = arith.constant 2 : index
    %c0_11 = arith.constant 0 : index
    %14 = vector.load %arg13[%c2_10, %c0_11] : memref<32x1024xf32, #tpu.memory_space<vmem>>, vector<1x1024xf32>
    tpu.vector_store %arg13[%c2_10, %c0_11], %13 {strides = array<i32>} : memref<32x1024xf32, #tpu.memory_space<vmem>>, vector<1x1024xf32>,
    %c65_i32 = arith.constant 65 : i32
    %15 = tpu.dynamic_rotate %0 by %c65_i32 dim 1 : vector<1x1024xf32>, i32 -> vector<1x1024xf32>
    %c3 = arith.constant 3 : index
    %c0_12 = arith.constant 0 : index
    %16 = vector.load %arg3[%c3, %c0_12] : memref<27x1024xf32, #tpu.memory_space<vmem>>, vector<1x1024xf32>
    %17 = arith.mulf %15, %16 : vector<1x1024xf32>
    %c3_13 = arith.constant 3 : index
    %c0_14 = arith.constant 0 : index
    %18 = vector.load %arg13[%c3_13, %c0_14] : memref<32x1024xf32, #tpu.memory_space<vmem>>, vector<1x1024xf32>
    tpu.vector_store %arg13[%c3_13, %c0_14], %17 {strides = array<i32>} : memref<32x1024xf32, #tpu.memory_space<vmem>>, vector<1x1024xf32>,
    %c64_i32 = arith.constant 64 : i32
    %19 = tpu.dynamic_rotate %0 by %c64_i32 dim 1 : vector<1x1024xf32>, i32 -> vector<1x1024xf32>
    %c4 = arith.constant 4 : index
    %c0_15 = arith.constant 0 : index
    %20 = vector.load %arg3[%c4, %c0_15] : memref<27x1024xf32, #tpu.memory_space<vmem>>, vector<1x1024xf32>
    %21 = arith.mulf %19, %20 : vector<1x1024xf32>
    %c4_16 = arith.constant 4 : index
    %c0_17 = arith.constant 0 : index
    %22 = vector.load %arg13[%c4_16, %c0_17] : memref<32x1024xf32, #tpu.memory_space<vmem>>, vector<1x1024xf32>
    tpu.vector_store %arg13[%c4_16, %c0_17], %21 {strides = array<i32>} : memref<32x1024xf32, #tpu.memory_space<vmem>>, vector<1x1024xf32>,
    %c63_i32 = arith.constant 63 : i32
    %23 = tpu.dynamic_rotate %0 by %c63_i32 dim 1 : vector<1x1024xf32>, i32 -> vector<1x1024xf32>
    %c5 = arith.constant 5 : index
    %c0_18 = arith.constant 0 : index
    %24 = vector.load %arg3[%c5, %c0_18] : memref<27x1024xf32, #tpu.memory_space<vmem>>, vector<1x1024xf32>
    %25 = arith.mulf %23, %24 : vector<1x1024xf32>
    %c5_19 = arith.constant 5 : index
    %c0_20 = arith.constant 0 : index
    %26 = vector.load %arg13[%c5_19, %c0_20] : memref<32x1024xf32, #tpu.memory_space<vmem>>, vector<1x1024xf32>
    tpu.vector_store %arg13[%c5_19, %c0_20], %25 {strides = array<i32>} : memref<32x1024xf32, #tpu.memory_space<vmem>>, vector<1x1024xf32>,
    %c57_i32 = arith.constant 57 : i32
    %27 = tpu.dynamic_rotate %0 by %c57_i32 dim 1 : vector<1x1024xf32>, i32 -> vector<1x1024xf32>
    %c6 = arith.constant 6 : index
    %c0_21 = arith.constant 0 : index
    %28 = vector.load %arg3[%c6, %c0_21] : memref<27x1024xf32, #tpu.memory_space<vmem>>, vector<1x1024xf32>
    %29 = arith.mulf %27, %28 : vector<1x1024xf32>
    %c6_22 = arith.constant 6 : index
    %c0_23 = arith.constant 0 : index
    %30 = vector.load %arg13[%c6_22, %c0_23] : memref<32x1024xf32, #tpu.memory_space<vmem>>, vector<1x1024xf32>
    tpu.vector_store %arg13[%c6_22, %c0_23], %29 {strides = array<i32>} : memref<32x1024xf32, #tpu.memory_space<vmem>>, vector<1x1024xf32>,
    %c56_i32 = arith.constant 56 : i32
    %31 = tpu.dynamic_rotate %0 by %c56_i32 dim 1 : vector<1x1024xf32>, i32 -> vector<1x1024xf32>
    %c7 = arith.constant 7 : index
    %c0_24 = arith.constant 0 : index
    %32 = vector.load %arg3[%c7, %c0_24] : memref<27x1024xf32, #tpu.memory_space<vmem>>, vector<1x1024xf32>
    %33 = arith.mulf %31, %32 : vector<1x1024xf32>
    %c7_25 = arith.constant 7 : index
    %c0_26 = arith.constant 0 : index
    %34 = vector.load %arg13[%c7_25, %c0_26] : memref<32x1024xf32, #tpu.memory_space<vmem>>, vector<1x1024xf32>
    tpu.vector_store %arg13[%c7_25, %c0_26], %33 {strides = array<i32>} : memref<32x1024xf32, #tpu.memory_space<vmem>>, vector<1x1024xf32>,
    %c55_i32 = arith.constant 55 : i32
    %35 = tpu.dynamic_rotate %0 by %c55_i32 dim 1 : vector<1x1024xf32>, i32 -> vector<1x1024xf32>
    %c8 = arith.constant 8 : index
    %c0_27 = arith.constant 0 : index
    %36 = vector.load %arg3[%c8, %c0_27] : memref<27x1024xf32, #tpu.memory_space<vmem>>, vector<1x1024xf32>
    %37 = arith.mulf %35, %36 : vector<1x1024xf32>
    %c8_28 = arith.constant 8 : index
    %c0_29 = arith.constant 0 : index
    %38 = vector.load %arg13[%c8_28, %c0_29] : memref<32x1024xf32, #tpu.memory_space<vmem>>, vector<1x1024xf32>
    tpu.vector_store %arg13[%c8_28, %c0_29], %37 {strides = array<i32>} : memref<32x1024xf32, #tpu.memory_space<vmem>>, vector<1x1024xf32>,
    %c9_i32 = arith.constant 9 : i32
    %39 = tpu.dynamic_rotate %0 by %c9_i32 dim 1 : vector<1x1024xf32>, i32 -> vector<1x1024xf32>
    %c9 = arith.constant 9 : index
    %c0_30 = arith.constant 0 : index
    %40 = vector.load %arg3[%c9, %c0_30] : memref<27x1024xf32, #tpu.memory_space<vmem>>, vector<1x1024xf32>
    %41 = arith.mulf %39, %40 : vector<1x1024xf32>
    %c9_31 = arith.constant 9 : index
    %c0_32 = arith.constant 0 : index
    %42 = vector.load %arg13[%c9_31, %c0_32] : memref<32x1024xf32, #tpu.memory_space<vmem>>, vector<1x1024xf32>
    tpu.vector_store %arg13[%c9_31, %c0_32], %41 {strides = array<i32>} : memref<32x1024xf32, #tpu.memory_space<vmem>>, vector<1x1024xf32>,
    %c8_i32 = arith.constant 8 : i32
    %43 = tpu.dynamic_rotate %0 by %c8_i32 dim 1 : vector<1x1024xf32>, i32 -> vector<1x1024xf32>
    %c10 = arith.constant 10 : index
    %c0_33 = arith.constant 0 : index
    %44 = vector.load %arg3[%c10, %c0_33] : memref<27x1024xf32, #tpu.memory_space<vmem>>, vector<1x1024xf32>
    %45 = arith.mulf %43, %44 : vector<1x1024xf32>
    %c10_34 = arith.constant 10 : index
    %c0_35 = arith.constant 0 : index
    %46 = vector.load %arg13[%c10_34, %c0_35] : memref<32x1024xf32, #tpu.memory_space<vmem>>, vector<1x1024xf32>
    tpu.vector_store %arg13[%c10_34, %c0_35], %45 {strides = array<i32>} : memref<32x1024xf32, #tpu.memory_space<vmem>>, vector<1x1024xf32>,
    %c7_i32 = arith.constant 7 : i32
    %47 = tpu.dynamic_rotate %0 by %c7_i32 dim 1 : vector<1x1024xf32>, i32 -> vector<1x1024xf32>
    %c11 = arith.constant 11 : index
    %c0_36 = arith.constant 0 : index
    %48 = vector.load %arg3[%c11, %c0_36] : memref<27x1024xf32, #tpu.memory_space<vmem>>, vector<1x1024xf32>
    %49 = arith.mulf %47, %48 : vector<1x1024xf32>
    %c11_37 = arith.constant 11 : index
    %c0_38 = arith.constant 0 : index
    %50 = vector.load %arg13[%c11_37, %c0_38] : memref<32x1024xf32, #tpu.memory_space<vmem>>, vector<1x1024xf32>
    tpu.vector_store %arg13[%c11_37, %c0_38], %49 {strides = array<i32>} : memref<32x1024xf32, #tpu.memory_space<vmem>>, vector<1x1024xf32>,
    %c1_i32 = arith.constant 1 : i32
    %51 = tpu.dynamic_rotate %0 by %c1_i32 dim 1 : vector<1x1024xf32>, i32 -> vector<1x1024xf32>
    %c12 = arith.constant 12 : index
    %c0_39 = arith.constant 0 : index
    %52 = vector.load %arg3[%c12, %c0_39] : memref<27x1024xf32, #tpu.memory_space<vmem>>, vector<1x1024xf32>
    %53 = arith.mulf %51, %52 : vector<1x1024xf32>
    %c12_40 = arith.constant 12 : index
    %c0_41 = arith.constant 0 : index
    %54 = vector.load %arg13[%c12_40, %c0_41] : memref<32x1024xf32, #tpu.memory_space<vmem>>, vector<1x1024xf32>
    tpu.vector_store %arg13[%c12_40, %c0_41], %53 {strides = array<i32>} : memref<32x1024xf32, #tpu.memory_space<vmem>>, vector<1x1024xf32>,
    %c13 = arith.constant 13 : index
    %c0_42 = arith.constant 0 : index
    %55 = vector.load %arg13[%c13, %c0_42] : memref<32x1024xf32, #tpu.memory_space<vmem>>, vector<1x1024xf32>
    tpu.vector_store %arg13[%c13, %c0_42], %0 {strides = array<i32>} : memref<32x1024xf32, #tpu.memory_space<vmem>>, vector<1x1024xf32>,
    %c1023_i32 = arith.constant 1023 : i32
    %56 = tpu.dynamic_rotate %0 by %c1023_i32 dim 1 : vector<1x1024xf32>, i32 -> vector<1x1024xf32>
    %c14 = arith.constant 14 : index
    %c0_43 = arith.constant 0 : index
    %57 = vector.load %arg3[%c14, %c0_43] : memref<27x1024xf32, #tpu.memory_space<vmem>>, vector<1x1024xf32>
    %58 = arith.mulf %56, %57 : vector<1x1024xf32>
    %c14_44 = arith.constant 14 : index
    %c0_45 = arith.constant 0 : index
    %59 = vector.load %arg13[%c14_44, %c0_45] : memref<32x1024xf32, #tpu.memory_space<vmem>>, vector<1x1024xf32>
    tpu.vector_store %arg13[%c14_44, %c0_45], %58 {strides = array<i32>} : memref<32x1024xf32, #tpu.memory_space<vmem>>, vector<1x1024xf32>,
    %c1017_i32 = arith.constant 1017 : i32
    %60 = tpu.dynamic_rotate %0 by %c1017_i32 dim 1 : vector<1x1024xf32>, i32 -> vector<1x1024xf32>
    %c15 = arith.constant 15 : index
    %c0_46 = arith.constant 0 : index
    %61 = vector.load %arg3[%c15, %c0_46] : memref<27x1024xf32, #tpu.memory_space<vmem>>, vector<1x1024xf32>
    %62 = arith.mulf %60, %61 : vector<1x1024xf32>
    %c15_47 = arith.constant 15 : index
    %c0_48 = arith.constant 0 : index
    %63 = vector.load %arg13[%c15_47, %c0_48] : memref<32x1024xf32, #tpu.memory_space<vmem>>, vector<1x1024xf32>
    tpu.vector_store %arg13[%c15_47, %c0_48], %62 {strides = array<i32>} : memref<32x1024xf32, #tpu.memory_space<vmem>>, vector<1x1024xf32>,
    %c1016_i32 = arith.constant 1016 : i32
    %64 = tpu.dynamic_rotate %0 by %c1016_i32 dim 1 : vector<1x1024xf32>, i32 -> vector<1x1024xf32>
    %c16 = arith.constant 16 : index
    %c0_49 = arith.constant 0 : index
    %65 = vector.load %arg3[%c16, %c0_49] : memref<27x1024xf32, #tpu.memory_space<vmem>>, vector<1x1024xf32>
    %66 = arith.mulf %64, %65 : vector<1x1024xf32>
    %c16_50 = arith.constant 16 : index
    %c0_51 = arith.constant 0 : index
    %67 = vector.load %arg13[%c16_50, %c0_51] : memref<32x1024xf32, #tpu.memory_space<vmem>>, vector<1x1024xf32>
    tpu.vector_store %arg13[%c16_50, %c0_51], %66 {strides = array<i32>} : memref<32x1024xf32, #tpu.memory_space<vmem>>, vector<1x1024xf32>,
    %c1015_i32 = arith.constant 1015 : i32
    %68 = tpu.dynamic_rotate %0 by %c1015_i32 dim 1 : vector<1x1024xf32>, i32 -> vector<1x1024xf32>
    %c17 = arith.constant 17 : index
    %c0_52 = arith.constant 0 : index
    %69 = vector.load %arg3[%c17, %c0_52] : memref<27x1024xf32, #tpu.memory_space<vmem>>, vector<1x1024xf32>
    %70 = arith.mulf %68, %69 : vector<1x1024xf32>
    %c17_53 = arith.constant 17 : index
    %c0_54 = arith.constant 0 : index
    %71 = vector.load %arg13[%c17_53, %c0_54] : memref<32x1024xf32, #tpu.memory_space<vmem>>, vector<1x1024xf32>
    tpu.vector_store %arg13[%c17_53, %c0_54], %70 {strides = array<i32>} : memref<32x1024xf32, #tpu.memory_space<vmem>>, vector<1x1024xf32>,
    %c969_i32 = arith.constant 969 : i32
    %72 = tpu.dynamic_rotate %0 by %c969_i32 dim 1 : vector<1x1024xf32>, i32 -> vector<1x1024xf32>
    %c18 = arith.constant 18 : index
    %c0_55 = arith.constant 0 : index
    %73 = vector.load %arg3[%c18, %c0_55] : memref<27x1024xf32, #tpu.memory_space<vmem>>, vector<1x1024xf32>
    %74 = arith.mulf %72, %73 : vector<1x1024xf32>
    %c18_56 = arith.constant 18 : index
    %c0_57 = arith.constant 0 : index
    %75 = vector.load %arg13[%c18_56, %c0_57] : memref<32x1024xf32, #tpu.memory_space<vmem>>, vector<1x1024xf32>
    tpu.vector_store %arg13[%c18_56, %c0_57], %74 {strides = array<i32>} : memref<32x1024xf32, #tpu.memory_space<vmem>>, vector<1x1024xf32>,
    %c968_i32 = arith.constant 968 : i32
    %76 = tpu.dynamic_rotate %0 by %c968_i32 dim 1 : vector<1x1024xf32>, i32 -> vector<1x1024xf32>
    %c19 = arith.constant 19 : index
    %c0_58 = arith.constant 0 : index
    %77 = vector.load %arg3[%c19, %c0_58] : memref<27x1024xf32, #tpu.memory_space<vmem>>, vector<1x1024xf32>
    %78 = arith.mulf %76, %77 : vector<1x1024xf32>
    %c19_59 = arith.constant 19 : index
    %c0_60 = arith.constant 0 : index
    %79 = vector.load %arg13[%c19_59, %c0_60] : memref<32x1024xf32, #tpu.memory_space<vmem>>, vector<1x1024xf32>
    tpu.vector_store %arg13[%c19_59, %c0_60], %78 {strides = array<i32>} : memref<32x1024xf32, #tpu.memory_space<vmem>>, vector<1x1024xf32>,
    %c967_i32 = arith.constant 967 : i32
    %80 = tpu.dynamic_rotate %0 by %c967_i32 dim 1 : vector<1x1024xf32>, i32 -> vector<1x1024xf32>
    %c20 = arith.constant 20 : index
    %c0_61 = arith.constant 0 : index
    %81 = vector.load %arg3[%c20, %c0_61] : memref<27x1024xf32, #tpu.memory_space<vmem>>, vector<1x1024xf32>
    %82 = arith.mulf %80, %81 : vector<1x1024xf32>
    %c20_62 = arith.constant 20 : index
    %c0_63 = arith.constant 0 : index
    %83 = vector.load %arg13[%c20_62, %c0_63] : memref<32x1024xf32, #tpu.memory_space<vmem>>, vector<1x1024xf32>
    tpu.vector_store %arg13[%c20_62, %c0_63], %82 {strides = array<i32>} : memref<32x1024xf32, #tpu.memory_space<vmem>>, vector<1x1024xf32>,
    %c961_i32 = arith.constant 961 : i32
    %84 = tpu.dynamic_rotate %0 by %c961_i32 dim 1 : vector<1x1024xf32>, i32 -> vector<1x1024xf32>
    %c21 = arith.constant 21 : index
    %c0_64 = arith.constant 0 : index
    %85 = vector.load %arg3[%c21, %c0_64] : memref<27x1024xf32, #tpu.memory_space<vmem>>, vector<1x1024xf32>
    %86 = arith.mulf %84, %85 : vector<1x1024xf32>
    %c21_65 = arith.constant 21 : index
    %c0_66 = arith.constant 0 : index
    %87 = vector.load %arg13[%c21_65, %c0_66] : memref<32x1024xf32, #tpu.memory_space<vmem>>, vector<1x1024xf32>
    tpu.vector_store %arg13[%c21_65, %c0_66], %86 {strides = array<i32>} : memref<32x1024xf32, #tpu.memory_space<vmem>>, vector<1x1024xf32>,
    %c960_i32 = arith.constant 960 : i32
    %88 = tpu.dynamic_rotate %0 by %c960_i32 dim 1 : vector<1x1024xf32>, i32 -> vector<1x1024xf32>
    %c22 = arith.constant 22 : index
    %c0_67 = arith.constant 0 : index
    %89 = vector.load %arg3[%c22, %c0_67] : memref<27x1024xf32, #tpu.memory_space<vmem>>, vector<1x1024xf32>
    %90 = arith.mulf %88, %89 : vector<1x1024xf32>
    %c22_68 = arith.constant 22 : index
    %c0_69 = arith.constant 0 : index
    %91 = vector.load %arg13[%c22_68, %c0_69] : memref<32x1024xf32, #tpu.memory_space<vmem>>, vector<1x1024xf32>
    tpu.vector_store %arg13[%c22_68, %c0_69], %90 {strides = array<i32>} : memref<32x1024xf32, #tpu.memory_space<vmem>>, vector<1x1024xf32>,
    %c959_i32 = arith.constant 959 : i32
    %92 = tpu.dynamic_rotate %0 by %c959_i32 dim 1 : vector<1x1024xf32>, i32 -> vector<1x1024xf32>
    %c23 = arith.constant 23 : index
    %c0_70 = arith.constant 0 : index
    %93 = vector.load %arg3[%c23, %c0_70] : memref<27x1024xf32, #tpu.memory_space<vmem>>, vector<1x1024xf32>
    %94 = arith.mulf %92, %93 : vector<1x1024xf32>
    %c23_71 = arith.constant 23 : index
    %c0_72 = arith.constant 0 : index
    %95 = vector.load %arg13[%c23_71, %c0_72] : memref<32x1024xf32, #tpu.memory_space<vmem>>, vector<1x1024xf32>
    tpu.vector_store %arg13[%c23_71, %c0_72], %94 {strides = array<i32>} : memref<32x1024xf32, #tpu.memory_space<vmem>>, vector<1x1024xf32>,
    %c953_i32 = arith.constant 953 : i32
    %96 = tpu.dynamic_rotate %0 by %c953_i32 dim 1 : vector<1x1024xf32>, i32 -> vector<1x1024xf32>
    %c24 = arith.constant 24 : index
    %c0_73 = arith.constant 0 : index
    %97 = vector.load %arg3[%c24, %c0_73] : memref<27x1024xf32, #tpu.memory_space<vmem>>, vector<1x1024xf32>
    %98 = arith.mulf %96, %97 : vector<1x1024xf32>
    %c24_74 = arith.constant 24 : index
    %c0_75 = arith.constant 0 : index
    %99 = vector.load %arg13[%c24_74, %c0_75] : memref<32x1024xf32, #tpu.memory_space<vmem>>, vector<1x1024xf32>
    tpu.vector_store %arg13[%c24_74, %c0_75], %98 {strides = array<i32>} : memref<32x1024xf32, #tpu.memory_space<vmem>>, vector<1x1024xf32>,
    %c952_i32 = arith.constant 952 : i32
    %100 = tpu.dynamic_rotate %0 by %c952_i32 dim 1 : vector<1x1024xf32>, i32 -> vector<1x1024xf32>
    %c25 = arith.constant 25 : index
    %c0_76 = arith.constant 0 : index
    %101 = vector.load %arg3[%c25, %c0_76] : memref<27x1024xf32, #tpu.memory_space<vmem>>, vector<1x1024xf32>
    %102 = arith.mulf %100, %101 : vector<1x1024xf32>
    %c25_77 = arith.constant 25 : index
    %c0_78 = arith.constant 0 : index
    %103 = vector.load %arg13[%c25_77, %c0_78] : memref<32x1024xf32, #tpu.memory_space<vmem>>, vector<1x1024xf32>
    tpu.vector_store %arg13[%c25_77, %c0_78], %102 {strides = array<i32>} : memref<32x1024xf32, #tpu.memory_space<vmem>>, vector<1x1024xf32>,
    %c951_i32 = arith.constant 951 : i32
    %104 = tpu.dynamic_rotate %0 by %c951_i32 dim 1 : vector<1x1024xf32>, i32 -> vector<1x1024xf32>
    %c26 = arith.constant 26 : index
    %c0_79 = arith.constant 0 : index
    %105 = vector.load %arg3[%c26, %c0_79] : memref<27x1024xf32, #tpu.memory_space<vmem>>, vector<1x1024xf32>
    %106 = arith.mulf %104, %105 : vector<1x1024xf32>
    %c26_80 = arith.constant 26 : index
    %c0_81 = arith.constant 0 : index
    %107 = vector.load %arg13[%c26_80, %c0_81] : memref<32x1024xf32, #tpu.memory_space<vmem>>, vector<1x1024xf32>
    tpu.vector_store %arg13[%c26_80, %c0_81], %106 {strides = array<i32>} : memref<32x1024xf32, #tpu.memory_space<vmem>>, vector<1x1024xf32>,
    %c0_82 = arith.constant 0 : index
    %c0_83 = arith.constant 0 : index
    %108 = vector.load %arg5[%c0_82, %c0_83] : memref<4x32xf32, #tpu.memory_space<vmem>>, vector<4x32xf32>
    %c0_84 = arith.constant 0 : index
    %c0_85 = arith.constant 0 : index
    %109 = vector.load %arg13[%c0_84, %c0_85] : memref<32x1024xf32, #tpu.memory_space<vmem>>, vector<32x1024xf32>
    %cst_86 = arith.constant dense<0.000000e+00> : vector<4x1024xf32>
    %110 = tpu.matmul %108, %109, %cst_86 {dimension_numbers = #tpu.dot_dimension_numbers<[1], [0], [0], [1], [0, 0, 1, 1], [], []>} : vector<4x32xf32>, vector<32x1024xf32>, vector<4x1024xf32> -> vector<4x1024xf32>
    %c0_87 = arith.constant 0 : index
    %c0_88 = arith.constant 0 : index
    %111 = vector.load %arg2[%c0_87, %c0_88] : memref<8x6xf32, #tpu.memory_space<vmem>>, vector<4x1xf32>
    %c0_89 = arith.constant 0 : index
    %c1_90 = arith.constant 1 : index
    %112 = vector.load %arg2[%c0_89, %c1_90] : memref<8x6xf32, #tpu.memory_space<vmem>>, vector<4x1xf32>
    %113 = vector.broadcast %111 : vector<4x1xf32> to vector<4x1024xf32>
    %114 = arith.mulf %110, %113 : vector<4x1024xf32>
    %115 = vector.broadcast %112 : vector<4x1xf32> to vector<4x1024xf32>
    %116 = arith.addf %114, %115 : vector<4x1024xf32>
    %cst_91 = arith.constant 0.000000e+00 : f32
    %117 = vector.broadcast %cst_91 : f32 to vector<4x1024xf32>
    %118 = arith.maximumf %116, %117 : vector<4x1024xf32>
    %cst_92 = arith.constant 0.000000e+00 : f32
    %119 = vector.broadcast %cst_92 : f32 to vector<20x1024xf32>
    %c108 = arith.constant 108 : index
    %c0_93 = arith.constant 0 : index
    %120 = vector.load %arg14[%c108, %c0_93] : memref<128x1024xf32, #tpu.memory_space<vmem>>, vector<20x1024xf32>
    tpu.vector_store %arg14[%c108, %c0_93], %119 {strides = array<i32>} : memref<128x1024xf32, #tpu.memory_space<vmem>>, vector<20x1024xf32>,
    %c73_i32_94 = arith.constant 73 : i32
    %121 = tpu.dynamic_rotate %118 by %c73_i32_94 dim 1 : vector<4x1024xf32>, i32 -> vector<4x1024xf32>
    %c0_95 = arith.constant 0 : index
    %c0_96 = arith.constant 0 : index
    %122 = vector.load %arg3[%c0_95, %c0_96] : memref<27x1024xf32, #tpu.memory_space<vmem>>, vector<1x1024xf32>
    %123 = vector.broadcast %122 : vector<1x1024xf32> to vector<4x1024xf32>
    %124 = arith.mulf %121, %123 : vector<4x1024xf32>
    %c0_97 = arith.constant 0 : index
    %c0_98 = arith.constant 0 : index
    %125 = vector.load %arg14[%c0_97, %c0_98] : memref<128x1024xf32, #tpu.memory_space<vmem>>, vector<4x1024xf32>
    tpu.vector_store %arg14[%c0_97, %c0_98], %124 {strides = array<i32>} : memref<128x1024xf32, #tpu.memory_space<vmem>>, vector<4x1024xf32>,
    %c72_i32_99 = arith.constant 72 : i32
    %126 = tpu.dynamic_rotate %118 by %c72_i32_99 dim 1 : vector<4x1024xf32>, i32 -> vector<4x1024xf32>
    %c1_100 = arith.constant 1 : index
    %c0_101 = arith.constant 0 : index
    %127 = vector.load %arg3[%c1_100, %c0_101] : memref<27x1024xf32, #tpu.memory_space<vmem>>, vector<1x1024xf32>
    %128 = vector.broadcast %127 : vector<1x1024xf32> to vector<4x1024xf32>
    %129 = arith.mulf %126, %128 : vector<4x1024xf32>
    %c4_102 = arith.constant 4 : index
    %c0_103 = arith.constant 0 : index
    %130 = vector.load %arg14[%c4_102, %c0_103] : memref<128x1024xf32, #tpu.memory_space<vmem>>, vector<4x1024xf32>
    tpu.vector_store %arg14[%c4_102, %c0_103], %129 {strides = array<i32>} : memref<128x1024xf32, #tpu.memory_space<vmem>>, vector<4x1024xf32>,
    %c71_i32_104 = arith.constant 71 : i32
    %131 = tpu.dynamic_rotate %118 by %c71_i32_104 dim 1 : vector<4x1024xf32>, i32 -> vector<4x1024xf32>
    %c2_105 = arith.constant 2 : index
    %c0_106 = arith.constant 0 : index
    %132 = vector.load %arg3[%c2_105, %c0_106] : memref<27x1024xf32, #tpu.memory_space<vmem>>, vector<1x1024xf32>
    %133 = vector.broadcast %132 : vector<1x1024xf32> to vector<4x1024xf32>
    %134 = arith.mulf %131, %133 : vector<4x1024xf32>
    %c8_107 = arith.constant 8 : index
    %c0_108 = arith.constant 0 : index
    %135 = vector.load %arg14[%c8_107, %c0_108] : memref<128x1024xf32, #tpu.memory_space<vmem>>, vector<4x1024xf32>
    tpu.vector_store %arg14[%c8_107, %c0_108], %134 {strides = array<i32>} : memref<128x1024xf32, #tpu.memory_space<vmem>>, vector<4x1024xf32>,
    %c65_i32_109 = arith.constant 65 : i32
    %136 = tpu.dynamic_rotate %118 by %c65_i32_109 dim 1 : vector<4x1024xf32>, i32 -> vector<4x1024xf32>
    %c3_110 = arith.constant 3 : index
    %c0_111 = arith.constant 0 : index
    %137 = vector.load %arg3[%c3_110, %c0_111] : memref<27x1024xf32, #tpu.memory_space<vmem>>, vector<1x1024xf32>
    %138 = vector.broadcast %137 : vector<1x1024xf32> to vector<4x1024xf32>
    %139 = arith.mulf %136, %138 : vector<4x1024xf32>
    %c12_112 = arith.constant 12 : index
    %c0_113 = arith.constant 0 : index
    %140 = vector.load %arg14[%c12_112, %c0_113] : memref<128x1024xf32, #tpu.memory_space<vmem>>, vector<4x1024xf32>
    tpu.vector_store %arg14[%c12_112, %c0_113], %139 {strides = array<i32>} : memref<128x1024xf32, #tpu.memory_space<vmem>>, vector<4x1024xf32>,
    %c64_i32_114 = arith.constant 64 : i32
    %141 = tpu.dynamic_rotate %118 by %c64_i32_114 dim 1 : vector<4x1024xf32>, i32 -> vector<4x1024xf32>
    %c4_115 = arith.constant 4 : index
    %c0_116 = arith.constant 0 : index
    %142 = vector.load %arg3[%c4_115, %c0_116] : memref<27x1024xf32, #tpu.memory_space<vmem>>, vector<1x1024xf32>
    %143 = vector.broadcast %142 : vector<1x1024xf32> to vector<4x1024xf32>
    %144 = arith.mulf %141, %143 : vector<4x1024xf32>
    %c16_117 = arith.constant 16 : index
    %c0_118 = arith.constant 0 : index
    %145 = vector.load %arg14[%c16_117, %c0_118] : memref<128x1024xf32, #tpu.memory_space<vmem>>, vector<4x1024xf32>
    tpu.vector_store %arg14[%c16_117, %c0_118], %144 {strides = array<i32>} : memref<128x1024xf32, #tpu.memory_space<vmem>>, vector<4x1024xf32>,
    %c63_i32_119 = arith.constant 63 : i32
    %146 = tpu.dynamic_rotate %118 by %c63_i32_119 dim 1 : vector<4x1024xf32>, i32 -> vector<4x1024xf32>
    %c5_120 = arith.constant 5 : index
    %c0_121 = arith.constant 0 : index
    %147 = vector.load %arg3[%c5_120, %c0_121] : memref<27x1024xf32, #tpu.memory_space<vmem>>, vector<1x1024xf32>
    %148 = vector.broadcast %147 : vector<1x1024xf32> to vector<4x1024xf32>
    %149 = arith.mulf %146, %148 : vector<4x1024xf32>
    %c20_122 = arith.constant 20 : index
    %c0_123 = arith.constant 0 : index
    %150 = vector.load %arg14[%c20_122, %c0_123] : memref<128x1024xf32, #tpu.memory_space<vmem>>, vector<4x1024xf32>
    tpu.vector_store %arg14[%c20_122, %c0_123], %149 {strides = array<i32>} : memref<128x1024xf32, #tpu.memory_space<vmem>>, vector<4x1024xf32>,
    %c57_i32_124 = arith.constant 57 : i32
    %151 = tpu.dynamic_rotate %118 by %c57_i32_124 dim 1 : vector<4x1024xf32>, i32 -> vector<4x1024xf32>
    %c6_125 = arith.constant 6 : index
    %c0_126 = arith.constant 0 : index
    %152 = vector.load %arg3[%c6_125, %c0_126] : memref<27x1024xf32, #tpu.memory_space<vmem>>, vector<1x1024xf32>
    %153 = vector.broadcast %152 : vector<1x1024xf32> to vector<4x1024xf32>
    %154 = arith.mulf %151, %153 : vector<4x1024xf32>
    %c24_127 = arith.constant 24 : index
    %c0_128 = arith.constant 0 : index
    %155 = vector.load %arg14[%c24_127, %c0_128] : memref<128x1024xf32, #tpu.memory_space<vmem>>, vector<4x1024xf32>
    tpu.vector_store %arg14[%c24_127, %c0_128], %154 {strides = array<i32>} : memref<128x1024xf32, #tpu.memory_space<vmem>>, vector<4x1024xf32>,
    %c56_i32_129 = arith.constant 56 : i32
    %156 = tpu.dynamic_rotate %118 by %c56_i32_129 dim 1 : vector<4x1024xf32>, i32 -> vector<4x1024xf32>
    %c7_130 = arith.constant 7 : index
    %c0_131 = arith.constant 0 : index
    %157 = vector.load %arg3[%c7_130, %c0_131] : memref<27x1024xf32, #tpu.memory_space<vmem>>, vector<1x1024xf32>
    %158 = vector.broadcast %157 : vector<1x1024xf32> to vector<4x1024xf32>
    %159 = arith.mulf %156, %158 : vector<4x1024xf32>
    %c28 = arith.constant 28 : index
    %c0_132 = arith.constant 0 : index
    %160 = vector.load %arg14[%c28, %c0_132] : memref<128x1024xf32, #tpu.memory_space<vmem>>, vector<4x1024xf32>
    tpu.vector_store %arg14[%c28, %c0_132], %159 {strides = array<i32>} : memref<128x1024xf32, #tpu.memory_space<vmem>>, vector<4x1024xf32>,
    %c55_i32_133 = arith.constant 55 : i32
    %161 = tpu.dynamic_rotate %118 by %c55_i32_133 dim 1 : vector<4x1024xf32>, i32 -> vector<4x1024xf32>
    %c8_134 = arith.constant 8 : index
    %c0_135 = arith.constant 0 : index
    %162 = vector.load %arg3[%c8_134, %c0_135] : memref<27x1024xf32, #tpu.memory_space<vmem>>, vector<1x1024xf32>
    %163 = vector.broadcast %162 : vector<1x1024xf32> to vector<4x1024xf32>
    %164 = arith.mulf %161, %163 : vector<4x1024xf32>
    %c32 = arith.constant 32 : index
    %c0_136 = arith.constant 0 : index
    %165 = vector.load %arg14[%c32, %c0_136] : memref<128x1024xf32, #tpu.memory_space<vmem>>, vector<4x1024xf32>
    tpu.vector_store %arg14[%c32, %c0_136], %164 {strides = array<i32>} : memref<128x1024xf32, #tpu.memory_space<vmem>>, vector<4x1024xf32>,
    %c9_i32_137 = arith.constant 9 : i32
    %166 = tpu.dynamic_rotate %118 by %c9_i32_137 dim 1 : vector<4x1024xf32>, i32 -> vector<4x1024xf32>
    %c9_138 = arith.constant 9 : index
    %c0_139 = arith.constant 0 : index
    %167 = vector.load %arg3[%c9_138, %c0_139] : memref<27x1024xf32, #tpu.memory_space<vmem>>, vector<1x1024xf32>
    %168 = vector.broadcast %167 : vector<1x1024xf32> to vector<4x1024xf32>
    %169 = arith.mulf %166, %168 : vector<4x1024xf32>
    %c36 = arith.constant 36 : index
    %c0_140 = arith.constant 0 : index
    %170 = vector.load %arg14[%c36, %c0_140] : memref<128x1024xf32, #tpu.memory_space<vmem>>, vector<4x1024xf32>
    tpu.vector_store %arg14[%c36, %c0_140], %169 {strides = array<i32>} : memref<128x1024xf32, #tpu.memory_space<vmem>>, vector<4x1024xf32>,
    %c8_i32_141 = arith.constant 8 : i32
    %171 = tpu.dynamic_rotate %118 by %c8_i32_141 dim 1 : vector<4x1024xf32>, i32 -> vector<4x1024xf32>
    %c10_142 = arith.constant 10 : index
    %c0_143 = arith.constant 0 : index
    %172 = vector.load %arg3[%c10_142, %c0_143] : memref<27x1024xf32, #tpu.memory_space<vmem>>, vector<1x1024xf32>
    %173 = vector.broadcast %172 : vector<1x1024xf32> to vector<4x1024xf32>
    %174 = arith.mulf %171, %173 : vector<4x1024xf32>
    %c40 = arith.constant 40 : index
    %c0_144 = arith.constant 0 : index
    %175 = vector.load %arg14[%c40, %c0_144] : memref<128x1024xf32, #tpu.memory_space<vmem>>, vector<4x1024xf32>
    tpu.vector_store %arg14[%c40, %c0_144], %174 {strides = array<i32>} : memref<128x1024xf32, #tpu.memory_space<vmem>>, vector<4x1024xf32>,
    %c7_i32_145 = arith.constant 7 : i32
    %176 = tpu.dynamic_rotate %118 by %c7_i32_145 dim 1 : vector<4x1024xf32>, i32 -> vector<4x1024xf32>
    %c11_146 = arith.constant 11 : index
    %c0_147 = arith.constant 0 : index
    %177 = vector.load %arg3[%c11_146, %c0_147] : memref<27x1024xf32, #tpu.memory_space<vmem>>, vector<1x1024xf32>
    %178 = vector.broadcast %177 : vector<1x1024xf32> to vector<4x1024xf32>
    %179 = arith.mulf %176, %178 : vector<4x1024xf32>
    %c44 = arith.constant 44 : index
    %c0_148 = arith.constant 0 : index
    %180 = vector.load %arg14[%c44, %c0_148] : memref<128x1024xf32, #tpu.memory_space<vmem>>, vector<4x1024xf32>
    tpu.vector_store %arg14[%c44, %c0_148], %179 {strides = array<i32>} : memref<128x1024xf32, #tpu.memory_space<vmem>>, vector<4x1024xf32>,
    %c1_i32_149 = arith.constant 1 : i32
    %181 = tpu.dynamic_rotate %118 by %c1_i32_149 dim 1 : vector<4x1024xf32>, i32 -> vector<4x1024xf32>
    %c12_150 = arith.constant 12 : index
    %c0_151 = arith.constant 0 : index
    %182 = vector.load %arg3[%c12_150, %c0_151] : memref<27x1024xf32, #tpu.memory_space<vmem>>, vector<1x1024xf32>
    %183 = vector.broadcast %182 : vector<1x1024xf32> to vector<4x1024xf32>
    %184 = arith.mulf %181, %183 : vector<4x1024xf32>
    %c48 = arith.constant 48 : index
    %c0_152 = arith.constant 0 : index
    %185 = vector.load %arg14[%c48, %c0_152] : memref<128x1024xf32, #tpu.memory_space<vmem>>, vector<4x1024xf32>
    tpu.vector_store %arg14[%c48, %c0_152], %184 {strides = array<i32>} : memref<128x1024xf32, #tpu.memory_space<vmem>>, vector<4x1024xf32>,
    %c52 = arith.constant 52 : index
    %c0_153 = arith.constant 0 : index
    %186 = vector.load %arg14[%c52, %c0_153] : memref<128x1024xf32, #tpu.memory_space<vmem>>, vector<4x1024xf32>
    tpu.vector_store %arg14[%c52, %c0_153], %118 {strides = array<i32>} : memref<128x1024xf32, #tpu.memory_space<vmem>>, vector<4x1024xf32>,
    %c1023_i32_154 = arith.constant 1023 : i32
    %187 = tpu.dynamic_rotate %118 by %c1023_i32_154 dim 1 : vector<4x1024xf32>, i32 -> vector<4x1024xf32>
    %c14_155 = arith.constant 14 : index
    %c0_156 = arith.constant 0 : index
    %188 = vector.load %arg3[%c14_155, %c0_156] : memref<27x1024xf32, #tpu.memory_space<vmem>>, vector<1x1024xf32>
    %189 = vector.broadcast %188 : vector<1x1024xf32> to vector<4x1024xf32>
    %190 = arith.mulf %187, %189 : vector<4x1024xf32>
    %c56 = arith.constant 56 : index
    %c0_157 = arith.constant 0 : index
    %191 = vector.load %arg14[%c56, %c0_157] : memref<128x1024xf32, #tpu.memory_space<vmem>>, vector<4x1024xf32>
    tpu.vector_store %arg14[%c56, %c0_157], %190 {strides = array<i32>} : memref<128x1024xf32, #tpu.memory_space<vmem>>, vector<4x1024xf32>,
    %c1017_i32_158 = arith.constant 1017 : i32
    %192 = tpu.dynamic_rotate %118 by %c1017_i32_158 dim 1 : vector<4x1024xf32>, i32 -> vector<4x1024xf32>
    %c15_159 = arith.constant 15 : index
    %c0_160 = arith.constant 0 : index
    %193 = vector.load %arg3[%c15_159, %c0_160] : memref<27x1024xf32, #tpu.memory_space<vmem>>, vector<1x1024xf32>
    %194 = vector.broadcast %193 : vector<1x1024xf32> to vector<4x1024xf32>
    %195 = arith.mulf %192, %194 : vector<4x1024xf32>
    %c60 = arith.constant 60 : index
    %c0_161 = arith.constant 0 : index
    %196 = vector.load %arg14[%c60, %c0_161] : memref<128x1024xf32, #tpu.memory_space<vmem>>, vector<4x1024xf32>
    tpu.vector_store %arg14[%c60, %c0_161], %195 {strides = array<i32>} : memref<128x1024xf32, #tpu.memory_space<vmem>>, vector<4x1024xf32>,
    %c1016_i32_162 = arith.constant 1016 : i32
    %197 = tpu.dynamic_rotate %118 by %c1016_i32_162 dim 1 : vector<4x1024xf32>, i32 -> vector<4x1024xf32>
    %c16_163 = arith.constant 16 : index
    %c0_164 = arith.constant 0 : index
    %198 = vector.load %arg3[%c16_163, %c0_164] : memref<27x1024xf32, #tpu.memory_space<vmem>>, vector<1x1024xf32>
    %199 = vector.broadcast %198 : vector<1x1024xf32> to vector<4x1024xf32>
    %200 = arith.mulf %197, %199 : vector<4x1024xf32>
    %c64 = arith.constant 64 : index
    %c0_165 = arith.constant 0 : index
    %201 = vector.load %arg14[%c64, %c0_165] : memref<128x1024xf32, #tpu.memory_space<vmem>>, vector<4x1024xf32>
    tpu.vector_store %arg14[%c64, %c0_165], %200 {strides = array<i32>} : memref<128x1024xf32, #tpu.memory_space<vmem>>, vector<4x1024xf32>,
    %c1015_i32_166 = arith.constant 1015 : i32
    %202 = tpu.dynamic_rotate %118 by %c1015_i32_166 dim 1 : vector<4x1024xf32>, i32 -> vector<4x1024xf32>
    %c17_167 = arith.constant 17 : index
    %c0_168 = arith.constant 0 : index
    %203 = vector.load %arg3[%c17_167, %c0_168] : memref<27x1024xf32, #tpu.memory_space<vmem>>, vector<1x1024xf32>
    %204 = vector.broadcast %203 : vector<1x1024xf32> to vector<4x1024xf32>
    %205 = arith.mulf %202, %204 : vector<4x1024xf32>
    %c68 = arith.constant 68 : index
    %c0_169 = arith.constant 0 : index
    %206 = vector.load %arg14[%c68, %c0_169] : memref<128x1024xf32, #tpu.memory_space<vmem>>, vector<4x1024xf32>
    tpu.vector_store %arg14[%c68, %c0_169], %205 {strides = array<i32>} : memref<128x1024xf32, #tpu.memory_space<vmem>>, vector<4x1024xf32>,
    %c969_i32_170 = arith.constant 969 : i32
    %207 = tpu.dynamic_rotate %118 by %c969_i32_170 dim 1 : vector<4x1024xf32>, i32 -> vector<4x1024xf32>
    %c18_171 = arith.constant 18 : index
    %c0_172 = arith.constant 0 : index
    %208 = vector.load %arg3[%c18_171, %c0_172] : memref<27x1024xf32, #tpu.memory_space<vmem>>, vector<1x1024xf32>
    %209 = vector.broadcast %208 : vector<1x1024xf32> to vector<4x1024xf32>
    %210 = arith.mulf %207, %209 : vector<4x1024xf32>
    %c72 = arith.constant 72 : index
    %c0_173 = arith.constant 0 : index
    %211 = vector.load %arg14[%c72, %c0_173] : memref<128x1024xf32, #tpu.memory_space<vmem>>, vector<4x1024xf32>
    tpu.vector_store %arg14[%c72, %c0_173], %210 {strides = array<i32>} : memref<128x1024xf32, #tpu.memory_space<vmem>>, vector<4x1024xf32>,
    %c968_i32_174 = arith.constant 968 : i32
    %212 = tpu.dynamic_rotate %118 by %c968_i32_174 dim 1 : vector<4x1024xf32>, i32 -> vector<4x1024xf32>
    %c19_175 = arith.constant 19 : index
    %c0_176 = arith.constant 0 : index
    %213 = vector.load %arg3[%c19_175, %c0_176] : memref<27x1024xf32, #tpu.memory_space<vmem>>, vector<1x1024xf32>
    %214 = vector.broadcast %213 : vector<1x1024xf32> to vector<4x1024xf32>
    %215 = arith.mulf %212, %214 : vector<4x1024xf32>
    %c76 = arith.constant 76 : index
    %c0_177 = arith.constant 0 : index
    %216 = vector.load %arg14[%c76, %c0_177] : memref<128x1024xf32, #tpu.memory_space<vmem>>, vector<4x1024xf32>
    tpu.vector_store %arg14[%c76, %c0_177], %215 {strides = array<i32>} : memref<128x1024xf32, #tpu.memory_space<vmem>>, vector<4x1024xf32>,
    %c967_i32_178 = arith.constant 967 : i32
    %217 = tpu.dynamic_rotate %118 by %c967_i32_178 dim 1 : vector<4x1024xf32>, i32 -> vector<4x1024xf32>
    %c20_179 = arith.constant 20 : index
    %c0_180 = arith.constant 0 : index
    %218 = vector.load %arg3[%c20_179, %c0_180] : memref<27x1024xf32, #tpu.memory_space<vmem>>, vector<1x1024xf32>
    %219 = vector.broadcast %218 : vector<1x1024xf32> to vector<4x1024xf32>
    %220 = arith.mulf %217, %219 : vector<4x1024xf32>
    %c80 = arith.constant 80 : index
    %c0_181 = arith.constant 0 : index
    %221 = vector.load %arg14[%c80, %c0_181] : memref<128x1024xf32, #tpu.memory_space<vmem>>, vector<4x1024xf32>
    tpu.vector_store %arg14[%c80, %c0_181], %220 {strides = array<i32>} : memref<128x1024xf32, #tpu.memory_space<vmem>>, vector<4x1024xf32>,
    %c961_i32_182 = arith.constant 961 : i32
    %222 = tpu.dynamic_rotate %118 by %c961_i32_182 dim 1 : vector<4x1024xf32>, i32 -> vector<4x1024xf32>
    %c21_183 = arith.constant 21 : index
    %c0_184 = arith.constant 0 : index
    %223 = vector.load %arg3[%c21_183, %c0_184] : memref<27x1024xf32, #tpu.memory_space<vmem>>, vector<1x1024xf32>
    %224 = vector.broadcast %223 : vector<1x1024xf32> to vector<4x1024xf32>
    %225 = arith.mulf %222, %224 : vector<4x1024xf32>
    %c84 = arith.constant 84 : index
    %c0_185 = arith.constant 0 : index
    %226 = vector.load %arg14[%c84, %c0_185] : memref<128x1024xf32, #tpu.memory_space<vmem>>, vector<4x1024xf32>
    tpu.vector_store %arg14[%c84, %c0_185], %225 {strides = array<i32>} : memref<128x1024xf32, #tpu.memory_space<vmem>>, vector<4x1024xf32>,
    %c960_i32_186 = arith.constant 960 : i32
    %227 = tpu.dynamic_rotate %118 by %c960_i32_186 dim 1 : vector<4x1024xf32>, i32 -> vector<4x1024xf32>
    %c22_187 = arith.constant 22 : index
    %c0_188 = arith.constant 0 : index
    %228 = vector.load %arg3[%c22_187, %c0_188] : memref<27x1024xf32, #tpu.memory_space<vmem>>, vector<1x1024xf32>
    %229 = vector.broadcast %228 : vector<1x1024xf32> to vector<4x1024xf32>
    %230 = arith.mulf %227, %229 : vector<4x1024xf32>
    %c88 = arith.constant 88 : index
    %c0_189 = arith.constant 0 : index
    %231 = vector.load %arg14[%c88, %c0_189] : memref<128x1024xf32, #tpu.memory_space<vmem>>, vector<4x1024xf32>
    tpu.vector_store %arg14[%c88, %c0_189], %230 {strides = array<i32>} : memref<128x1024xf32, #tpu.memory_space<vmem>>, vector<4x1024xf32>,
    %c959_i32_190 = arith.constant 959 : i32
    %232 = tpu.dynamic_rotate %118 by %c959_i32_190 dim 1 : vector<4x1024xf32>, i32 -> vector<4x1024xf32>
    %c23_191 = arith.constant 23 : index
    %c0_192 = arith.constant 0 : index
    %233 = vector.load %arg3[%c23_191, %c0_192] : memref<27x1024xf32, #tpu.memory_space<vmem>>, vector<1x1024xf32>
    %234 = vector.broadcast %233 : vector<1x1024xf32> to vector<4x1024xf32>
    %235 = arith.mulf %232, %234 : vector<4x1024xf32>
    %c92 = arith.constant 92 : index
    %c0_193 = arith.constant 0 : index
    %236 = vector.load %arg14[%c92, %c0_193] : memref<128x1024xf32, #tpu.memory_space<vmem>>, vector<4x1024xf32>
    tpu.vector_store %arg14[%c92, %c0_193], %235 {strides = array<i32>} : memref<128x1024xf32, #tpu.memory_space<vmem>>, vector<4x1024xf32>,
    %c953_i32_194 = arith.constant 953 : i32
    %237 = tpu.dynamic_rotate %118 by %c953_i32_194 dim 1 : vector<4x1024xf32>, i32 -> vector<4x1024xf32>
    %c24_195 = arith.constant 24 : index
    %c0_196 = arith.constant 0 : index
    %238 = vector.load %arg3[%c24_195, %c0_196] : memref<27x1024xf32, #tpu.memory_space<vmem>>, vector<1x1024xf32>
    %239 = vector.broadcast %238 : vector<1x1024xf32> to vector<4x1024xf32>
    %240 = arith.mulf %237, %239 : vector<4x1024xf32>
    %c96 = arith.constant 96 : index
    %c0_197 = arith.constant 0 : index
    %241 = vector.load %arg14[%c96, %c0_197] : memref<128x1024xf32, #tpu.memory_space<vmem>>, vector<4x1024xf32>
    tpu.vector_store %arg14[%c96, %c0_197], %240 {strides = array<i32>} : memref<128x1024xf32, #tpu.memory_space<vmem>>, vector<4x1024xf32>,
    %c952_i32_198 = arith.constant 952 : i32
    %242 = tpu.dynamic_rotate %118 by %c952_i32_198 dim 1 : vector<4x1024xf32>, i32 -> vector<4x1024xf32>
    %c25_199 = arith.constant 25 : index
    %c0_200 = arith.constant 0 : index
    %243 = vector.load %arg3[%c25_199, %c0_200] : memref<27x1024xf32, #tpu.memory_space<vmem>>, vector<1x1024xf32>
    %244 = vector.broadcast %243 : vector<1x1024xf32> to vector<4x1024xf32>
    %245 = arith.mulf %242, %244 : vector<4x1024xf32>
    %c100 = arith.constant 100 : index
    %c0_201 = arith.constant 0 : index
    %246 = vector.load %arg14[%c100, %c0_201] : memref<128x1024xf32, #tpu.memory_space<vmem>>, vector<4x1024xf32>
    tpu.vector_store %arg14[%c100, %c0_201], %245 {strides = array<i32>} : memref<128x1024xf32, #tpu.memory_space<vmem>>, vector<4x1024xf32>,
    %c951_i32_202 = arith.constant 951 : i32
    %247 = tpu.dynamic_rotate %118 by %c951_i32_202 dim 1 : vector<4x1024xf32>, i32 -> vector<4x1024xf32>
    %c26_203 = arith.constant 26 : index
    %c0_204 = arith.constant 0 : index
    %248 = vector.load %arg3[%c26_203, %c0_204] : memref<27x1024xf32, #tpu.memory_space<vmem>>, vector<1x1024xf32>
    %249 = vector.broadcast %248 : vector<1x1024xf32> to vector<4x1024xf32>
    %250 = arith.mulf %247, %249 : vector<4x1024xf32>
    %c104 = arith.constant 104 : index
    %c0_205 = arith.constant 0 : index
    %251 = vector.load %arg14[%c104, %c0_205] : memref<128x1024xf32, #tpu.memory_space<vmem>>, vector<4x1024xf32>
    tpu.vector_store %arg14[%c104, %c0_205], %250 {strides = array<i32>} : memref<128x1024xf32, #tpu.memory_space<vmem>>, vector<4x1024xf32>,
    %c0_206 = arith.constant 0 : index
    %c0_207 = arith.constant 0 : index
    %252 = vector.load %arg6[%c0_206, %c0_207] : memref<4x128xf32, #tpu.memory_space<vmem>>, vector<4x128xf32>
    %c0_208 = arith.constant 0 : index
    %c0_209 = arith.constant 0 : index
    %253 = vector.load %arg14[%c0_208, %c0_209] : memref<128x1024xf32, #tpu.memory_space<vmem>>, vector<128x1024xf32>
    %cst_210 = arith.constant dense<0.000000e+00> : vector<4x1024xf32>
    %254 = tpu.matmul %252, %253, %cst_210 {dimension_numbers = #tpu.dot_dimension_numbers<[1], [0], [0], [1], [0, 0, 1, 1], [], []>} : vector<4x128xf32>, vector<128x1024xf32>, vector<4x1024xf32> -> vector<4x1024xf32>
    %c0_211 = arith.constant 0 : index
    %c2_212 = arith.constant 2 : index
    %255 = vector.load %arg2[%c0_211, %c2_212] : memref<8x6xf32, #tpu.memory_space<vmem>>, vector<4x1xf32>
    %c0_213 = arith.constant 0 : index
    %c3_214 = arith.constant 3 : index
    %256 = vector.load %arg2[%c0_213, %c3_214] : memref<8x6xf32, #tpu.memory_space<vmem>>, vector<4x1xf32>
    %c0_215 = arith.constant 0 : index
    %c0_216 = arith.constant 0 : index
    %257 = vector.load %arg8[%c0_215, %c0_216] : memref<1024x128xf32, #tpu.memory_space<vmem>>, vector<1024x128xf32>
    %cst_217 = arith.constant dense<0.000000e+00> : vector<4x128xf32>
    %258 = tpu.matmul %254, %257, %cst_217 {dimension_numbers = #tpu.dot_dimension_numbers<[1], [0], [0], [1], [0, 0, 1, 1], [], []>} : vector<4x1024xf32>, vector<1024x128xf32>, vector<4x128xf32> -> vector<4x128xf32>
    %259 = vector.broadcast %255 : vector<4x1xf32> to vector<4x128xf32>
    %260 = arith.mulf %258, %259 : vector<4x128xf32>
    %261 = vector.broadcast %256 : vector<4x1xf32> to vector<4x128xf32>
    %262 = arith.addf %260, %261 : vector<4x128xf32>
    %cst_218 = arith.constant 0.000000e+00 : f32
    %263 = vector.broadcast %cst_218 : f32 to vector<4x128xf32>
    %264 = arith.maximumf %262, %263 : vector<4x128xf32>
    %cst_219 = arith.constant 0.000000e+00 : f32
    %265 = vector.broadcast %cst_219 : f32 to vector<20x128xf32>
    %c108_220 = arith.constant 108 : index
    %c0_221 = arith.constant 0 : index
    %266 = vector.load %arg15[%c108_220, %c0_221] : memref<128x128xf32, #tpu.memory_space<vmem>>, vector<20x128xf32>
    tpu.vector_store %arg15[%c108_220, %c0_221], %265 {strides = array<i32>} : memref<128x128xf32, #tpu.memory_space<vmem>>, vector<20x128xf32>,
    %c21_i32 = arith.constant 21 : i32
    %267 = tpu.dynamic_rotate %264 by %c21_i32 dim 1 : vector<4x128xf32>, i32 -> vector<4x128xf32>
    %c0_222 = arith.constant 0 : index
    %c0_223 = arith.constant 0 : index
    %268 = vector.load %arg4[%c0_222, %c0_223] : memref<27x128xf32, #tpu.memory_space<vmem>>, vector<1x128xf32>
    %269 = vector.broadcast %268 : vector<1x128xf32> to vector<4x128xf32>
    %270 = arith.mulf %267, %269 : vector<4x128xf32>
    %c0_224 = arith.constant 0 : index
    %c0_225 = arith.constant 0 : index
    %271 = vector.load %arg15[%c0_224, %c0_225] : memref<128x128xf32, #tpu.memory_space<vmem>>, vector<4x128xf32>
    tpu.vector_store %arg15[%c0_224, %c0_225], %270 {strides = array<i32>} : memref<128x128xf32, #tpu.memory_space<vmem>>, vector<4x128xf32>,
    %c20_i32 = arith.constant 20 : i32
    %272 = tpu.dynamic_rotate %264 by %c20_i32 dim 1 : vector<4x128xf32>, i32 -> vector<4x128xf32>
    %c1_226 = arith.constant 1 : index
    %c0_227 = arith.constant 0 : index
    %273 = vector.load %arg4[%c1_226, %c0_227] : memref<27x128xf32, #tpu.memory_space<vmem>>, vector<1x128xf32>
    %274 = vector.broadcast %273 : vector<1x128xf32> to vector<4x128xf32>
    %275 = arith.mulf %272, %274 : vector<4x128xf32>
    %c4_228 = arith.constant 4 : index
    %c0_229 = arith.constant 0 : index
    %276 = vector.load %arg15[%c4_228, %c0_229] : memref<128x128xf32, #tpu.memory_space<vmem>>, vector<4x128xf32>
    tpu.vector_store %arg15[%c4_228, %c0_229], %275 {strides = array<i32>} : memref<128x128xf32, #tpu.memory_space<vmem>>, vector<4x128xf32>,
    %c19_i32 = arith.constant 19 : i32
    %277 = tpu.dynamic_rotate %264 by %c19_i32 dim 1 : vector<4x128xf32>, i32 -> vector<4x128xf32>
    %c2_230 = arith.constant 2 : index
    %c0_231 = arith.constant 0 : index
    %278 = vector.load %arg4[%c2_230, %c0_231] : memref<27x128xf32, #tpu.memory_space<vmem>>, vector<1x128xf32>
    %279 = vector.broadcast %278 : vector<1x128xf32> to vector<4x128xf32>
    %280 = arith.mulf %277, %279 : vector<4x128xf32>
    %c8_232 = arith.constant 8 : index
    %c0_233 = arith.constant 0 : index
    %281 = vector.load %arg15[%c8_232, %c0_233] : memref<128x128xf32, #tpu.memory_space<vmem>>, vector<4x128xf32>
    tpu.vector_store %arg15[%c8_232, %c0_233], %280 {strides = array<i32>} : memref<128x128xf32, #tpu.memory_space<vmem>>, vector<4x128xf32>,
    %c17_i32 = arith.constant 17 : i32
    %282 = tpu.dynamic_rotate %264 by %c17_i32 dim 1 : vector<4x128xf32>, i32 -> vector<4x128xf32>
    %c3_234 = arith.constant 3 : index
    %c0_235 = arith.constant 0 : index
    %283 = vector.load %arg4[%c3_234, %c0_235] : memref<27x128xf32, #tpu.memory_space<vmem>>, vector<1x128xf32>
    %284 = vector.broadcast %283 : vector<1x128xf32> to vector<4x128xf32>
    %285 = arith.mulf %282, %284 : vector<4x128xf32>
    %c12_236 = arith.constant 12 : index
    %c0_237 = arith.constant 0 : index
    %286 = vector.load %arg15[%c12_236, %c0_237] : memref<128x128xf32, #tpu.memory_space<vmem>>, vector<4x128xf32>
    tpu.vector_store %arg15[%c12_236, %c0_237], %285 {strides = array<i32>} : memref<128x128xf32, #tpu.memory_space<vmem>>, vector<4x128xf32>,
    %c16_i32 = arith.constant 16 : i32
    %287 = tpu.dynamic_rotate %264 by %c16_i32 dim 1 : vector<4x128xf32>, i32 -> vector<4x128xf32>
    %c4_238 = arith.constant 4 : index
    %c0_239 = arith.constant 0 : index
    %288 = vector.load %arg4[%c4_238, %c0_239] : memref<27x128xf32, #tpu.memory_space<vmem>>, vector<1x128xf32>
    %289 = vector.broadcast %288 : vector<1x128xf32> to vector<4x128xf32>
    %290 = arith.mulf %287, %289 : vector<4x128xf32>
    %c16_240 = arith.constant 16 : index
    %c0_241 = arith.constant 0 : index
    %291 = vector.load %arg15[%c16_240, %c0_241] : memref<128x128xf32, #tpu.memory_space<vmem>>, vector<4x128xf32>
    tpu.vector_store %arg15[%c16_240, %c0_241], %290 {strides = array<i32>} : memref<128x128xf32, #tpu.memory_space<vmem>>, vector<4x128xf32>,
    %c15_i32 = arith.constant 15 : i32
    %292 = tpu.dynamic_rotate %264 by %c15_i32 dim 1 : vector<4x128xf32>, i32 -> vector<4x128xf32>
    %c5_242 = arith.constant 5 : index
    %c0_243 = arith.constant 0 : index
    %293 = vector.load %arg4[%c5_242, %c0_243] : memref<27x128xf32, #tpu.memory_space<vmem>>, vector<1x128xf32>
    %294 = vector.broadcast %293 : vector<1x128xf32> to vector<4x128xf32>
    %295 = arith.mulf %292, %294 : vector<4x128xf32>
    %c20_244 = arith.constant 20 : index
    %c0_245 = arith.constant 0 : index
    %296 = vector.load %arg15[%c20_244, %c0_245] : memref<128x128xf32, #tpu.memory_space<vmem>>, vector<4x128xf32>
    tpu.vector_store %arg15[%c20_244, %c0_245], %295 {strides = array<i32>} : memref<128x128xf32, #tpu.memory_space<vmem>>, vector<4x128xf32>,
    %c13_i32 = arith.constant 13 : i32
    %297 = tpu.dynamic_rotate %264 by %c13_i32 dim 1 : vector<4x128xf32>, i32 -> vector<4x128xf32>
    %c6_246 = arith.constant 6 : index
    %c0_247 = arith.constant 0 : index
    %298 = vector.load %arg4[%c6_246, %c0_247] : memref<27x128xf32, #tpu.memory_space<vmem>>, vector<1x128xf32>
    %299 = vector.broadcast %298 : vector<1x128xf32> to vector<4x128xf32>
    %300 = arith.mulf %297, %299 : vector<4x128xf32>
    %c24_248 = arith.constant 24 : index
    %c0_249 = arith.constant 0 : index
    %301 = vector.load %arg15[%c24_248, %c0_249] : memref<128x128xf32, #tpu.memory_space<vmem>>, vector<4x128xf32>
    tpu.vector_store %arg15[%c24_248, %c0_249], %300 {strides = array<i32>} : memref<128x128xf32, #tpu.memory_space<vmem>>, vector<4x128xf32>,
    %c12_i32 = arith.constant 12 : i32
    %302 = tpu.dynamic_rotate %264 by %c12_i32 dim 1 : vector<4x128xf32>, i32 -> vector<4x128xf32>
    %c7_250 = arith.constant 7 : index
    %c0_251 = arith.constant 0 : index
    %303 = vector.load %arg4[%c7_250, %c0_251] : memref<27x128xf32, #tpu.memory_space<vmem>>, vector<1x128xf32>
    %304 = vector.broadcast %303 : vector<1x128xf32> to vector<4x128xf32>
    %305 = arith.mulf %302, %304 : vector<4x128xf32>
    %c28_252 = arith.constant 28 : index
    %c0_253 = arith.constant 0 : index
    %306 = vector.load %arg15[%c28_252, %c0_253] : memref<128x128xf32, #tpu.memory_space<vmem>>, vector<4x128xf32>
    tpu.vector_store %arg15[%c28_252, %c0_253], %305 {strides = array<i32>} : memref<128x128xf32, #tpu.memory_space<vmem>>, vector<4x128xf32>,
    %c11_i32 = arith.constant 11 : i32
    %307 = tpu.dynamic_rotate %264 by %c11_i32 dim 1 : vector<4x128xf32>, i32 -> vector<4x128xf32>
    %c8_254 = arith.constant 8 : index
    %c0_255 = arith.constant 0 : index
    %308 = vector.load %arg4[%c8_254, %c0_255] : memref<27x128xf32, #tpu.memory_space<vmem>>, vector<1x128xf32>
    %309 = vector.broadcast %308 : vector<1x128xf32> to vector<4x128xf32>
    %310 = arith.mulf %307, %309 : vector<4x128xf32>
    %c32_256 = arith.constant 32 : index
    %c0_257 = arith.constant 0 : index
    %311 = vector.load %arg15[%c32_256, %c0_257] : memref<128x128xf32, #tpu.memory_space<vmem>>, vector<4x128xf32>
    tpu.vector_store %arg15[%c32_256, %c0_257], %310 {strides = array<i32>} : memref<128x128xf32, #tpu.memory_space<vmem>>, vector<4x128xf32>,
    %c5_i32 = arith.constant 5 : i32
    %312 = tpu.dynamic_rotate %264 by %c5_i32 dim 1 : vector<4x128xf32>, i32 -> vector<4x128xf32>
    %c9_258 = arith.constant 9 : index
    %c0_259 = arith.constant 0 : index
    %313 = vector.load %arg4[%c9_258, %c0_259] : memref<27x128xf32, #tpu.memory_space<vmem>>, vector<1x128xf32>
    %314 = vector.broadcast %313 : vector<1x128xf32> to vector<4x128xf32>
    %315 = arith.mulf %312, %314 : vector<4x128xf32>
    %c36_260 = arith.constant 36 : index
    %c0_261 = arith.constant 0 : index
    %316 = vector.load %arg15[%c36_260, %c0_261] : memref<128x128xf32, #tpu.memory_space<vmem>>, vector<4x128xf32>
    tpu.vector_store %arg15[%c36_260, %c0_261], %315 {strides = array<i32>} : memref<128x128xf32, #tpu.memory_space<vmem>>, vector<4x128xf32>,
    %c4_i32 = arith.constant 4 : i32
    %317 = tpu.dynamic_rotate %264 by %c4_i32 dim 1 : vector<4x128xf32>, i32 -> vector<4x128xf32>
    %c10_262 = arith.constant 10 : index
    %c0_263 = arith.constant 0 : index
    %318 = vector.load %arg4[%c10_262, %c0_263] : memref<27x128xf32, #tpu.memory_space<vmem>>, vector<1x128xf32>
    %319 = vector.broadcast %318 : vector<1x128xf32> to vector<4x128xf32>
    %320 = arith.mulf %317, %319 : vector<4x128xf32>
    %c40_264 = arith.constant 40 : index
    %c0_265 = arith.constant 0 : index
    %321 = vector.load %arg15[%c40_264, %c0_265] : memref<128x128xf32, #tpu.memory_space<vmem>>, vector<4x128xf32>
    tpu.vector_store %arg15[%c40_264, %c0_265], %320 {strides = array<i32>} : memref<128x128xf32, #tpu.memory_space<vmem>>, vector<4x128xf32>,
    %c3_i32 = arith.constant 3 : i32
    %322 = tpu.dynamic_rotate %264 by %c3_i32 dim 1 : vector<4x128xf32>, i32 -> vector<4x128xf32>
    %c11_266 = arith.constant 11 : index
    %c0_267 = arith.constant 0 : index
    %323 = vector.load %arg4[%c11_266, %c0_267] : memref<27x128xf32, #tpu.memory_space<vmem>>, vector<1x128xf32>
    %324 = vector.broadcast %323 : vector<1x128xf32> to vector<4x128xf32>
    %325 = arith.mulf %322, %324 : vector<4x128xf32>
    %c44_268 = arith.constant 44 : index
    %c0_269 = arith.constant 0 : index
    %326 = vector.load %arg15[%c44_268, %c0_269] : memref<128x128xf32, #tpu.memory_space<vmem>>, vector<4x128xf32>
    tpu.vector_store %arg15[%c44_268, %c0_269], %325 {strides = array<i32>} : memref<128x128xf32, #tpu.memory_space<vmem>>, vector<4x128xf32>,
    %c1_i32_270 = arith.constant 1 : i32
    %327 = tpu.dynamic_rotate %264 by %c1_i32_270 dim 1 : vector<4x128xf32>, i32 -> vector<4x128xf32>
    %c12_271 = arith.constant 12 : index
    %c0_272 = arith.constant 0 : index
    %328 = vector.load %arg4[%c12_271, %c0_272] : memref<27x128xf32, #tpu.memory_space<vmem>>, vector<1x128xf32>
    %329 = vector.broadcast %328 : vector<1x128xf32> to vector<4x128xf32>
    %330 = arith.mulf %327, %329 : vector<4x128xf32>
    %c48_273 = arith.constant 48 : index
    %c0_274 = arith.constant 0 : index
    %331 = vector.load %arg15[%c48_273, %c0_274] : memref<128x128xf32, #tpu.memory_space<vmem>>, vector<4x128xf32>
    tpu.vector_store %arg15[%c48_273, %c0_274], %330 {strides = array<i32>} : memref<128x128xf32, #tpu.memory_space<vmem>>, vector<4x128xf32>,
    %c52_275 = arith.constant 52 : index
    %c0_276 = arith.constant 0 : index
    %332 = vector.load %arg15[%c52_275, %c0_276] : memref<128x128xf32, #tpu.memory_space<vmem>>, vector<4x128xf32>
    tpu.vector_store %arg15[%c52_275, %c0_276], %264 {strides = array<i32>} : memref<128x128xf32, #tpu.memory_space<vmem>>, vector<4x128xf32>,
    %c127_i32 = arith.constant 127 : i32
    %333 = tpu.dynamic_rotate %264 by %c127_i32 dim 1 : vector<4x128xf32>, i32 -> vector<4x128xf32>
    %c14_277 = arith.constant 14 : index
    %c0_278 = arith.constant 0 : index
    %334 = vector.load %arg4[%c14_277, %c0_278] : memref<27x128xf32, #tpu.memory_space<vmem>>, vector<1x128xf32>
    %335 = vector.broadcast %334 : vector<1x128xf32> to vector<4x128xf32>
    %336 = arith.mulf %333, %335 : vector<4x128xf32>
    %c56_279 = arith.constant 56 : index
    %c0_280 = arith.constant 0 : index
    %337 = vector.load %arg15[%c56_279, %c0_280] : memref<128x128xf32, #tpu.memory_space<vmem>>, vector<4x128xf32>
    tpu.vector_store %arg15[%c56_279, %c0_280], %336 {strides = array<i32>} : memref<128x128xf32, #tpu.memory_space<vmem>>, vector<4x128xf32>,
    %c125_i32 = arith.constant 125 : i32
    %338 = tpu.dynamic_rotate %264 by %c125_i32 dim 1 : vector<4x128xf32>, i32 -> vector<4x128xf32>
    %c15_281 = arith.constant 15 : index
    %c0_282 = arith.constant 0 : index
    %339 = vector.load %arg4[%c15_281, %c0_282] : memref<27x128xf32, #tpu.memory_space<vmem>>, vector<1x128xf32>
    %340 = vector.broadcast %339 : vector<1x128xf32> to vector<4x128xf32>
    %341 = arith.mulf %338, %340 : vector<4x128xf32>
    %c60_283 = arith.constant 60 : index
    %c0_284 = arith.constant 0 : index
    %342 = vector.load %arg15[%c60_283, %c0_284] : memref<128x128xf32, #tpu.memory_space<vmem>>, vector<4x128xf32>
    tpu.vector_store %arg15[%c60_283, %c0_284], %341 {strides = array<i32>} : memref<128x128xf32, #tpu.memory_space<vmem>>, vector<4x128xf32>,
    %c124_i32 = arith.constant 124 : i32
    %343 = tpu.dynamic_rotate %264 by %c124_i32 dim 1 : vector<4x128xf32>, i32 -> vector<4x128xf32>
    %c16_285 = arith.constant 16 : index
    %c0_286 = arith.constant 0 : index
    %344 = vector.load %arg4[%c16_285, %c0_286] : memref<27x128xf32, #tpu.memory_space<vmem>>, vector<1x128xf32>
    %345 = vector.broadcast %344 : vector<1x128xf32> to vector<4x128xf32>
    %346 = arith.mulf %343, %345 : vector<4x128xf32>
    %c64_287 = arith.constant 64 : index
    %c0_288 = arith.constant 0 : index
    %347 = vector.load %arg15[%c64_287, %c0_288] : memref<128x128xf32, #tpu.memory_space<vmem>>, vector<4x128xf32>
    tpu.vector_store %arg15[%c64_287, %c0_288], %346 {strides = array<i32>} : memref<128x128xf32, #tpu.memory_space<vmem>>, vector<4x128xf32>,
    %c123_i32 = arith.constant 123 : i32
    %348 = tpu.dynamic_rotate %264 by %c123_i32 dim 1 : vector<4x128xf32>, i32 -> vector<4x128xf32>
    %c17_289 = arith.constant 17 : index
    %c0_290 = arith.constant 0 : index
    %349 = vector.load %arg4[%c17_289, %c0_290] : memref<27x128xf32, #tpu.memory_space<vmem>>, vector<1x128xf32>
    %350 = vector.broadcast %349 : vector<1x128xf32> to vector<4x128xf32>
    %351 = arith.mulf %348, %350 : vector<4x128xf32>
    %c68_291 = arith.constant 68 : index
    %c0_292 = arith.constant 0 : index
    %352 = vector.load %arg15[%c68_291, %c0_292] : memref<128x128xf32, #tpu.memory_space<vmem>>, vector<4x128xf32>
    tpu.vector_store %arg15[%c68_291, %c0_292], %351 {strides = array<i32>} : memref<128x128xf32, #tpu.memory_space<vmem>>, vector<4x128xf32>,
    %c117_i32 = arith.constant 117 : i32
    %353 = tpu.dynamic_rotate %264 by %c117_i32 dim 1 : vector<4x128xf32>, i32 -> vector<4x128xf32>
    %c18_293 = arith.constant 18 : index
    %c0_294 = arith.constant 0 : index
    %354 = vector.load %arg4[%c18_293, %c0_294] : memref<27x128xf32, #tpu.memory_space<vmem>>, vector<1x128xf32>
    %355 = vector.broadcast %354 : vector<1x128xf32> to vector<4x128xf32>
    %356 = arith.mulf %353, %355 : vector<4x128xf32>
    %c72_295 = arith.constant 72 : index
    %c0_296 = arith.constant 0 : index
    %357 = vector.load %arg15[%c72_295, %c0_296] : memref<128x128xf32, #tpu.memory_space<vmem>>, vector<4x128xf32>
    tpu.vector_store %arg15[%c72_295, %c0_296], %356 {strides = array<i32>} : memref<128x128xf32, #tpu.memory_space<vmem>>, vector<4x128xf32>,
    %c116_i32 = arith.constant 116 : i32
    %358 = tpu.dynamic_rotate %264 by %c116_i32 dim 1 : vector<4x128xf32>, i32 -> vector<4x128xf32>
    %c19_297 = arith.constant 19 : index
    %c0_298 = arith.constant 0 : index
    %359 = vector.load %arg4[%c19_297, %c0_298] : memref<27x128xf32, #tpu.memory_space<vmem>>, vector<1x128xf32>
    %360 = vector.broadcast %359 : vector<1x128xf32> to vector<4x128xf32>
    %361 = arith.mulf %358, %360 : vector<4x128xf32>
    %c76_299 = arith.constant 76 : index
    %c0_300 = arith.constant 0 : index
    %362 = vector.load %arg15[%c76_299, %c0_300] : memref<128x128xf32, #tpu.memory_space<vmem>>, vector<4x128xf32>
    tpu.vector_store %arg15[%c76_299, %c0_300], %361 {strides = array<i32>} : memref<128x128xf32, #tpu.memory_space<vmem>>, vector<4x128xf32>,
    %c115_i32 = arith.constant 115 : i32
    %363 = tpu.dynamic_rotate %264 by %c115_i32 dim 1 : vector<4x128xf32>, i32 -> vector<4x128xf32>
    %c20_301 = arith.constant 20 : index
    %c0_302 = arith.constant 0 : index
    %364 = vector.load %arg4[%c20_301, %c0_302] : memref<27x128xf32, #tpu.memory_space<vmem>>, vector<1x128xf32>
    %365 = vector.broadcast %364 : vector<1x128xf32> to vector<4x128xf32>
    %366 = arith.mulf %363, %365 : vector<4x128xf32>
    %c80_303 = arith.constant 80 : index
    %c0_304 = arith.constant 0 : index
    %367 = vector.load %arg15[%c80_303, %c0_304] : memref<128x128xf32, #tpu.memory_space<vmem>>, vector<4x128xf32>
    tpu.vector_store %arg15[%c80_303, %c0_304], %366 {strides = array<i32>} : memref<128x128xf32, #tpu.memory_space<vmem>>, vector<4x128xf32>,
    %c113_i32 = arith.constant 113 : i32
    %368 = tpu.dynamic_rotate %264 by %c113_i32 dim 1 : vector<4x128xf32>, i32 -> vector<4x128xf32>
    %c21_305 = arith.constant 21 : index
    %c0_306 = arith.constant 0 : index
    %369 = vector.load %arg4[%c21_305, %c0_306] : memref<27x128xf32, #tpu.memory_space<vmem>>, vector<1x128xf32>
    %370 = vector.broadcast %369 : vector<1x128xf32> to vector<4x128xf32>
    %371 = arith.mulf %368, %370 : vector<4x128xf32>
    %c84_307 = arith.constant 84 : index
    %c0_308 = arith.constant 0 : index
    %372 = vector.load %arg15[%c84_307, %c0_308] : memref<128x128xf32, #tpu.memory_space<vmem>>, vector<4x128xf32>
    tpu.vector_store %arg15[%c84_307, %c0_308], %371 {strides = array<i32>} : memref<128x128xf32, #tpu.memory_space<vmem>>, vector<4x128xf32>,
    %c112_i32 = arith.constant 112 : i32
    %373 = tpu.dynamic_rotate %264 by %c112_i32 dim 1 : vector<4x128xf32>, i32 -> vector<4x128xf32>
    %c22_309 = arith.constant 22 : index
    %c0_310 = arith.constant 0 : index
    %374 = vector.load %arg4[%c22_309, %c0_310] : memref<27x128xf32, #tpu.memory_space<vmem>>, vector<1x128xf32>
    %375 = vector.broadcast %374 : vector<1x128xf32> to vector<4x128xf32>
    %376 = arith.mulf %373, %375 : vector<4x128xf32>
    %c88_311 = arith.constant 88 : index
    %c0_312 = arith.constant 0 : index
    %377 = vector.load %arg15[%c88_311, %c0_312] : memref<128x128xf32, #tpu.memory_space<vmem>>, vector<4x128xf32>
    tpu.vector_store %arg15[%c88_311, %c0_312], %376 {strides = array<i32>} : memref<128x128xf32, #tpu.memory_space<vmem>>, vector<4x128xf32>,
    %c111_i32 = arith.constant 111 : i32
    %378 = tpu.dynamic_rotate %264 by %c111_i32 dim 1 : vector<4x128xf32>, i32 -> vector<4x128xf32>
    %c23_313 = arith.constant 23 : index
    %c0_314 = arith.constant 0 : index
    %379 = vector.load %arg4[%c23_313, %c0_314] : memref<27x128xf32, #tpu.memory_space<vmem>>, vector<1x128xf32>
    %380 = vector.broadcast %379 : vector<1x128xf32> to vector<4x128xf32>
    %381 = arith.mulf %378, %380 : vector<4x128xf32>
    %c92_315 = arith.constant 92 : index
    %c0_316 = arith.constant 0 : index
    %382 = vector.load %arg15[%c92_315, %c0_316] : memref<128x128xf32, #tpu.memory_space<vmem>>, vector<4x128xf32>
    tpu.vector_store %arg15[%c92_315, %c0_316], %381 {strides = array<i32>} : memref<128x128xf32, #tpu.memory_space<vmem>>, vector<4x128xf32>,
    %c109_i32 = arith.constant 109 : i32
    %383 = tpu.dynamic_rotate %264 by %c109_i32 dim 1 : vector<4x128xf32>, i32 -> vector<4x128xf32>
    %c24_317 = arith.constant 24 : index
    %c0_318 = arith.constant 0 : index
    %384 = vector.load %arg4[%c24_317, %c0_318] : memref<27x128xf32, #tpu.memory_space<vmem>>, vector<1x128xf32>
    %385 = vector.broadcast %384 : vector<1x128xf32> to vector<4x128xf32>
    %386 = arith.mulf %383, %385 : vector<4x128xf32>
    %c96_319 = arith.constant 96 : index
    %c0_320 = arith.constant 0 : index
    %387 = vector.load %arg15[%c96_319, %c0_320] : memref<128x128xf32, #tpu.memory_space<vmem>>, vector<4x128xf32>
    tpu.vector_store %arg15[%c96_319, %c0_320], %386 {strides = array<i32>} : memref<128x128xf32, #tpu.memory_space<vmem>>, vector<4x128xf32>,
    %c108_i32 = arith.constant 108 : i32
    %388 = tpu.dynamic_rotate %264 by %c108_i32 dim 1 : vector<4x128xf32>, i32 -> vector<4x128xf32>
    %c25_321 = arith.constant 25 : index
    %c0_322 = arith.constant 0 : index
    %389 = vector.load %arg4[%c25_321, %c0_322] : memref<27x128xf32, #tpu.memory_space<vmem>>, vector<1x128xf32>
    %390 = vector.broadcast %389 : vector<1x128xf32> to vector<4x128xf32>
    %391 = arith.mulf %388, %390 : vector<4x128xf32>
    %c100_323 = arith.constant 100 : index
    %c0_324 = arith.constant 0 : index
    %392 = vector.load %arg15[%c100_323, %c0_324] : memref<128x128xf32, #tpu.memory_space<vmem>>, vector<4x128xf32>
    tpu.vector_store %arg15[%c100_323, %c0_324], %391 {strides = array<i32>} : memref<128x128xf32, #tpu.memory_space<vmem>>, vector<4x128xf32>,
    %c107_i32 = arith.constant 107 : i32
    %393 = tpu.dynamic_rotate %264 by %c107_i32 dim 1 : vector<4x128xf32>, i32 -> vector<4x128xf32>
    %c26_325 = arith.constant 26 : index
    %c0_326 = arith.constant 0 : index
    %394 = vector.load %arg4[%c26_325, %c0_326] : memref<27x128xf32, #tpu.memory_space<vmem>>, vector<1x128xf32>
    %395 = vector.broadcast %394 : vector<1x128xf32> to vector<4x128xf32>
    %396 = arith.mulf %393, %395 : vector<4x128xf32>
    %c104_327 = arith.constant 104 : index
    %c0_328 = arith.constant 0 : index
    %397 = vector.load %arg15[%c104_327, %c0_328] : memref<128x128xf32, #tpu.memory_space<vmem>>, vector<4x128xf32>
    tpu.vector_store %arg15[%c104_327, %c0_328], %396 {strides = array<i32>} : memref<128x128xf32, #tpu.memory_space<vmem>>, vector<4x128xf32>,
    %c0_329 = arith.constant 0 : index
    %c0_330 = arith.constant 0 : index
    %398 = vector.load %arg7[%c0_329, %c0_330] : memref<8x128xf32, #tpu.memory_space<vmem>>, vector<8x128xf32>
    %c0_331 = arith.constant 0 : index
    %c0_332 = arith.constant 0 : index
    %399 = vector.load %arg15[%c0_331, %c0_332] : memref<128x128xf32, #tpu.memory_space<vmem>>, vector<128x128xf32>
    %cst_333 = arith.constant dense<0.000000e+00> : vector<8x128xf32>
    %400 = tpu.matmul %398, %399, %cst_333 {dimension_numbers = #tpu.dot_dimension_numbers<[1], [0], [0], [1], [0, 0, 1, 1], [], []>} : vector<8x128xf32>, vector<128x128xf32>, vector<8x128xf32> -> vector<8x128xf32>
    %c0_334 = arith.constant 0 : index
    %c4_335 = arith.constant 4 : index
    %401 = vector.load %arg2[%c0_334, %c4_335] : memref<8x6xf32, #tpu.memory_space<vmem>>, vector<8x1xf32>
    %c0_336 = arith.constant 0 : index
    %c5_337 = arith.constant 5 : index
    %402 = vector.load %arg2[%c0_336, %c5_337] : memref<8x6xf32, #tpu.memory_space<vmem>>, vector<8x1xf32>
    %403 = vector.broadcast %401 : vector<8x1xf32> to vector<8x128xf32>
    %404 = arith.mulf %400, %403 : vector<8x128xf32>
    %405 = vector.broadcast %402 : vector<8x1xf32> to vector<8x128xf32>
    %406 = arith.addf %404, %405 : vector<8x128xf32>
    %cst_338 = arith.constant 0.000000e+00 : f32
    %407 = vector.broadcast %cst_338 : f32 to vector<8x128xf32>
    %408 = arith.maximumf %406, %407 : vector<8x128xf32>
    %c0_339 = arith.constant 0 : index
    %c0_340 = arith.constant 0 : index
    %409 = vector.load %arg9[%c0_339, %c0_340] : memref<128x2xf32, #tpu.memory_space<vmem>>, vector<128x2xf32>
    %cst_341 = arith.constant dense<0.000000e+00> : vector<8x2xf32>
    %410 = tpu.matmul %408, %409, %cst_341 {dimension_numbers = #tpu.dot_dimension_numbers<[1], [0], [0], [1], [0, 0, 1, 1], [], []>} : vector<8x128xf32>, vector<128x2xf32>, vector<8x2xf32> -> vector<8x2xf32>
    %c0_342 = arith.constant 0 : index
    %c0_343 = arith.constant 0 : index
    %411 = vector.load %arg10[%c0_342, %c0_343] : memref<10x8xf32, #tpu.memory_space<vmem>>, vector<10x8xf32>
    %cst_344 = arith.constant dense<0.000000e+00> : vector<10x2xf32>
    %412 = tpu.matmul %411, %410, %cst_344 {dimension_numbers = #tpu.dot_dimension_numbers<[1], [0], [0], [1], [0, 0, 1, 1], [], []>} : vector<10x8xf32>, vector<8x2xf32>, vector<10x2xf32> -> vector<10x2xf32>
    %c0_345 = arith.constant 0 : index
    %c0_346 = arith.constant 0 : index
    %413 = vector.load %arg11[%c0_345, %c0_346] : memref<10x1xf32, #tpu.memory_space<vmem>>, vector<10x1xf32>
    %414 = vector.broadcast %413 : vector<10x1xf32> to vector<10x2xf32>
    %415 = arith.addf %412, %414 : vector<10x2xf32>
    %cst_347 = arith.constant dense<0xFF800000> : vector<2xf32>
    %416 = vector.multi_reduction <maximumf>, %415, %cst_347 [0] : vector<10x2xf32> to vector<2xf32>
    %417 = vector.shape_cast %416 : vector<2xf32> to vector<1x2xf32>
    %418 = vector.broadcast %417 : vector<1x2xf32> to vector<10x2xf32>
    %419 = arith.subf %415, %418 : vector<10x2xf32>
    %420 = math.exp %419 : vector<10x2xf32>
    %cst_348 = arith.constant dense<0.000000e+00> : vector<2xf32>
    %421 = vector.multi_reduction <add>, %420, %cst_348 [0] : vector<10x2xf32> to vector<2xf32>
    %422 = vector.shape_cast %421 : vector<2xf32> to vector<1x2xf32>
    %423 = math.log %422 : vector<1x2xf32>
    %424 = vector.broadcast %423 : vector<1x2xf32> to vector<10x2xf32>
    %425 = arith.subf %419, %424 : vector<10x2xf32>
    %426 = vector.shape_cast %425 : vector<10x2xf32> to vector<1x10x2xf32>
    %c0_349 = arith.constant 0 : index
    %c0_350 = arith.constant 0 : index
    %c0_351 = arith.constant 0 : index
    %427 = vector.load %arg12[%c0_349, %c0_350, %c0_351] : memref<1x10x2xf32, #tpu.memory_space<vmem>>, vector<1x10x2xf32>
    tpu.vector_store %arg12[%c0_349, %c0_350, %c0_351], %426 {strides = array<i32>} : memref<1x10x2xf32, #tpu.memory_space<vmem>>, vector<1x10x2xf32>,
    return
  }
  func.func @transform_0(%arg0: i32) -> (i32, i32) {
    %c0_i32 = arith.constant 0 : i32
    %c0_i32_0 = arith.constant 0 : i32
    return %c0_i32, %arg0 : i32, i32
  }
  func.func @transform_1(%arg0: i32) -> (i32, i32) {
    %c0_i32 = arith.constant 0 : i32
    %c0_i32_0 = arith.constant 0 : i32
    %c0_i32_1 = arith.constant 0 : i32
    return %c0_i32, %c0_i32_0 : i32, i32
  }
  func.func @transform_2(%arg0: i32) -> (i32, i32) {
    %c0_i32 = arith.constant 0 : i32
    %c0_i32_0 = arith.constant 0 : i32
    %c0_i32_1 = arith.constant 0 : i32
    return %c0_i32, %c0_i32_0 : i32, i32
  }
  func.func @transform_3(%arg0: i32) -> (i32, i32) {
    %c0_i32 = arith.constant 0 : i32
    %c0_i32_0 = arith.constant 0 : i32
    %c0_i32_1 = arith.constant 0 : i32
    return %c0_i32, %c0_i32_0 : i32, i32
  }
  func.func @transform_4(%arg0: i32) -> (i32, i32) {
    %c0_i32 = arith.constant 0 : i32
    %c0_i32_0 = arith.constant 0 : i32
    %c0_i32_1 = arith.constant 0 : i32
    return %c0_i32, %c0_i32_0 : i32, i32
  }
  func.func @transform_5(%arg0: i32) -> (i32, i32) {
    %c0_i32 = arith.constant 0 : i32
    %c0_i32_0 = arith.constant 0 : i32
    %c0_i32_1 = arith.constant 0 : i32
    return %c0_i32, %c0_i32_0 : i32, i32
  }
  func.func @transform_6(%arg0: i32) -> (i32, i32) {
    %c0_i32 = arith.constant 0 : i32
    %c0_i32_0 = arith.constant 0 : i32
    %c0_i32_1 = arith.constant 0 : i32
    return %c0_i32, %c0_i32_0 : i32, i32
  }
  func.func @transform_7(%arg0: i32) -> (i32, i32) {
    %c0_i32 = arith.constant 0 : i32
    %c0_i32_0 = arith.constant 0 : i32
    %c0_i32_1 = arith.constant 0 : i32
    return %c0_i32, %c0_i32_0 : i32, i32
  }
  func.func @transform_8(%arg0: i32) -> (i32, i32) {
    %c0_i32 = arith.constant 0 : i32
    %c0_i32_0 = arith.constant 0 : i32
    %c0_i32_1 = arith.constant 0 : i32
    return %c0_i32, %c0_i32_0 : i32, i32
  }
  func.func @transform_9(%arg0: i32) -> (i32, i32) {
    %c0_i32 = arith.constant 0 : i32
    %c0_i32_0 = arith.constant 0 : i32
    %c0_i32_1 = arith.constant 0 : i32
    return %c0_i32, %c0_i32_0 : i32, i32
  }
  func.func @transform_10(%arg0: i32) -> (i32, i32) {
    %c0_i32 = arith.constant 0 : i32
    %c0_i32_0 = arith.constant 0 : i32
    %c0_i32_1 = arith.constant 0 : i32
    return %c0_i32, %c0_i32_0 : i32, i32
  }
  func.func @transform_11(%arg0: i32) -> (i32, i32, i32) {
    %c0_i32 = arith.constant 0 : i32
    %c0_i32_0 = arith.constant 0 : i32
    %c0_i32_1 = arith.constant 0 : i32
    return %arg0, %c0_i32, %c0_i32_0 : i32, i32, i32
  }
}

</mosaic_0001>

<llo_original>
// kernel: tpu_custom_call.1
$region0: #{tpu_custom_call.1}
  #allocation0 [shape = 'u32[]', space=smem, size = 0x4, offset = 0x4, fixed_abs, tag = 'smem constant byte address 0x4 - core index']
  #allocation1 [shape = 'u32[72,128]{1,0:T(1,128)}', space=vmem, size = 0x9000, scoped, tag = 'internal scratch']
  #allocation2 [shape = 'f32[32,1024]{1,0:T(8,128)}', space=vmem, size = 0x20000, scoped, tag = 'scratch operand']
  #allocation3 [shape = 'f32[128,1024]{1,0:T(8,128)}', space=vmem, size = 0x80000, scoped, tag = 'scratch operand']
  #allocation4 [shape = 'f32[128,128]{1,0:T(8,128)}', space=vmem, size = 0x10000, scoped, tag = 'scratch operand']
  %s0 = inlined_call_operand.vmem [shape: f32[1,2048], index: 0, kind: input, shape index: {}]
  %s1 = inlined_call_operand.vmem [shape: f32[8,6], index: 1, kind: input, shape index: {}]
  %s2 = inlined_call_operand.hbm [shape: f32[27,1024], index: 2, kind: input, shape index: {}]
  %s3 = inlined_call_operand.vmem [shape: f32[27,128], index: 3, kind: input, shape index: {}]
  %s4 = inlined_call_operand.vmem [shape: f32[4,32], index: 4, kind: input, shape index: {}]
  %s5 = inlined_call_operand.vmem [shape: f32[4,128], index: 5, kind: input, shape index: {}]
  %s6 = inlined_call_operand.vmem [shape: f32[8,128], index: 6, kind: input, shape index: {}]
  %s7 = inlined_call_operand.hbm [shape: f32[1024,128], index: 7, kind: input, shape index: {}]
  %s8 = inlined_call_operand.vmem [shape: f32[128,2], index: 8, kind: input, shape index: {}]
  %s9 = inlined_call_operand.vmem [shape: f32[10,8], index: 9, kind: input, shape index: {}]
  %s10 = inlined_call_operand.vmem [shape: f32[10,1], index: 10, kind: input, shape index: {}]
  %s11 = inlined_call_operand.vmem [shape: f32[2,10,2], index: 11, kind: output, shape index: {}]
  %s12 = sld [smem:[#allocation0]]
  $region85: #{tpu_custom_call.1} parent=0
    _
  %s14 = ssub.s32 1, %s12
  %s15 = scalar_select 0, %s14, %s12
  $region1: #{tpu_custom_call.1} parent=0
    #allocation5 [shape = 'u8[131072]{0}', space=vmem, size = 0x20000, scoped, tag = 'input window, operand 2, single buffered']
    #allocation6 [shape = 's32[2]{0}', space=sflag, size = 0x8, scoped, tag = 'scoped memory for tpu_custom_call.1']
    #allocation7 [shape = 'u8[524288]{0}', space=vmem, size = 0x80000, scoped, tag = 'input window, operand 7, single buffered']
    #allocation8 [shape = 's32[1]{0}', space=sflag, size = 0x4, scoped, tag = 'scoped memory for tpu_custom_call.1']
    %16 = vsyncpa [#allocation6], 0
    %17 = vsyncpa [#allocation8], 0
    loop: start=0, step=1, limit=4
    $region2: #{tpu_custom_call.1} parent=1 // loop_pre_header
      _
    $region3: #{tpu_custom_call.1} parent=1 // loop_header
      %s19 = sphi 0, %s23
      %p20 = scmp.ge.s32.totalorder %s19, 4
      %s29 = sphi 0, %s31
      %s32 = sphi 0, %s29
      %s33 = sphi 0, %s32
      %s49 = sphi 0, %s33
      %s53 = sphi 0, %s53
      %s55 = sphi 0, %s53
      %s56 = sphi 0, %s55
      %s70 = sphi 0, %s56
      %s74 = sphi 0, %s74
      %s76 = sphi 0, %s74
      %s77 = sphi 0, %s76
      %s91 = sphi 0, %s77
      %s95 = sphi 0, %s95
      %s97 = sphi 0, %s95
      %s98 = sphi 0, %s97
      %s112 = sphi 0, %s98
      %s116 = sphi 0, %s116
      %s118 = sphi 0, %s116
      %s119 = sphi 0, %s118
      %s133 = sphi 0, %s119
      %s137 = sphi 0, %s137
      %s139 = sphi 0, %s137
      %s140 = sphi 0, %s139
      %s154 = sphi 0, %s140
      %s158 = sphi 0, %s158
      %s160 = sphi 0, %s158
      %s161 = sphi 0, %s160
      %s175 = sphi 0, %s161
      %s179 = sphi 0, %s179
      %s181 = sphi 0, %s179
      %s182 = sphi 0, %s181
      %s196 = sphi 0, %s182
      %s200 = sphi 0, %s200
      %s202 = sphi 0, %s200
      %s203 = sphi 0, %s202
      %s217 = sphi 0, %s203
      %s221 = sphi 0, %s221
      %s223 = sphi 0, %s221
      %s224 = sphi 0, %s223
      %s238 = sphi 0, %s224
      %s242 = sphi 0, %s242
      %s244 = sphi 0, %s242
      %s245 = sphi 0, %s244
      %s259 = sphi 0, %s245
      %s265 = sphi 0, %s267
      %s268 = sphi 0, %s265
      %s269 = sphi 0, %s268
      %s285 = sphi 0, %s269
    $region4: #{tpu_custom_call.1} parent=1 // loop_header_branch
      %22 = sbr.rel (%p20) target = $region8
    $region5: #{tpu_custom_call.1} parent=1 // loop_body
      %s24 = ssub.s32 %s19, 1
      %s25 = ssub.s32 %s19, 2
      %s26 = sadd.s32 %s19, 1
      %s27 = ssub.s32 %s19, %s26
      %p28 = scmp.eq.s32.totalorder %s27, 0
      %s30 = sadd.s32 %s29, 1
      %s31 = scalar_select %p28, %s29, %s30
      %p34 = pneg %p28
      %p35 = scmp.eq.s32.totalorder %s19, 1
      %p36 = por %p34, %p35
      %p37 = scmp.ne.s32.totalorder %s29, %s32
      %p38 = scmp.eq.s32.totalorder %s19, 0
      %p39 = por %p37, %p38
      %p40 = scmp.ne.s32.totalorder %s29, %s32
      %p41 = scmp.eq.s32.totalorder %s24, 1
      %p42 = por %p40, %p41
      %p43 = scmp.ne.s32.totalorder %s32, %s33
      %p44 = scmp.eq.s32.totalorder %s24, 0
      %p45 = por %p43, %p44
      %p46 = scmp.ne.s32.totalorder %s32, %s33
      %p47 = scmp.eq.s32.totalorder %s25, 1
      %p48 = por %p46, %p47
      %p50 = scmp.ne.s32.totalorder %s33, %s49
      %p51 = scmp.eq.s32.totalorder %s25, 0
      %p52 = por %p50, %p51
      %s54 = sadd.s32 %s53, 1
      %p57 = scmp.eq.s32.totalorder %s19, 1
      %p58 = scmp.ne.s32.totalorder %s53, %s55
      %p59 = scmp.eq.s32.totalorder %s19, 0
      %p60 = por %p58, %p59
      %p61 = scmp.ne.s32.totalorder %s53, %s55
      %p62 = scmp.eq.s32.totalorder %s24, 1
      %p63 = por %p61, %p62
      %p64 = scmp.ne.s32.totalorder %s55, %s56
      %p65 = scmp.eq.s32.totalorder %s24, 0
      %p66 = por %p64, %p65
      %p67 = scmp.ne.s32.totalorder %s55, %s56
      %p68 = scmp.eq.s32.totalorder %s25, 1
      %p69 = por %p67, %p68
      %p71 = scmp.ne.s32.totalorder %s56, %s70
      %p72 = scmp.eq.s32.totalorder %s25, 0
      %p73 = por %p71, %p72
      %s75 = sadd.s32 %s74, 1
      %p78 = scmp.eq.s32.totalorder %s19, 1
      %p79 = scmp.ne.s32.totalorder %s74, %s76
      %p80 = scmp.eq.s32.totalorder %s19, 0
      %p81 = por %p79, %p80
      %p82 = scmp.ne.s32.totalorder %s74, %s76
      %p83 = scmp.eq.s32.totalorder %s24, 1
      %p84 = por %p82, %p83
      %p85 = scmp.ne.s32.totalorder %s76, %s77
      %p86 = scmp.eq.s32.totalorder %s24, 0
      %p87 = por %p85, %p86
      %p88 = scmp.ne.s32.totalorder %s76, %s77
      %p89 = scmp.eq.s32.totalorder %s25, 1
      %p90 = por %p88, %p89
      %p92 = scmp.ne.s32.totalorder %s77, %s91
      %p93 = scmp.eq.s32.totalorder %s25, 0
      %p94 = por %p92, %p93
      %s96 = sadd.s32 %s95, 1
      %p99 = scmp.eq.s32.totalorder %s19, 1
      %p100 = scmp.ne.s32.totalorder %s95, %s97
      %p101 = scmp.eq.s32.totalorder %s19, 0
      %p102 = por %p100, %p101
      %p103 = scmp.ne.s32.totalorder %s95, %s97
      %p104 = scmp.eq.s32.totalorder %s24, 1
      %p105 = por %p103, %p104
      %p106 = scmp.ne.s32.totalorder %s97, %s98
      %p107 = scmp.eq.s32.totalorder %s24, 0
      %p108 = por %p106, %p107
      %p109 = scmp.ne.s32.totalorder %s97, %s98
      %p110 = scmp.eq.s32.totalorder %s25, 1
      %p111 = por %p109, %p110
      %p113 = scmp.ne.s32.totalorder %s98, %s112
      %p114 = scmp.eq.s32.totalorder %s25, 0
      %p115 = por %p113, %p114
      %s117 = sadd.s32 %s116, 1
      %p120 = scmp.eq.s32.totalorder %s19, 1
      %p121 = scmp.ne.s32.totalorder %s116, %s118
      %p122 = scmp.eq.s32.totalorder %s19, 0
      %p123 = por %p121, %p122
      %p124 = scmp.ne.s32.totalorder %s116, %s118
      %p125 = scmp.eq.s32.totalorder %s24, 1
      %p126 = por %p124, %p125
      %p127 = scmp.ne.s32.totalorder %s118, %s119
      %p128 = scmp.eq.s32.totalorder %s24, 0
      %p129 = por %p127, %p128
      %p130 = scmp.ne.s32.totalorder %s118, %s119
      %p131 = scmp.eq.s32.totalorder %s25, 1
      %p132 = por %p130, %p131
      %p134 = scmp.ne.s32.totalorder %s119, %s133
      %p135 = scmp.eq.s32.totalorder %s25, 0
      %p136 = por %p134, %p135
      %s138 = sadd.s32 %s137, 1
      %p141 = scmp.eq.s32.totalorder %s19, 1
      %p142 = scmp.ne.s32.totalorder %s137, %s139
      %p143 = scmp.eq.s32.totalorder %s19, 0
      %p144 = por %p142, %p143
      %p145 = scmp.ne.s32.totalorder %s137, %s139
      %p146 = scmp.eq.s32.totalorder %s24, 1
      %p147 = por %p145, %p146
      %p148 = scmp.ne.s32.totalorder %s139, %s140
      %p149 = scmp.eq.s32.totalorder %s24, 0
      %p150 = por %p148, %p149
      %p151 = scmp.ne.s32.totalorder %s139, %s140
      %p152 = scmp.eq.s32.totalorder %s25, 1
      %p153 = por %p151, %p152
      %p155 = scmp.ne.s32.totalorder %s140, %s154
      %p156 = scmp.eq.s32.totalorder %s25, 0
      %p157 = por %p155, %p156
      %s159 = sadd.s32 %s158, 1
      %p162 = scmp.eq.s32.totalorder %s19, 1
      %p163 = scmp.ne.s32.totalorder %s158, %s160
      %p164 = scmp.eq.s32.totalorder %s19, 0
      %p165 = por %p163, %p164
      %p166 = scmp.ne.s32.totalorder %s158, %s160
      %p167 = scmp.eq.s32.totalorder %s24, 1
      %p168 = por %p166, %p167
      %p169 = scmp.ne.s32.totalorder %s160, %s161
      %p170 = scmp.eq.s32.totalorder %s24, 0
      %p171 = por %p169, %p170
      %p172 = scmp.ne.s32.totalorder %s160, %s161
      %p173 = scmp.eq.s32.totalorder %s25, 1
      %p174 = por %p172, %p173
      %p176 = scmp.ne.s32.totalorder %s161, %s175
      %p177 = scmp.eq.s32.totalorder %s25, 0
      %p178 = por %p176, %p177
      %s180 = sadd.s32 %s179, 1
      %p183 = scmp.eq.s32.totalorder %s19, 1
      %p184 = scmp.ne.s32.totalorder %s179, %s181
      %p185 = scmp.eq.s32.totalorder %s19, 0
      %p186 = por %p184, %p185
      %p187 = scmp.ne.s32.totalorder %s179, %s181
      %p188 = scmp.eq.s32.totalorder %s24, 1
      %p189 = por %p187, %p188
      %p190 = scmp.ne.s32.totalorder %s181, %s182
      %p191 = scmp.eq.s32.totalorder %s24, 0
      %p192 = por %p190, %p191
      %p193 = scmp.ne.s32.totalorder %s181, %s182
      %p194 = scmp.eq.s32.totalorder %s25, 1
      %p195 = por %p193, %p194
      %p197 = scmp.ne.s32.totalorder %s182, %s196
      %p198 = scmp.eq.s32.totalorder %s25, 0
      %p199 = por %p197, %p198
      %s201 = sadd.s32 %s200, 1
      %p204 = scmp.eq.s32.totalorder %s19, 1
      %p205 = scmp.ne.s32.totalorder %s200, %s202
      %p206 = scmp.eq.s32.totalorder %s19, 0
      %p207 = por %p205, %p206
      %p208 = scmp.ne.s32.totalorder %s200, %s202
      %p209 = scmp.eq.s32.totalorder %s24, 1
      %p210 = por %p208, %p209
      %p211 = scmp.ne.s32.totalorder %s202, %s203
      %p212 = scmp.eq.s32.totalorder %s24, 0
      %p213 = por %p211, %p212
      %p214 = scmp.ne.s32.totalorder %s202, %s203
      %p215 = scmp.eq.s32.totalorder %s25, 1
      %p216 = por %p214, %p215
      %p218 = scmp.ne.s32.totalorder %s203, %s217
      %p219 = scmp.eq.s32.totalorder %s25, 0
      %p220 = por %p218, %p219
      %s222 = sadd.s32 %s221, 1
      %p225 = scmp.eq.s32.totalorder %s19, 1
      %p226 = scmp.ne.s32.totalorder %s221, %s223
      %p227 = scmp.eq.s32.totalorder %s19, 0
      %p228 = por %p226, %p227
      %p229 = scmp.ne.s32.totalorder %s221, %s223
      %p230 = scmp.eq.s32.totalorder %s24, 1
      %p231 = por %p229, %p230
      %p232 = scmp.ne.s32.totalorder %s223, %s224
      %p233 = scmp.eq.s32.totalorder %s24, 0
      %p234 = por %p232, %p233
      %p235 = scmp.ne.s32.totalorder %s223, %s224
      %p236 = scmp.eq.s32.totalorder %s25, 1
      %p237 = por %p235, %p236
      %p239 = scmp.ne.s32.totalorder %s224, %s238
      %p240 = scmp.eq.s32.totalorder %s25, 0
      %p241 = por %p239, %p240
      %s243 = sadd.s32 %s242, 1
      %p246 = scmp.eq.s32.totalorder %s19, 1
      %p247 = scmp.ne.s32.totalorder %s242, %s244
      %p248 = scmp.eq.s32.totalorder %s19, 0
      %p249 = por %p247, %p248
      %p250 = scmp.ne.s32.totalorder %s242, %s244
      %p251 = scmp.eq.s32.totalorder %s24, 1
      %p252 = por %p250, %p251
      %p253 = scmp.ne.s32.totalorder %s244, %s245
      %p254 = scmp.eq.s32.totalorder %s24, 0
      %p255 = por %p253, %p254
      %p256 = scmp.ne.s32.totalorder %s244, %s245
      %p257 = scmp.eq.s32.totalorder %s25, 1
      %p258 = por %p256, %p257
      %p260 = scmp.ne.s32.totalorder %s245, %s259
      %p261 = scmp.eq.s32.totalorder %s25, 0
      %p262 = por %p260, %p261
      %s263 = ssub.s32 %s19, %s26
      %p264 = scmp.eq.s32.totalorder %s263, 0
      %s266 = sadd.s32 %s265, 1
      %s267 = scalar_select %p264, %s265, %s266
      %p270 = pneg %p264
      %p271 = scmp.eq.s32.totalorder %s19, 1
      %p272 = por %p270, %p271
      %p273 = scmp.ne.s32.totalorder %s265, %s268
      %p274 = scmp.eq.s32.totalorder %s19, 0
      %p275 = por %p273, %p274
      %p276 = scmp.ne.s32.totalorder %s265, %s268
      %p277 = scmp.eq.s32.totalorder %s24, 1
      %p278 = por %p276, %p277
      %p279 = scmp.ne.s32.totalorder %s268, %s269
      %p280 = scmp.eq.s32.totalorder %s24, 0
      %p281 = por %p279, %p280
      %p282 = scmp.ne.s32.totalorder %s268, %s269
      %p283 = scmp.eq.s32.totalorder %s25, 1
      %p284 = por %p282, %p283
      %p286 = scmp.ne.s32.totalorder %s269, %s285
      %p287 = scmp.eq.s32.totalorder %s25, 0
      %p288 = por %p286, %p287
      %p289 = scmp.le.s32.totalorder 1, %s19
      %p290 = scmp.lt.s32.totalorder %s19, 3
      %p291 = pnand %p289, %p290
      %p292 = pneg %p291
      // Predicated region
      $region9: #{tpu_custom_call.1} parent=5 // pred_check
        _
      $region10: #{tpu_custom_call.1} parent=5 // pred_check_branch
        %294 = sbr.rel (%p291) target = $region12
      $region11: #{tpu_custom_call.1} parent=5 // pred_region
        %s295 = ssub.s32 %s19, 1
        // Predicated region
        $region13: #{tpu_custom_call.1} parent=11 // pred_check
          %p296 = pneg %p66
        $region14: #{tpu_custom_call.1} parent=11 // pred_check_branch
          %298 = sbr.rel (%p296) target = $region16
        $region15: #{tpu_custom_call.1} parent=11 // pred_region
          _
        $region16: #{tpu_custom_call.1} parent=11 // pred_fallthru
          _
        // Predicated region
        $region17: #{tpu_custom_call.1} parent=11 // pred_check
          %p299 = pneg %p87
        $region18: #{tpu_custom_call.1} parent=11 // pred_check_branch
          %301 = sbr.rel (%p299) target = $region20
        $region19: #{tpu_custom_call.1} parent=11 // pred_region
          %303 = vsyncadd [#allocation6], 0
          %s304 = sshll.u32 %s2, 4
          %s305 = int_to_ptr.hbm [resolvable:$true] %s304
          %s306 = sshll.u32 [#allocation5], 4
          %s307 = int_to_ptr.vmem [resolvable:$true] %s306
          %312 = dma.hbm_to_vmem [thread:$0]  %s305, 4096, %s307, [#allocation6], 1024, 1024, 64
        $region20: #{tpu_custom_call.1} parent=11 // pred_fallthru
          _
        // Predicated region
        $region21: #{tpu_custom_call.1} parent=11 // pred_check
          %p313 = pneg %p108
        $region22: #{tpu_custom_call.1} parent=11 // pred_check_branch
          %315 = sbr.rel (%p313) target = $region24
        $region23: #{tpu_custom_call.1} parent=11 // pred_region
          _
        $region24: #{tpu_custom_call.1} parent=11 // pred_fallthru
          _
        // Predicated region
        $region25: #{tpu_custom_call.1} parent=11 // pred_check
          %p316 = pneg %p129
        $region26: #{tpu_custom_call.1} parent=11 // pred_check_branch
          %318 = sbr.rel (%p316) target = $region28
        $region27: #{tpu_custom_call.1} parent=11 // pred_region
          _
        $region28: #{tpu_custom_call.1} parent=11 // pred_fallthru
          _
        // Predicated region
        $region29: #{tpu_custom_call.1} parent=11 // pred_check
          %p319 = pneg %p150
        $region30: #{tpu_custom_call.1} parent=11 // pred_check_branch
          %321 = sbr.rel (%p319) target = $region32
        $region31: #{tpu_custom_call.1} parent=11 // pred_region
          _
        $region32: #{tpu_custom_call.1} parent=11 // pred_fallthru
          _
        // Predicated region
        $region33: #{tpu_custom_call.1} parent=11 // pred_check
          %p322 = pneg %p171
        $region34: #{tpu_custom_call.1} parent=11 // pred_check_branch
          %324 = sbr.rel (%p322) target = $region36
        $region35: #{tpu_custom_call.1} parent=11 // pred_region
          _
        $region36: #{tpu_custom_call.1} parent=11 // pred_fallthru
          _
        // Predicated region
        $region37: #{tpu_custom_call.1} parent=11 // pred_check
          %p325 = pneg %p192
        $region38: #{tpu_custom_call.1} parent=11 // pred_check_branch
          %327 = sbr.rel (%p325) target = $region40
        $region39: #{tpu_custom_call.1} parent=11 // pred_region
          %329 = vsyncadd [#allocation8], 0
          %s330 = sshll.u32 %s7, 4
          %s331 = int_to_ptr.hbm [resolvable:$true] %s330
          %s332 = sshll.u32 [#allocation7], 4
          %s333 = int_to_ptr.vmem [resolvable:$true] %s332
          %338 = dma.hbm_to_vmem [thread:$0]  %s331, 16384, %s333, [#allocation8], 128, 128, 8
        $region40: #{tpu_custom_call.1} parent=11 // pred_fallthru
          _
        // Predicated region
        $region41: #{tpu_custom_call.1} parent=11 // pred_check
          %p339 = pneg %p213
        $region42: #{tpu_custom_call.1} parent=11 // pred_check_branch
          %341 = sbr.rel (%p339) target = $region44
        $region43: #{tpu_custom_call.1} parent=11 // pred_region
          _
        $region44: #{tpu_custom_call.1} parent=11 // pred_fallthru
          _
        // Predicated region
        $region45: #{tpu_custom_call.1} parent=11 // pred_check
          %p342 = pneg %p234
        $region46: #{tpu_custom_call.1} parent=11 // pred_check_branch
          %344 = sbr.rel (%p342) target = $region48
        $region47: #{tpu_custom_call.1} parent=11 // pred_region
          _
        $region48: #{tpu_custom_call.1} parent=11 // pred_fallthru
          _
        // Predicated region
        $region49: #{tpu_custom_call.1} parent=11 // pred_check
          %p345 = pneg %p255
        $region50: #{tpu_custom_call.1} parent=11 // pred_check_branch
          %347 = sbr.rel (%p345) target = $region52
        $region51: #{tpu_custom_call.1} parent=11 // pred_region
          _
        $region52: #{tpu_custom_call.1} parent=11 // pred_fallthru
          _
      $region12: #{tpu_custom_call.1} parent=5 // pred_fallthru
        _
      %p348 = scmp.lt.s32.totalorder %s19, 2
      // Predicated region
      $region53: #{tpu_custom_call.1} parent=5 // pred_check
        %p349 = pneg %p348
      $region54: #{tpu_custom_call.1} parent=5 // pred_check_branch
        %351 = sbr.rel (%p349) target = $region56
      $region55: #{tpu_custom_call.1} parent=5 // pred_region
        // Predicated region
        $region57: #{tpu_custom_call.1} parent=55 // pred_check
          %p352 = pneg %p39
        $region58: #{tpu_custom_call.1} parent=55 // pred_check_branch
          %354 = sbr.rel (%p352) target = $region60
        $region59: #{tpu_custom_call.1} parent=55 // pred_region
          %s355 = smul.u32 8, %s19
          %p356 = scmp.lt.s32.totalorder %s355, 15
          %s357 = scalar_select %p356, %s355, 15
          %s358 = scalar_lea.vmem %s0, %s357
          %s359 = smul.u32 8, %s19
        $region60: #{tpu_custom_call.1} parent=55 // pred_fallthru
          _
      $region56: #{tpu_custom_call.1} parent=5 // pred_fallthru
        _
      %p360 = scmp.le.s32.totalorder 1, %s19
      %p361 = scmp.lt.s32.totalorder %s19, 3
      %p362 = pnand %p360, %p361
      %p363 = pneg %p362
      // Predicated region
      $region61: #{tpu_custom_call.1} parent=5 // pred_check
        _
      $region62: #{tpu_custom_call.1} parent=5 // pred_check_branch
        %365 = sbr.rel (%p362) target = $region64
      $region63: #{tpu_custom_call.1} parent=5 // pred_region
        %s366 = ssub.s32 %s19, 1
        // Predicated region
        $region65: #{tpu_custom_call.1} parent=63 // pred_check
          %p367 = pneg %p87
        $region66: #{tpu_custom_call.1} parent=63 // pred_check_branch
          %369 = sbr.rel (%p367) target = $region68
        $region67: #{tpu_custom_call.1} parent=63 // pred_region
          %371 = dma.done [#allocation6], 4096
        $region68: #{tpu_custom_call.1} parent=63 // pred_fallthru
          _
        // Predicated region
        $region69: #{tpu_custom_call.1} parent=63 // pred_check
          %p372 = pneg %p192
        $region70: #{tpu_custom_call.1} parent=63 // pred_check_branch
          %374 = sbr.rel (%p372) target = $region72
        $region71: #{tpu_custom_call.1} parent=63 // pred_region
          %376 = dma.done [#allocation8], 16384
        $region72: #{tpu_custom_call.1} parent=63 // pred_fallthru
          _
        %s377 = smul.u32 8, %s24
        %p378 = scmp.lt.s32.totalorder %s377, 15
        %s379 = scalar_select %p378, %s377, 15
        %s380 = scalar_lea.vmem %s0, %s379
        %p381 = pneg %p45
        %p382 = pneg %p42
        %p383 = pneg %p66
        %p384 = pneg %p63
        %p385 = pneg %p87
        %p386 = pneg %p84
        %p387 = pneg %p108
        %p388 = pneg %p105
        %p389 = pneg %p129
        %p390 = pneg %p126
        %p391 = pneg %p150
        %p392 = pneg %p147
        %p393 = pneg %p171
        %p394 = pneg %p168
        %p395 = pneg %p192
        %p396 = pneg %p189
        %p397 = pneg %p213
        %p398 = pneg %p210
        %p399 = pneg %p234
        %p400 = pneg %p231
        %p401 = pneg %p255
        %p402 = pneg %p252
        %p403 = pneg %p281
        %p404 = pneg %p278
        %p405 = scmp.lt.s32.totalorder %s24, 1
        %s406 = scalar_select %p405, %s24, 1
        %s407 = smul.addr %s406, 2
        %s408 = smul.addr %s407, 8
        %s409 = scalar_lea.vmem %s11, %s408
        %s410 = smul.u32 8, %s24
        %p411 = scmp.lt.s32.totalorder %s410, 15
        %s412 = scalar_select %p411, %s410, 15
        %s413 = scalar_lea.vmem %s0, %s412
        %s414 = smul.u32 8, %s24
        %p415 = scmp.lt.s32.totalorder %s24, 1
        %s416 = scalar_select %p415, %s24, 1
        %s417 = smul.addr %s416, 2
        %s418 = smul.addr %s417, 8
        %s419 = scalar_lea.vmem %s11, %s418
        %v420 = vld [vmem:[%s413] sm:$0xff]
        %421 = vst [vmem:[#allocation2 + $0xc0] sm:$0xf8] 0.0
        %422 = vst [vmem:[#allocation2 + $0xc8] sm:$0xf8] 0.0
        %423 = vst [vmem:[#allocation2 + $0xd0] sm:$0xf8] 0.0
        %424 = vst [vmem:[#allocation2 + $0xd8] sm:$0xf8] 0.0
        %425 = vst [vmem:[#allocation2 + $0xe0] sm:$0xf8] 0.0
        %426 = vst [vmem:[#allocation2 + $0xe8] sm:$0xf8] 0.0
        %427 = vst [vmem:[#allocation2 + $0xf0] sm:$0xf8] 0.0
        %428 = vst [vmem:[#allocation2 + $0xf8] sm:$0xf8] 0.0
        %v430 = vperm.slane %v420, 0
        %v431 = vperm.slane %v420, 1
        %v432 = vperm.slane %v420, 2
        %v433 = vperm.slane %v420, 3
        %v434 = vperm.slane %v420, 4
        %v435 = vperm.slane %v420, 5
        %v436 = vperm.slane %v420, 6
        %v437 = vperm.slane %v420, 7
        %446 = vrot.lane.b32.xlu0 %v430, 73
        %v447 = vpop.permute.xlu0 %446
        %448 = vrot.lane.b32.xlu0 %v431, 73
        %v449 = vpop.permute.xlu0 %448
        %450 = vrot.lane.b32.xlu0 %v432, 73
        %v451 = vpop.permute.xlu0 %450
        %452 = vrot.lane.b32.xlu0 %v433, 73
        %v453 = vpop.permute.xlu0 %452
        %454 = vrot.lane.b32.xlu0 %v434, 73
        %v455 = vpop.permute.xlu0 %454
        %456 = vrot.lane.b32.xlu0 %v435, 73
        %v457 = vpop.permute.xlu0 %456
        %458 = vrot.lane.b32.xlu0 %v436, 73
        %v459 = vpop.permute.xlu0 %458
        %460 = vrot.lane.b32.xlu0 %v437, 73
        %v461 = vpop.permute.xlu0 %460
        %v462 = vlaneseq
        %v463 = vand.u32 %v462, 127
        %vm464 = vcmp.lt.s32.totalorder %v463, 73
        %v465 = vsel %vm464, %v459, %v461
        %v466 = vsel %vm464, %v457, %v459
        %v467 = vsel %vm464, %v455, %v457
        %v468 = vsel %vm464, %v453, %v455
        %v469 = vsel %vm464, %v451, %v453
        %v470 = vsel %vm464, %v449, %v451
        %v471 = vsel %vm464, %v447, %v449
        %v472 = vsel %vm464, %v461, %v447
        %v473 = vld [vmem:[#allocation5] ss:$8 sm:$0xf]
        %v474 = vld [vmem:[#allocation5] ss:$8 sm:$0xf0]
        %v475 = vor.u32 %v473, %v474
        %v477 = vperm.slane %v475, 0
        %v478 = vperm.slane %v475, 1
        %v479 = vperm.slane %v475, 2
        %v480 = vperm.slane %v475, 3
        %v481 = vperm.slane %v475, 4
        %v482 = vperm.slane %v475, 5
        %v483 = vperm.slane %v475, 6
        %v484 = vperm.slane %v475, 7
        %v493 = vmul.f32 %v472, %v477
        %v494 = vmul.f32 %v471, %v478
        %v495 = vmul.f32 %v470, %v479
        %v496 = vmul.f32 %v469, %v480
        %v497 = vmul.f32 %v468, %v481
        %v498 = vmul.f32 %v467, %v482
        %v499 = vmul.f32 %v466, %v483
        %v500 = vmul.f32 %v465, %v484
        %v509 = vrot.slane %v494, 7
        %v510 = vrot.slane %v495, 6
        %v511 = vrot.slane %v496, 5
        %v512 = vrot.slane %v497, 4
        %v513 = vrot.slane %v498, 3
        %v514 = vrot.slane %v499, 2
        %v515 = vrot.slane %v500, 1
        %vm516 = vcmask 1040384
        %v517 = vsel %vm516, %v493, %v509
        %vm518 = vcmask 1042434
        %v519 = vsel %vm518, %v510, %v511
        %vm520 = vcmask 1041408
        %v521 = vsel %vm520, %v517, %v519
        %vm522 = vcmask 1044484
        %v523 = vsel %vm522, %v512, %v513
        %vm524 = vcmask 1046534
        %v525 = vsel %vm524, %v514, %v515
        %vm526 = vcmask 1045508
        %v527 = vsel %vm526, %v523, %v525
        %vm528 = vcmask 1043456
        %v529 = vsel %vm528, %v521, %v527
        %531 = vst [vmem:[#allocation2] ss:$8 sm:$0xf] %v529
        %532 = vst [vmem:[#allocation2] ss:$8 sm:$0xf0] %v529
        %533 = vrot.lane.b32.xlu0 %v430, 72
        %v534 = vpop.permute.xlu0 %533
        %535 = vrot.lane.b32.xlu0 %v431, 72
        %v536 = vpop.permute.xlu0 %535
        %537 = vrot.lane.b32.xlu0 %v432, 72
        %v538 = vpop.permute.xlu0 %537
        %539 = vrot.lane.b32.xlu0 %v433, 72
        %v540 = vpop.permute.xlu0 %539
        %541 = vrot.lane.b32.xlu0 %v434, 72
        %v542 = vpop.permute.xlu0 %541
        %543 = vrot.lane.b32.xlu0 %v435, 72
        %v544 = vpop.permute.xlu0 %543
        %545 = vrot.lane.b32.xlu0 %v436, 72
        %v546 = vpop.permute.xlu0 %545
        %547 = vrot.lane.b32.xlu0 %v437, 72
        %v548 = vpop.permute.xlu0 %547
        %vm549 = vcmp.lt.s32.totalorder %v463, 72
        %v550 = vsel %vm549, %v546, %v548
        %v551 = vsel %vm549, %v544, %v546
        %v552 = vsel %vm549, %v542, %v544
        %v553 = vsel %vm549, %v540, %v542
        %v554 = vsel %vm549, %v538, %v540
        %v555 = vsel %vm549, %v536, %v538
        %v556 = vsel %vm549, %v534, %v536
        %v557 = vsel %vm549, %v548, %v534
        %s558 = scalar_lea.vmem [#allocation5], 1
        %v559 = vld [vmem:[%s558] ss:$8 sm:$0xf]
        %v560 = vld [vmem:[%s558] ss:$8 sm:$0xf0]
        %v561 = vor.u32 %v559, %v560
        %v563 = vperm.slane %v561, 0
        %v564 = vperm.slane %v561, 1
        %v565 = vperm.slane %v561, 2
        %v566 = vperm.slane %v561, 3
        %v567 = vperm.slane %v561, 4
        %v568 = vperm.slane %v561, 5
        %v569 = vperm.slane %v561, 6
        %v570 = vperm.slane %v561, 7
        %v579 = vmul.f32 %v557, %v563
        %v580 = vmul.f32 %v556, %v564
        %v581 = vmul.f32 %v555, %v565
        %v582 = vmul.f32 %v554, %v566
        %v583 = vmul.f32 %v553, %v567
        %v584 = vmul.f32 %v552, %v568
        %v585 = vmul.f32 %v551, %v569
        %v586 = vmul.f32 %v550, %v570
        %v595 = vrot.slane %v580, 7
        %v596 = vrot.slane %v581, 6
        %v597 = vrot.slane %v582, 5
        %v598 = vrot.slane %v583, 4
        %v599 = vrot.slane %v584, 3
        %v600 = vrot.slane %v585, 2
        %v601 = vrot.slane %v586, 1
        %v602 = vsel %vm516, %v579, %v595
        %v603 = vsel %vm518, %v596, %v597
        %v604 = vsel %vm520, %v602, %v603
        %v605 = vsel %vm522, %v598, %v599
        %v606 = vsel %vm524, %v600, %v601
        %v607 = vsel %vm526, %v605, %v606
        %v608 = vsel %vm528, %v604, %v607
        %s610 = scalar_lea.vmem [#allocation2], 1
        %611 = vst [vmem:[%s610] ss:$8 sm:$0xf] %v608
        %612 = vst [vmem:[%s610] ss:$8 sm:$0xf0] %v608
        %613 = vrot.lane.b32.xlu0 %v430, 71
        %v614 = vpop.permute.xlu0 %613
        %615 = vrot.lane.b32.xlu0 %v431, 71
        %v616 = vpop.permute.xlu0 %615
        %617 = vrot.lane.b32.xlu0 %v432, 71
        %v618 = vpop.permute.xlu0 %617
        %619 = vrot.lane.b32.xlu0 %v433, 71
        %v620 = vpop.permute.xlu0 %619
        %621 = vrot.lane.b32.xlu0 %v434, 71
        %v622 = vpop.permute.xlu0 %621
        %623 = vrot.lane.b32.xlu0 %v435, 71
        %v624 = vpop.permute.xlu0 %623
        %625 = vrot.lane.b32.xlu0 %v436, 71
        %v626 = vpop.permute.xlu0 %625
        %627 = vrot.lane.b32.xlu0 %v437, 71
        %v628 = vpop.permute.xlu0 %627
        %vm629 = vcmp.lt.s32.totalorder %v463, 71
        %v630 = vsel %vm629, %v626, %v628
        %v631 = vsel %vm629, %v624, %v626
        %v632 = vsel %vm629, %v622, %v624
        %v633 = vsel %vm629, %v620, %v622
        %v634 = vsel %vm629, %v618, %v620
        %v635 = vsel %vm629, %v616, %v618
        %v636 = vsel %vm629, %v614, %v616
        %v637 = vsel %vm629, %v628, %v614
        %s638 = scalar_lea.vmem [#allocation5], 2
        %v639 = vld [vmem:[%s638] ss:$8 sm:$0xf]
        %v640 = vld [vmem:[%s638] ss:$8 sm:$0xf0]
        %v641 = vor.u32 %v639, %v640
        %v643 = vperm.slane %v641, 0
        %v644 = vperm.slane %v641, 1
        %v645 = vperm.slane %v641, 2
        %v646 = vperm.slane %v641, 3
        %v647 = vperm.slane %v641, 4
        %v648 = vperm.slane %v641, 5
        %v649 = vperm.slane %v641, 6
        %v650 = vperm.slane %v641, 7
        %v659 = vmul.f32 %v637, %v643
        %v660 = vmul.f32 %v636, %v644
        %v661 = vmul.f32 %v635, %v645
        %v662 = vmul.f32 %v634, %v646
        %v663 = vmul.f32 %v633, %v647
        %v664 = vmul.f32 %v632, %v648
        %v665 = vmul.f32 %v631, %v649
        %v666 = vmul.f32 %v630, %v650
        %v675 = vrot.slane %v660, 7
        %v676 = vrot.slane %v661, 6
        %v677 = vrot.slane %v662, 5
        %v678 = vrot.slane %v663, 4
        %v679 = vrot.slane %v664, 3
        %v680 = vrot.slane %v665, 2
        %v681 = vrot.slane %v666, 1
        %v682 = vsel %vm516, %v659, %v675
        %v683 = vsel %vm518, %v676, %v677
        %v684 = vsel %vm520, %v682, %v683
        %v685 = vsel %vm522, %v678, %v679
        %v686 = vsel %vm524, %v680, %v681
        %v687 = vsel %vm526, %v685, %v686
        %v688 = vsel %vm528, %v684, %v687
        %s690 = scalar_lea.vmem [#allocation2], 2
        %691 = vst [vmem:[%s690] ss:$8 sm:$0xf] %v688
        %692 = vst [vmem:[%s690] ss:$8 sm:$0xf0] %v688
        %693 = vrot.lane.b32.xlu0 %v430, 65
        %v694 = vpop.permute.xlu0 %693
        %695 = vrot.lane.b32.xlu0 %v431, 65
        %v696 = vpop.permute.xlu0 %695
        %697 = vrot.lane.b32.xlu0 %v432, 65
        %v698 = vpop.permute.xlu0 %697
        %699 = vrot.lane.b32.xlu0 %v433, 65
        %v700 = vpop.permute.xlu0 %699
        %701 = vrot.lane.b32.xlu0 %v434, 65
        %v702 = vpop.permute.xlu0 %701
        %703 = vrot.lane.b32.xlu0 %v435, 65
        %v704 = vpop.permute.xlu0 %703
        %705 = vrot.lane.b32.xlu0 %v436, 65
        %v706 = vpop.permute.xlu0 %705
        %707 = vrot.lane.b32.xlu0 %v437, 65
        %v708 = vpop.permute.xlu0 %707
        %vm709 = vcmp.lt.s32.totalorder %v463, 65
        %v710 = vsel %vm709, %v706, %v708
        %v711 = vsel %vm709, %v704, %v706
        %v712 = vsel %vm709, %v702, %v704
        %v713 = vsel %vm709, %v700, %v702
        %v714 = vsel %vm709, %v698, %v700
        %v715 = vsel %vm709, %v696, %v698
        %v716 = vsel %vm709, %v694, %v696
        %v717 = vsel %vm709, %v708, %v694
        %s718 = scalar_lea.vmem [#allocation5], 3
        %v719 = vld [vmem:[%s718] ss:$8 sm:$0xf]
        %v720 = vld [vmem:[%s718] ss:$8 sm:$0xf0]
        %v721 = vor.u32 %v719, %v720
        %v723 = vperm.slane %v721, 0
        %v724 = vperm.slane %v721, 1
        %v725 = vperm.slane %v721, 2
        %v726 = vperm.slane %v721, 3
        %v727 = vperm.slane %v721, 4
        %v728 = vperm.slane %v721, 5
        %v729 = vperm.slane %v721, 6
        %v730 = vperm.slane %v721, 7
        %v739 = vmul.f32 %v717, %v723
        %v740 = vmul.f32 %v716, %v724
        %v741 = vmul.f32 %v715, %v725
        %v742 = vmul.f32 %v714, %v726
        %v743 = vmul.f32 %v713, %v727
        %v744 = vmul.f32 %v712, %v728
        %v745 = vmul.f32 %v711, %v729
        %v746 = vmul.f32 %v710, %v730
        %v755 = vrot.slane %v740, 7
        %v756 = vrot.slane %v741, 6
        %v757 = vrot.slane %v742, 5
        %v758 = vrot.slane %v743, 4
        %v759 = vrot.slane %v744, 3
        %v760 = vrot.slane %v745, 2
        %v761 = vrot.slane %v746, 1
        %v762 = vsel %vm516, %v739, %v755
        %v763 = vsel %vm518, %v756, %v757
        %v764 = vsel %vm520, %v762, %v763
        %v765 = vsel %vm522, %v758, %v759
        %v766 = vsel %vm524, %v760, %v761
        %v767 = vsel %vm526, %v765, %v766
        %v768 = vsel %vm528, %v764, %v767
        %s770 = scalar_lea.vmem [#allocation2], 3
        %771 = vst [vmem:[%s770] ss:$8 sm:$0xf] %v768
        %772 = vst [vmem:[%s770] ss:$8 sm:$0xf0] %v768
        %773 = vrot.lane.b32.xlu0 %v430, 64
        %v774 = vpop.permute.xlu0 %773
        %775 = vrot.lane.b32.xlu0 %v431, 64
        %v776 = vpop.permute.xlu0 %775
        %777 = vrot.lane.b32.xlu0 %v432, 64
        %v778 = vpop.permute.xlu0 %777
        %779 = vrot.lane.b32.xlu0 %v433, 64
        %v780 = vpop.permute.xlu0 %779
        %781 = vrot.lane.b32.xlu0 %v434, 64
        %v782 = vpop.permute.xlu0 %781
        %783 = vrot.lane.b32.xlu0 %v435, 64
        %v784 = vpop.permute.xlu0 %783
        %785 = vrot.lane.b32.xlu0 %v436, 64
        %v786 = vpop.permute.xlu0 %785
        %787 = vrot.lane.b32.xlu0 %v437, 64
        %v788 = vpop.permute.xlu0 %787
        %vm789 = vcmp.lt.s32.totalorder %v463, 64
        %v790 = vsel %vm789, %v786, %v788
        %v791 = vsel %vm789, %v784, %v786
        %v792 = vsel %vm789, %v782, %v784
        %v793 = vsel %vm789, %v780, %v782
        %v794 = vsel %vm789, %v778, %v780
        %v795 = vsel %vm789, %v776, %v778
        %v796 = vsel %vm789, %v774, %v776
        %v797 = vsel %vm789, %v788, %v774
        %s798 = scalar_lea.vmem [#allocation5], 4
        %v799 = vld [vmem:[%s798] ss:$8 sm:$0xf]
        %v800 = vld [vmem:[%s798] ss:$8 sm:$0xf0]
        %v801 = vor.u32 %v799, %v800
        %v803 = vperm.slane %v801, 0
        %v804 = vperm.slane %v801, 1
        %v805 = vperm.slane %v801, 2
        %v806 = vperm.slane %v801, 3
        %v807 = vperm.slane %v801, 4
        %v808 = vperm.slane %v801, 5
        %v809 = vperm.slane %v801, 6
        %v810 = vperm.slane %v801, 7
        %v819 = vmul.f32 %v797, %v803
        %v820 = vmul.f32 %v796, %v804
        %v821 = vmul.f32 %v795, %v805
        %v822 = vmul.f32 %v794, %v806
        %v823 = vmul.f32 %v793, %v807
        %v824 = vmul.f32 %v792, %v808
        %v825 = vmul.f32 %v791, %v809
        %v826 = vmul.f32 %v790, %v810
        %v835 = vrot.slane %v820, 7
        %v836 = vrot.slane %v821, 6
        %v837 = vrot.slane %v822, 5
        %v838 = vrot.slane %v823, 4
        %v839 = vrot.slane %v824, 3
        %v840 = vrot.slane %v825, 2
        %v841 = vrot.slane %v826, 1
        %v842 = vsel %vm516, %v819, %v835
        %v843 = vsel %vm518, %v836, %v837
        %v844 = vsel %vm520, %v842, %v843
        %v845 = vsel %vm522, %v838, %v839
        %v846 = vsel %vm524, %v840, %v841
        %v847 = vsel %vm526, %v845, %v846
        %v848 = vsel %vm528, %v844, %v847
        %s850 = scalar_lea.vmem [#allocation2], 4
        %851 = vst [vmem:[%s850] ss:$8 sm:$0xf] %v848
        %852 = vst [vmem:[%s850] ss:$8 sm:$0xf0] %v848
        %853 = vrot.lane.b32.xlu0 %v430, 63
        %v854 = vpop.permute.xlu0 %853
        %855 = vrot.lane.b32.xlu0 %v431, 63
        %v856 = vpop.permute.xlu0 %855
        %857 = vrot.lane.b32.xlu0 %v432, 63
        %v858 = vpop.permute.xlu0 %857
        %859 = vrot.lane.b32.xlu0 %v433, 63
        %v860 = vpop.permute.xlu0 %859
        %861 = vrot.lane.b32.xlu0 %v434, 63
        %v862 = vpop.permute.xlu0 %861
        %863 = vrot.lane.b32.xlu0 %v435, 63
        %v864 = vpop.permute.xlu0 %863
        %865 = vrot.lane.b32.xlu0 %v436, 63
        %v866 = vpop.permute.xlu0 %865
        %867 = vrot.lane.b32.xlu0 %v437, 63
        %v868 = vpop.permute.xlu0 %867
        %vm869 = vcmp.lt.s32.totalorder %v463, 63
        %v870 = vsel %vm869, %v866, %v868
        %v871 = vsel %vm869, %v864, %v866
        %v872 = vsel %vm869, %v862, %v864
        %v873 = vsel %vm869, %v860, %v862
        %v874 = vsel %vm869, %v858, %v860
        %v875 = vsel %vm869, %v856, %v858
        %v876 = vsel %vm869, %v854, %v856
        %v877 = vsel %vm869, %v868, %v854
        %s878 = scalar_lea.vmem [#allocation5], 5
        %v879 = vld [vmem:[%s878] ss:$8 sm:$0xf]
        %v880 = vld [vmem:[%s878] ss:$8 sm:$0xf0]
        %v881 = vor.u32 %v879, %v880
        %v883 = vperm.slane %v881, 0
        %v884 = vperm.slane %v881, 1
        %v885 = vperm.slane %v881, 2
        %v886 = vperm.slane %v881, 3
        %v887 = vperm.slane %v881, 4
        %v888 = vperm.slane %v881, 5
        %v889 = vperm.slane %v881, 6
        %v890 = vperm.slane %v881, 7
        %v899 = vmul.f32 %v877, %v883
        %v900 = vmul.f32 %v876, %v884
        %v901 = vmul.f32 %v875, %v885
        %v902 = vmul.f32 %v874, %v886
        %v903 = vmul.f32 %v873, %v887
        %v904 = vmul.f32 %v872, %v888
        %v905 = vmul.f32 %v871, %v889
        %v906 = vmul.f32 %v870, %v890
        %v915 = vrot.slane %v900, 7
        %v916 = vrot.slane %v901, 6
        %v917 = vrot.slane %v902, 5
        %v918 = vrot.slane %v903, 4
        %v919 = vrot.slane %v904, 3
        %v920 = vrot.slane %v905, 2
        %v921 = vrot.slane %v906, 1
        %v922 = vsel %vm516, %v899, %v915
        %v923 = vsel %vm518, %v916, %v917
        %v924 = vsel %vm520, %v922, %v923
        %v925 = vsel %vm522, %v918, %v919
        %v926 = vsel %vm524, %v920, %v921
        %v927 = vsel %vm526, %v925, %v926
        %v928 = vsel %vm528, %v924, %v927
        %s930 = scalar_lea.vmem [#allocation2], 5
        %931 = vst [vmem:[%s930] ss:$8 sm:$0xf] %v928
        %932 = vst [vmem:[%s930] ss:$8 sm:$0xf0] %v928
        %933 = vrot.lane.b32.xlu0 %v430, 57
        %v934 = vpop.permute.xlu0 %933
        %935 = vrot.lane.b32.xlu0 %v431, 57
        %v936 = vpop.permute.xlu0 %935
        %937 = vrot.lane.b32.xlu0 %v432, 57
        %v938 = vpop.permute.xlu0 %937
        %939 = vrot.lane.b32.xlu0 %v433, 57
        %v940 = vpop.permute.xlu0 %939
        %941 = vrot.lane.b32.xlu0 %v434, 57
        %v942 = vpop.permute.xlu0 %941
        %943 = vrot.lane.b32.xlu0 %v435, 57
        %v944 = vpop.permute.xlu0 %943
        %945 = vrot.lane.b32.xlu0 %v436, 57
        %v946 = vpop.permute.xlu0 %945
        %947 = vrot.lane.b32.xlu0 %v437, 57
        %v948 = vpop.permute.xlu0 %947
        %vm949 = vcmp.lt.s32.totalorder %v463, 57
        %v950 = vsel %vm949, %v946, %v948
        %v951 = vsel %vm949, %v944, %v946
        %v952 = vsel %vm949, %v942, %v944
        %v953 = vsel %vm949, %v940, %v942
        %v954 = vsel %vm949, %v938, %v940
        %v955 = vsel %vm949, %v936, %v938
        %v956 = vsel %vm949, %v934, %v936
        %v957 = vsel %vm949, %v948, %v934
        %s958 = scalar_lea.vmem [#allocation5], 6
        %v959 = vld [vmem:[%s958] ss:$8 sm:$0xf]
        %v960 = vld [vmem:[%s958] ss:$8 sm:$0xf0]
        %v961 = vor.u32 %v959, %v960
        %v963 = vperm.slane %v961, 0
        %v964 = vperm.slane %v961, 1
        %v965 = vperm.slane %v961, 2
        %v966 = vperm.slane %v961, 3
        %v967 = vperm.slane %v961, 4
        %v968 = vperm.slane %v961, 5
        %v969 = vperm.slane %v961, 6
        %v970 = vperm.slane %v961, 7
        %v979 = vmul.f32 %v957, %v963
        %v980 = vmul.f32 %v956, %v964
        %v981 = vmul.f32 %v955, %v965
        %v982 = vmul.f32 %v954, %v966
        %v983 = vmul.f32 %v953, %v967
        %v984 = vmul.f32 %v952, %v968
        %v985 = vmul.f32 %v951, %v969
        %v986 = vmul.f32 %v950, %v970
        %v995 = vrot.slane %v980, 7
        %v996 = vrot.slane %v981, 6
        %v997 = vrot.slane %v982, 5
        %v998 = vrot.slane %v983, 4
        %v999 = vrot.slane %v984, 3
        %v1000 = vrot.slane %v985, 2
        %v1001 = vrot.slane %v986, 1
        %v1002 = vsel %vm516, %v979, %v995
        %v1003 = vsel %vm518, %v996, %v997
        %v1004 = vsel %vm520, %v1002, %v1003
        %v1005 = vsel %vm522, %v998, %v999
        %v1006 = vsel %vm524, %v1000, %v1001
        %v1007 = vsel %vm526, %v1005, %v1006
        %v1008 = vsel %vm528, %v1004, %v1007
        %s1010 = scalar_lea.vmem [#allocation2], 6
        %1011 = vst [vmem:[%s1010] ss:$8 sm:$0xf] %v1008
        %1012 = vst [vmem:[%s1010] ss:$8 sm:$0xf0] %v1008
        %1013 = vrot.lane.b32.xlu0 %v430, 56
        %v1014 = vpop.permute.xlu0 %1013
        %1015 = vrot.lane.b32.xlu0 %v431, 56
        %v1016 = vpop.permute.xlu0 %1015
        %1017 = vrot.lane.b32.xlu0 %v432, 56
        %v1018 = vpop.permute.xlu0 %1017
        %1019 = vrot.lane.b32.xlu0 %v433, 56
        %v1020 = vpop.permute.xlu0 %1019
        %1021 = vrot.lane.b32.xlu0 %v434, 56
        %v1022 = vpop.permute.xlu0 %1021
        %1023 = vrot.lane.b32.xlu0 %v435, 56
        %v1024 = vpop.permute.xlu0 %1023
        %1025 = vrot.lane.b32.xlu0 %v436, 56
        %v1026 = vpop.permute.xlu0 %1025
        %1027 = vrot.lane.b32.xlu0 %v437, 56
        %v1028 = vpop.permute.xlu0 %1027
        %vm1029 = vcmp.lt.s32.totalorder %v463, 56
        %v1030 = vsel %vm1029, %v1026, %v1028
        %v1031 = vsel %vm1029, %v1024, %v1026
        %v1032 = vsel %vm1029, %v1022, %v1024
        %v1033 = vsel %vm1029, %v1020, %v1022
        %v1034 = vsel %vm1029, %v1018, %v1020
        %v1035 = vsel %vm1029, %v1016, %v1018
        %v1036 = vsel %vm1029, %v1014, %v1016
        %v1037 = vsel %vm1029, %v1028, %v1014
        %s1038 = scalar_lea.vmem [#allocation5], 7
        %v1039 = vld [vmem:[%s1038] ss:$8 sm:$0xf]
        %v1040 = vld [vmem:[%s1038] ss:$8 sm:$0xf0]
        %v1041 = vor.u32 %v1039, %v1040
        %v1043 = vperm.slane %v1041, 0
        %v1044 = vperm.slane %v1041, 1
        %v1045 = vperm.slane %v1041, 2
        %v1046 = vperm.slane %v1041, 3
        %v1047 = vperm.slane %v1041, 4
        %v1048 = vperm.slane %v1041, 5
        %v1049 = vperm.slane %v1041, 6
        %v1050 = vperm.slane %v1041, 7
        %v1059 = vmul.f32 %v1037, %v1043
        %v1060 = vmul.f32 %v1036, %v1044
        %v1061 = vmul.f32 %v1035, %v1045
        %v1062 = vmul.f32 %v1034, %v1046
        %v1063 = vmul.f32 %v1033, %v1047
        %v1064 = vmul.f32 %v1032, %v1048
        %v1065 = vmul.f32 %v1031, %v1049
        %v1066 = vmul.f32 %v1030, %v1050
        %v1075 = vrot.slane %v1060, 7
        %v1076 = vrot.slane %v1061, 6
        %v1077 = vrot.slane %v1062, 5
        %v1078 = vrot.slane %v1063, 4
        %v1079 = vrot.slane %v1064, 3
        %v1080 = vrot.slane %v1065, 2
        %v1081 = vrot.slane %v1066, 1
        %v1082 = vsel %vm516, %v1059, %v1075
        %v1083 = vsel %vm518, %v1076, %v1077
        %v1084 = vsel %vm520, %v1082, %v1083
        %v1085 = vsel %vm522, %v1078, %v1079
        %v1086 = vsel %vm524, %v1080, %v1081
        %v1087 = vsel %vm526, %v1085, %v1086
        %v1088 = vsel %vm528, %v1084, %v1087
        %s1090 = scalar_lea.vmem [#allocation2], 7
        %1091 = vst [vmem:[%s1090] ss:$8 sm:$0xf] %v1088
        %1092 = vst [vmem:[%s1090] ss:$8 sm:$0xf0] %v1088
        %1093 = vrot.lane.b32.xlu0 %v430, 55
        %v1094 = vpop.permute.xlu0 %1093
        %1095 = vrot.lane.b32.xlu0 %v431, 55
        %v1096 = vpop.permute.xlu0 %1095
        %1097 = vrot.lane.b32.xlu0 %v432, 55
        %v1098 = vpop.permute.xlu0 %1097
        %1099 = vrot.lane.b32.xlu0 %v433, 55
        %v1100 = vpop.permute.xlu0 %1099
        %1101 = vrot.lane.b32.xlu0 %v434, 55
        %v1102 = vpop.permute.xlu0 %1101
        %1103 = vrot.lane.b32.xlu0 %v435, 55
        %v1104 = vpop.permute.xlu0 %1103
        %1105 = vrot.lane.b32.xlu0 %v436, 55
        %v1106 = vpop.permute.xlu0 %1105
        %1107 = vrot.lane.b32.xlu0 %v437, 55
        %v1108 = vpop.permute.xlu0 %1107
        %vm1109 = vcmp.lt.s32.totalorder %v463, 55
        %v1110 = vsel %vm1109, %v1106, %v1108
        %v1111 = vsel %vm1109, %v1104, %v1106
        %v1112 = vsel %vm1109, %v1102, %v1104
        %v1113 = vsel %vm1109, %v1100, %v1102
        %v1114 = vsel %vm1109, %v1098, %v1100
        %v1115 = vsel %vm1109, %v1096, %v1098
        %v1116 = vsel %vm1109, %v1094, %v1096
        %v1117 = vsel %vm1109, %v1108, %v1094
        %s1118 = scalar_lea.vmem [#allocation5], 64
        %v1119 = vld [vmem:[%s1118] ss:$8 sm:$0xf]
        %v1120 = vld [vmem:[%s1118] ss:$8 sm:$0xf0]
        %v1121 = vor.u32 %v1119, %v1120
        %v1123 = vperm.slane %v1121, 0
        %v1124 = vperm.slane %v1121, 1
        %v1125 = vperm.slane %v1121, 2
        %v1126 = vperm.slane %v1121, 3
        %v1127 = vperm.slane %v1121, 4
        %v1128 = vperm.slane %v1121, 5
        %v1129 = vperm.slane %v1121, 6
        %v1130 = vperm.slane %v1121, 7
        %v1139 = vmul.f32 %v1117, %v1123
        %v1140 = vmul.f32 %v1116, %v1124
        %v1141 = vmul.f32 %v1115, %v1125
        %v1142 = vmul.f32 %v1114, %v1126
        %v1143 = vmul.f32 %v1113, %v1127
        %v1144 = vmul.f32 %v1112, %v1128
        %v1145 = vmul.f32 %v1111, %v1129
        %v1146 = vmul.f32 %v1110, %v1130
        %v1155 = vrot.slane %v1140, 7
        %v1156 = vrot.slane %v1141, 6
        %v1157 = vrot.slane %v1142, 5
        %v1158 = vrot.slane %v1143, 4
        %v1159 = vrot.slane %v1144, 3
        %v1160 = vrot.slane %v1145, 2
        %v1161 = vrot.slane %v1146, 1
        %v1162 = vsel %vm516, %v1139, %v1155
        %v1163 = vsel %vm518, %v1156, %v1157
        %v1164 = vsel %vm520, %v1162, %v1163
        %v1165 = vsel %vm522, %v1158, %v1159
        %v1166 = vsel %vm524, %v1160, %v1161
        %v1167 = vsel %vm526, %v1165, %v1166
        %v1168 = vsel %vm528, %v1164, %v1167
        %s1170 = scalar_lea.vmem [#allocation2], 64
        %1171 = vst [vmem:[%s1170] ss:$8 sm:$0xf] %v1168
        %1172 = vst [vmem:[%s1170] ss:$8 sm:$0xf0] %v1168
        %1173 = vrot.lane.b32.xlu0 %v430, 9
        %v1174 = vpop.permute.xlu0 %1173
        %1175 = vrot.lane.b32.xlu0 %v431, 9
        %v1176 = vpop.permute.xlu0 %1175
        %1177 = vrot.lane.b32.xlu0 %v432, 9
        %v1178 = vpop.permute.xlu0 %1177
        %1179 = vrot.lane.b32.xlu0 %v433, 9
        %v1180 = vpop.permute.xlu0 %1179
        %1181 = vrot.lane.b32.xlu0 %v434, 9
        %v1182 = vpop.permute.xlu0 %1181
        %1183 = vrot.lane.b32.xlu0 %v435, 9
        %v1184 = vpop.permute.xlu0 %1183
        %1185 = vrot.lane.b32.xlu0 %v436, 9
        %v1186 = vpop.permute.xlu0 %1185
        %1187 = vrot.lane.b32.xlu0 %v437, 9
        %v1188 = vpop.permute.xlu0 %1187
        %vm1189 = vcmp.lt.s32.totalorder %v463, 9
        %v1190 = vsel %vm1189, %v1186, %v1188
        %v1191 = vsel %vm1189, %v1184, %v1186
        %v1192 = vsel %vm1189, %v1182, %v1184
        %v1193 = vsel %vm1189, %v1180, %v1182
        %v1194 = vsel %vm1189, %v1178, %v1180
        %v1195 = vsel %vm1189, %v1176, %v1178
        %v1196 = vsel %vm1189, %v1174, %v1176
        %v1197 = vsel %vm1189, %v1188, %v1174
        %s1198 = scalar_lea.vmem [#allocation5], 65
        %v1199 = vld [vmem:[%s1198] ss:$8 sm:$0xf]
        %v1200 = vld [vmem:[%s1198] ss:$8 sm:$0xf0]
        %v1201 = vor.u32 %v1199, %v1200
        %v1203 = vperm.slane %v1201, 0
        %v1204 = vperm.slane %v1201, 1
        %v1205 = vperm.slane %v1201, 2
        %v1206 = vperm.slane %v1201, 3
        %v1207 = vperm.slane %v1201, 4
        %v1208 = vperm.slane %v1201, 5
        %v1209 = vperm.slane %v1201, 6
        %v1210 = vperm.slane %v1201, 7
        %v1219 = vmul.f32 %v1197, %v1203
        %v1220 = vmul.f32 %v1196, %v1204
        %v1221 = vmul.f32 %v1195, %v1205
        %v1222 = vmul.f32 %v1194, %v1206
        %v1223 = vmul.f32 %v1193, %v1207
        %v1224 = vmul.f32 %v1192, %v1208
        %v1225 = vmul.f32 %v1191, %v1209
        %v1226 = vmul.f32 %v1190, %v1210
        %v1235 = vrot.slane %v1220, 7
        %v1236 = vrot.slane %v1221, 6
        %v1237 = vrot.slane %v1222, 5
        %v1238 = vrot.slane %v1223, 4
        %v1239 = vrot.slane %v1224, 3
        %v1240 = vrot.slane %v1225, 2
        %v1241 = vrot.slane %v1226, 1
        %v1242 = vsel %vm516, %v1219, %v1235
        %v1243 = vsel %vm518, %v1236, %v1237
        %v1244 = vsel %vm520, %v1242, %v1243
        %v1245 = vsel %vm522, %v1238, %v1239
        %v1246 = vsel %vm524, %v1240, %v1241
        %v1247 = vsel %vm526, %v1245, %v1246
        %v1248 = vsel %vm528, %v1244, %v1247
        %s1250 = scalar_lea.vmem [#allocation2], 65
        %1251 = vst [vmem:[%s1250] ss:$8 sm:$0xf] %v1248
        %1252 = vst [vmem:[%s1250] ss:$8 sm:$0xf0] %v1248
        %1253 = vrot.lane.b32.xlu0 %v430, 8
        %v1254 = vpop.permute.xlu0 %1253
        %1255 = vrot.lane.b32.xlu0 %v431, 8
        %v1256 = vpop.permute.xlu0 %1255
        %1257 = vrot.lane.b32.xlu0 %v432, 8
        %v1258 = vpop.permute.xlu0 %1257
        %1259 = vrot.lane.b32.xlu0 %v433, 8
        %v1260 = vpop.permute.xlu0 %1259
        %1261 = vrot.lane.b32.xlu0 %v434, 8
        %v1262 = vpop.permute.xlu0 %1261
        %1263 = vrot.lane.b32.xlu0 %v435, 8
        %v1264 = vpop.permute.xlu0 %1263
        %1265 = vrot.lane.b32.xlu0 %v436, 8
        %v1266 = vpop.permute.xlu0 %1265
        %1267 = vrot.lane.b32.xlu0 %v437, 8
        %v1268 = vpop.permute.xlu0 %1267
        %vm1269 = vcmp.lt.s32.totalorder %v463, 8
        %v1270 = vsel %vm1269, %v1266, %v1268
        %v1271 = vsel %vm1269, %v1264, %v1266
        %v1272 = vsel %vm1269, %v1262, %v1264
        %v1273 = vsel %vm1269, %v1260, %v1262
        %v1274 = vsel %vm1269, %v1258, %v1260
        %v1275 = vsel %vm1269, %v1256, %v1258
        %v1276 = vsel %vm1269, %v1254, %v1256
        %v1277 = vsel %vm1269, %v1268, %v1254
        %s1278 = scalar_lea.vmem [#allocation5], 66
        %v1279 = vld [vmem:[%s1278] ss:$8 sm:$0xf]
        %v1280 = vld [vmem:[%s1278] ss:$8 sm:$0xf0]
        %v1281 = vor.u32 %v1279, %v1280
        %v1283 = vperm.slane %v1281, 0
        %v1284 = vperm.slane %v1281, 1
        %v1285 = vperm.slane %v1281, 2
        %v1286 = vperm.slane %v1281, 3
        %v1287 = vperm.slane %v1281, 4
        %v1288 = vperm.slane %v1281, 5
        %v1289 = vperm.slane %v1281, 6
        %v1290 = vperm.slane %v1281, 7
        %v1299 = vmul.f32 %v1277, %v1283
        %v1300 = vmul.f32 %v1276, %v1284
        %v1301 = vmul.f32 %v1275, %v1285
        %v1302 = vmul.f32 %v1274, %v1286
        %v1303 = vmul.f32 %v1273, %v1287
        %v1304 = vmul.f32 %v1272, %v1288
        %v1305 = vmul.f32 %v1271, %v1289
        %v1306 = vmul.f32 %v1270, %v1290
        %v1315 = vrot.slane %v1300, 7
        %v1316 = vrot.slane %v1301, 6
        %v1317 = vrot.slane %v1302, 5
        %v1318 = vrot.slane %v1303, 4
        %v1319 = vrot.slane %v1304, 3
        %v1320 = vrot.slane %v1305, 2
        %v1321 = vrot.slane %v1306, 1
        %v1322 = vsel %vm516, %v1299, %v1315
        %v1323 = vsel %vm518, %v1316, %v1317
        %v1324 = vsel %vm520, %v1322, %v1323
        %v1325 = vsel %vm522, %v1318, %v1319
        %v1326 = vsel %vm524, %v1320, %v1321
        %v1327 = vsel %vm526, %v1325, %v1326
        %v1328 = vsel %vm528, %v1324, %v1327
        %s1330 = scalar_lea.vmem [#allocation2], 66
        %1331 = vst [vmem:[%s1330] ss:$8 sm:$0xf] %v1328
        %1332 = vst [vmem:[%s1330] ss:$8 sm:$0xf0] %v1328
        %1333 = vrot.lane.b32.xlu0 %v430, 7
        %v1334 = vpop.permute.xlu0 %1333
        %1335 = vrot.lane.b32.xlu0 %v431, 7
        %v1336 = vpop.permute.xlu0 %1335
        %1337 = vrot.lane.b32.xlu0 %v432, 7
        %v1338 = vpop.permute.xlu0 %1337
        %1339 = vrot.lane.b32.xlu0 %v433, 7
        %v1340 = vpop.permute.xlu0 %1339
        %1341 = vrot.lane.b32.xlu0 %v434, 7
        %v1342 = vpop.permute.xlu0 %1341
        %1343 = vrot.lane.b32.xlu0 %v435, 7
        %v1344 = vpop.permute.xlu0 %1343
        %1345 = vrot.lane.b32.xlu0 %v436, 7
        %v1346 = vpop.permute.xlu0 %1345
        %1347 = vrot.lane.b32.xlu0 %v437, 7
        %v1348 = vpop.permute.xlu0 %1347
        %vm1349 = vcmp.lt.s32.totalorder %v463, 7
        %v1350 = vsel %vm1349, %v1346, %v1348
        %v1351 = vsel %vm1349, %v1344, %v1346
        %v1352 = vsel %vm1349, %v1342, %v1344
        %v1353 = vsel %vm1349, %v1340, %v1342
        %v1354 = vsel %vm1349, %v1338, %v1340
        %v1355 = vsel %vm1349, %v1336, %v1338
        %v1356 = vsel %vm1349, %v1334, %v1336
        %v1357 = vsel %vm1349, %v1348, %v1334
        %s1358 = scalar_lea.vmem [#allocation5], 67
        %v1359 = vld [vmem:[%s1358] ss:$8 sm:$0xf]
        %v1360 = vld [vmem:[%s1358] ss:$8 sm:$0xf0]
        %v1361 = vor.u32 %v1359, %v1360
        %v1363 = vperm.slane %v1361, 0
        %v1364 = vperm.slane %v1361, 1
        %v1365 = vperm.slane %v1361, 2
        %v1366 = vperm.slane %v1361, 3
        %v1367 = vperm.slane %v1361, 4
        %v1368 = vperm.slane %v1361, 5
        %v1369 = vperm.slane %v1361, 6
        %v1370 = vperm.slane %v1361, 7
        %v1379 = vmul.f32 %v1357, %v1363
        %v1380 = vmul.f32 %v1356, %v1364
        %v1381 = vmul.f32 %v1355, %v1365
        %v1382 = vmul.f32 %v1354, %v1366
        %v1383 = vmul.f32 %v1353, %v1367
        %v1384 = vmul.f32 %v1352, %v1368
        %v1385 = vmul.f32 %v1351, %v1369
        %v1386 = vmul.f32 %v1350, %v1370
        %v1395 = vrot.slane %v1380, 7
        %v1396 = vrot.slane %v1381, 6
        %v1397 = vrot.slane %v1382, 5
        %v1398 = vrot.slane %v1383, 4
        %v1399 = vrot.slane %v1384, 3
        %v1400 = vrot.slane %v1385, 2
        %v1401 = vrot.slane %v1386, 1
        %v1402 = vsel %vm516, %v1379, %v1395
        %v1403 = vsel %vm518, %v1396, %v1397
        %v1404 = vsel %vm520, %v1402, %v1403
        %v1405 = vsel %vm522, %v1398, %v1399
        %v1406 = vsel %vm524, %v1400, %v1401
        %v1407 = vsel %vm526, %v1405, %v1406
        %v1408 = vsel %vm528, %v1404, %v1407
        %s1410 = scalar_lea.vmem [#allocation2], 67
        %1411 = vst [vmem:[%s1410] ss:$8 sm:$0xf] %v1408
        %1412 = vst [vmem:[%s1410] ss:$8 sm:$0xf0] %v1408
        %1413 = vrot.lane.b32.xlu0 %v430, 1
        %v1414 = vpop.permute.xlu0 %1413
        %1415 = vrot.lane.b32.xlu0 %v431, 1
        %v1416 = vpop.permute.xlu0 %1415
        %1417 = vrot.lane.b32.xlu0 %v432, 1
        %v1418 = vpop.permute.xlu0 %1417
        %1419 = vrot.lane.b32.xlu0 %v433, 1
        %v1420 = vpop.permute.xlu0 %1419
        %1421 = vrot.lane.b32.xlu0 %v434, 1
        %v1422 = vpop.permute.xlu0 %1421
        %1423 = vrot.lane.b32.xlu0 %v435, 1
        %v1424 = vpop.permute.xlu0 %1423
        %1425 = vrot.lane.b32.xlu0 %v436, 1
        %v1426 = vpop.permute.xlu0 %1425
        %1427 = vrot.lane.b32.xlu0 %v437, 1
        %v1428 = vpop.permute.xlu0 %1427
        %vm1429 = vcmp.lt.s32.totalorder %v463, 1
        %v1430 = vsel %vm1429, %v1426, %v1428
        %v1431 = vsel %vm1429, %v1424, %v1426
        %v1432 = vsel %vm1429, %v1422, %v1424
        %v1433 = vsel %vm1429, %v1420, %v1422
        %v1434 = vsel %vm1429, %v1418, %v1420
        %v1435 = vsel %vm1429, %v1416, %v1418
        %v1436 = vsel %vm1429, %v1414, %v1416
        %v1437 = vsel %vm1429, %v1428, %v1414
        %s1438 = scalar_lea.vmem [#allocation5], 68
        %v1439 = vld [vmem:[%s1438] ss:$8 sm:$0xf]
        %v1440 = vld [vmem:[%s1438] ss:$8 sm:$0xf0]
        %v1441 = vor.u32 %v1439, %v1440
        %v1443 = vperm.slane %v1441, 0
        %v1444 = vperm.slane %v1441, 1
        %v1445 = vperm.slane %v1441, 2
        %v1446 = vperm.slane %v1441, 3
        %v1447 = vperm.slane %v1441, 4
        %v1448 = vperm.slane %v1441, 5
        %v1449 = vperm.slane %v1441, 6
        %v1450 = vperm.slane %v1441, 7
        %v1459 = vmul.f32 %v1437, %v1443
        %v1460 = vmul.f32 %v1436, %v1444
        %v1461 = vmul.f32 %v1435, %v1445
        %v1462 = vmul.f32 %v1434, %v1446
        %v1463 = vmul.f32 %v1433, %v1447
        %v1464 = vmul.f32 %v1432, %v1448
        %v1465 = vmul.f32 %v1431, %v1449
        %v1466 = vmul.f32 %v1430, %v1450
        %v1475 = vrot.slane %v1460, 7
        %v1476 = vrot.slane %v1461, 6
        %v1477 = vrot.slane %v1462, 5
        %v1478 = vrot.slane %v1463, 4
        %v1479 = vrot.slane %v1464, 3
        %v1480 = vrot.slane %v1465, 2
        %v1481 = vrot.slane %v1466, 1
        %v1482 = vsel %vm516, %v1459, %v1475
        %v1483 = vsel %vm518, %v1476, %v1477
        %v1484 = vsel %vm520, %v1482, %v1483
        %v1485 = vsel %vm522, %v1478, %v1479
        %v1486 = vsel %vm524, %v1480, %v1481
        %v1487 = vsel %vm526, %v1485, %v1486
        %v1488 = vsel %vm528, %v1484, %v1487
        %s1490 = scalar_lea.vmem [#allocation2], 68
        %1491 = vst [vmem:[%s1490] ss:$8 sm:$0xf] %v1488
        %1492 = vst [vmem:[%s1490] ss:$8 sm:$0xf0] %v1488
        %s1493 = scalar_lea.vmem [#allocation2], 69
        %1494 = vst [vmem:[%s1493] ss:$8 sm:$0xf] %v420
        %1495 = vst [vmem:[%s1493] ss:$8 sm:$0xf0] %v420
        %1496 = vrot.lane.b32.xlu0 %v430, 127
        %v1497 = vpop.permute.xlu0 %1496
        %1498 = vrot.lane.b32.xlu0 %v431, 127
        %v1499 = vpop.permute.xlu0 %1498
        %1500 = vrot.lane.b32.xlu0 %v432, 127
        %v1501 = vpop.permute.xlu0 %1500
        %1502 = vrot.lane.b32.xlu0 %v433, 127
        %v1503 = vpop.permute.xlu0 %1502
        %1504 = vrot.lane.b32.xlu0 %v434, 127
        %v1505 = vpop.permute.xlu0 %1504
        %1506 = vrot.lane.b32.xlu0 %v435, 127
        %v1507 = vpop.permute.xlu0 %1506
        %1508 = vrot.lane.b32.xlu0 %v436, 127
        %v1509 = vpop.permute.xlu0 %1508
        %1510 = vrot.lane.b32.xlu0 %v437, 127
        %v1511 = vpop.permute.xlu0 %1510
        %vm1512 = vcmp.lt.s32.totalorder %v463, 127
        %v1513 = vsel %vm1512, %v1509, %v1511
        %v1514 = vsel %vm1512, %v1507, %v1509
        %v1515 = vsel %vm1512, %v1505, %v1507
        %v1516 = vsel %vm1512, %v1503, %v1505
        %v1517 = vsel %vm1512, %v1501, %v1503
        %v1518 = vsel %vm1512, %v1499, %v1501
        %v1519 = vsel %vm1512, %v1497, %v1499
        %v1520 = vsel %vm1512, %v1511, %v1497
        %s1521 = scalar_lea.vmem [#allocation5], 70
        %v1522 = vld [vmem:[%s1521] ss:$8 sm:$0xf]
        %v1523 = vld [vmem:[%s1521] ss:$8 sm:$0xf0]
        %v1524 = vor.u32 %v1522, %v1523
        %v1526 = vperm.slane %v1524, 0
        %v1527 = vperm.slane %v1524, 1
        %v1528 = vperm.slane %v1524, 2
        %v1529 = vperm.slane %v1524, 3
        %v1530 = vperm.slane %v1524, 4
        %v1531 = vperm.slane %v1524, 5
        %v1532 = vperm.slane %v1524, 6
        %v1533 = vperm.slane %v1524, 7
        %v1542 = vmul.f32 %v1519, %v1526
        %v1543 = vmul.f32 %v1518, %v1527
        %v1544 = vmul.f32 %v1517, %v1528
        %v1545 = vmul.f32 %v1516, %v1529
        %v1546 = vmul.f32 %v1515, %v1530
        %v1547 = vmul.f32 %v1514, %v1531
        %v1548 = vmul.f32 %v1513, %v1532
        %v1549 = vmul.f32 %v1520, %v1533
        %v1558 = vrot.slane %v1543, 7
        %v1559 = vrot.slane %v1544, 6
        %v1560 = vrot.slane %v1545, 5
        %v1561 = vrot.slane %v1546, 4
        %v1562 = vrot.slane %v1547, 3
        %v1563 = vrot.slane %v1548, 2
        %v1564 = vrot.slane %v1549, 1
        %v1565 = vsel %vm516, %v1542, %v1558
        %v1566 = vsel %vm518, %v1559, %v1560
        %v1567 = vsel %vm520, %v1565, %v1566
        %v1568 = vsel %vm522, %v1561, %v1562
        %v1569 = vsel %vm524, %v1563, %v1564
        %v1570 = vsel %vm526, %v1568, %v1569
        %v1571 = vsel %vm528, %v1567, %v1570
        %s1573 = scalar_lea.vmem [#allocation2], 70
        %1574 = vst [vmem:[%s1573] ss:$8 sm:$0xf] %v1571
        %1575 = vst [vmem:[%s1573] ss:$8 sm:$0xf0] %v1571
        %1576 = vrot.lane.b32.xlu0 %v430, 121
        %v1577 = vpop.permute.xlu0 %1576
        %1578 = vrot.lane.b32.xlu0 %v431, 121
        %v1579 = vpop.permute.xlu0 %1578
        %1580 = vrot.lane.b32.xlu0 %v432, 121
        %v1581 = vpop.permute.xlu0 %1580
        %1582 = vrot.lane.b32.xlu0 %v433, 121
        %v1583 = vpop.permute.xlu0 %1582
        %1584 = vrot.lane.b32.xlu0 %v434, 121
        %v1585 = vpop.permute.xlu0 %1584
        %1586 = vrot.lane.b32.xlu0 %v435, 121
        %v1587 = vpop.permute.xlu0 %1586
        %1588 = vrot.lane.b32.xlu0 %v436, 121
        %v1589 = vpop.permute.xlu0 %1588
        %1590 = vrot.lane.b32.xlu0 %v437, 121
        %v1591 = vpop.permute.xlu0 %1590
        %vm1592 = vcmp.lt.s32.totalorder %v463, 121
        %v1593 = vsel %vm1592, %v1589, %v1591
        %v1594 = vsel %vm1592, %v1587, %v1589
        %v1595 = vsel %vm1592, %v1585, %v1587
        %v1596 = vsel %vm1592, %v1583, %v1585
        %v1597 = vsel %vm1592, %v1581, %v1583
        %v1598 = vsel %vm1592, %v1579, %v1581
        %v1599 = vsel %vm1592, %v1577, %v1579
        %v1600 = vsel %vm1592, %v1591, %v1577
        %s1601 = scalar_lea.vmem [#allocation5], 71
        %v1602 = vld [vmem:[%s1601] ss:$8 sm:$0xf]
        %v1603 = vld [vmem:[%s1601] ss:$8 sm:$0xf0]
        %v1604 = vor.u32 %v1602, %v1603
        %v1606 = vperm.slane %v1604, 0
        %v1607 = vperm.slane %v1604, 1
        %v1608 = vperm.slane %v1604, 2
        %v1609 = vperm.slane %v1604, 3
        %v1610 = vperm.slane %v1604, 4
        %v1611 = vperm.slane %v1604, 5
        %v1612 = vperm.slane %v1604, 6
        %v1613 = vperm.slane %v1604, 7
        %v1622 = vmul.f32 %v1599, %v1606
        %v1623 = vmul.f32 %v1598, %v1607
        %v1624 = vmul.f32 %v1597, %v1608
        %v1625 = vmul.f32 %v1596, %v1609
        %v1626 = vmul.f32 %v1595, %v1610
        %v1627 = vmul.f32 %v1594, %v1611
        %v1628 = vmul.f32 %v1593, %v1612
        %v1629 = vmul.f32 %v1600, %v1613
        %v1638 = vrot.slane %v1623, 7
        %v1639 = vrot.slane %v1624, 6
        %v1640 = vrot.slane %v1625, 5
        %v1641 = vrot.slane %v1626, 4
        %v1642 = vrot.slane %v1627, 3
        %v1643 = vrot.slane %v1628, 2
        %v1644 = vrot.slane %v1629, 1
        %v1645 = vsel %vm516, %v1622, %v1638
        %v1646 = vsel %vm518, %v1639, %v1640
        %v1647 = vsel %vm520, %v1645, %v1646
        %v1648 = vsel %vm522, %v1641, %v1642
        %v1649 = vsel %vm524, %v1643, %v1644
        %v1650 = vsel %vm526, %v1648, %v1649
        %v1651 = vsel %vm528, %v1647, %v1650
        %s1653 = scalar_lea.vmem [#allocation2], 71
        %1654 = vst [vmem:[%s1653] ss:$8 sm:$0xf] %v1651
        %1655 = vst [vmem:[%s1653] ss:$8 sm:$0xf0] %v1651
        %1656 = vrot.lane.b32.xlu0 %v430, 120
        %v1657 = vpop.permute.xlu0 %1656
        %1658 = vrot.lane.b32.xlu0 %v431, 120
        %v1659 = vpop.permute.xlu0 %1658
        %1660 = vrot.lane.b32.xlu0 %v432, 120
        %v1661 = vpop.permute.xlu0 %1660
        %1662 = vrot.lane.b32.xlu0 %v433, 120
        %v1663 = vpop.permute.xlu0 %1662
        %1664 = vrot.lane.b32.xlu0 %v434, 120
        %v1665 = vpop.permute.xlu0 %1664
        %1666 = vrot.lane.b32.xlu0 %v435, 120
        %v1667 = vpop.permute.xlu0 %1666
        %1668 = vrot.lane.b32.xlu0 %v436, 120
        %v1669 = vpop.permute.xlu0 %1668
        %1670 = vrot.lane.b32.xlu0 %v437, 120
        %v1671 = vpop.permute.xlu0 %1670
        %vm1672 = vcmp.lt.s32.totalorder %v463, 120
        %v1673 = vsel %vm1672, %v1669, %v1671
        %v1674 = vsel %vm1672, %v1667, %v1669
        %v1675 = vsel %vm1672, %v1665, %v1667
        %v1676 = vsel %vm1672, %v1663, %v1665
        %v1677 = vsel %vm1672, %v1661, %v1663
        %v1678 = vsel %vm1672, %v1659, %v1661
        %v1679 = vsel %vm1672, %v1657, %v1659
        %v1680 = vsel %vm1672, %v1671, %v1657
        %s1681 = scalar_lea.vmem [#allocation5], 128
        %v1682 = vld [vmem:[%s1681] ss:$8 sm:$0xf]
        %v1683 = vld [vmem:[%s1681] ss:$8 sm:$0xf0]
        %v1684 = vor.u32 %v1682, %v1683
        %v1686 = vperm.slane %v1684, 0
        %v1687 = vperm.slane %v1684, 1
        %v1688 = vperm.slane %v1684, 2
        %v1689 = vperm.slane %v1684, 3
        %v1690 = vperm.slane %v1684, 4
        %v1691 = vperm.slane %v1684, 5
        %v1692 = vperm.slane %v1684, 6
        %v1693 = vperm.slane %v1684, 7
        %v1702 = vmul.f32 %v1679, %v1686
        %v1703 = vmul.f32 %v1678, %v1687
        %v1704 = vmul.f32 %v1677, %v1688
        %v1705 = vmul.f32 %v1676, %v1689
        %v1706 = vmul.f32 %v1675, %v1690
        %v1707 = vmul.f32 %v1674, %v1691
        %v1708 = vmul.f32 %v1673, %v1692
        %v1709 = vmul.f32 %v1680, %v1693
        %v1718 = vrot.slane %v1703, 7
        %v1719 = vrot.slane %v1704, 6
        %v1720 = vrot.slane %v1705, 5
        %v1721 = vrot.slane %v1706, 4
        %v1722 = vrot.slane %v1707, 3
        %v1723 = vrot.slane %v1708, 2
        %v1724 = vrot.slane %v1709, 1
        %v1725 = vsel %vm516, %v1702, %v1718
        %v1726 = vsel %vm518, %v1719, %v1720
        %v1727 = vsel %vm520, %v1725, %v1726
        %v1728 = vsel %vm522, %v1721, %v1722
        %v1729 = vsel %vm524, %v1723, %v1724
        %v1730 = vsel %vm526, %v1728, %v1729
        %v1731 = vsel %vm528, %v1727, %v1730
        %s1733 = scalar_lea.vmem [#allocation2], 128
        %1734 = vst [vmem:[%s1733] ss:$8 sm:$0xf] %v1731
        %1735 = vst [vmem:[%s1733] ss:$8 sm:$0xf0] %v1731
        %1736 = vrot.lane.b32.xlu0 %v430, 119
        %v1737 = vpop.permute.xlu0 %1736
        %1738 = vrot.lane.b32.xlu0 %v431, 119
        %v1739 = vpop.permute.xlu0 %1738
        %1740 = vrot.lane.b32.xlu0 %v432, 119
        %v1741 = vpop.permute.xlu0 %1740
        %1742 = vrot.lane.b32.xlu0 %v433, 119
        %v1743 = vpop.permute.xlu0 %1742
        %1744 = vrot.lane.b32.xlu0 %v434, 119
        %v1745 = vpop.permute.xlu0 %1744
        %1746 = vrot.lane.b32.xlu0 %v435, 119
        %v1747 = vpop.permute.xlu0 %1746
        %1748 = vrot.lane.b32.xlu0 %v436, 119
        %v1749 = vpop.permute.xlu0 %1748
        %1750 = vrot.lane.b32.xlu0 %v437, 119
        %v1751 = vpop.permute.xlu0 %1750
        %vm1752 = vcmp.lt.s32.totalorder %v463, 119
        %v1753 = vsel %vm1752, %v1749, %v1751
        %v1754 = vsel %vm1752, %v1747, %v1749
        %v1755 = vsel %vm1752, %v1745, %v1747
        %v1756 = vsel %vm1752, %v1743, %v1745
        %v1757 = vsel %vm1752, %v1741, %v1743
        %v1758 = vsel %vm1752, %v1739, %v1741
        %v1759 = vsel %vm1752, %v1737, %v1739
        %v1760 = vsel %vm1752, %v1751, %v1737
        %s1761 = scalar_lea.vmem [#allocation5], 129
        %v1762 = vld [vmem:[%s1761] ss:$8 sm:$0xf]
        %v1763 = vld [vmem:[%s1761] ss:$8 sm:$0xf0]
        %v1764 = vor.u32 %v1762, %v1763
        %v1766 = vperm.slane %v1764, 0
        %v1767 = vperm.slane %v1764, 1
        %v1768 = vperm.slane %v1764, 2
        %v1769 = vperm.slane %v1764, 3
        %v1770 = vperm.slane %v1764, 4
        %v1771 = vperm.slane %v1764, 5
        %v1772 = vperm.slane %v1764, 6
        %v1773 = vperm.slane %v1764, 7
        %v1782 = vmul.f32 %v1759, %v1766
        %v1783 = vmul.f32 %v1758, %v1767
        %v1784 = vmul.f32 %v1757, %v1768
        %v1785 = vmul.f32 %v1756, %v1769
        %v1786 = vmul.f32 %v1755, %v1770
        %v1787 = vmul.f32 %v1754, %v1771
        %v1788 = vmul.f32 %v1753, %v1772
        %v1789 = vmul.f32 %v1760, %v1773
        %v1798 = vrot.slane %v1783, 7
        %v1799 = vrot.slane %v1784, 6
        %v1800 = vrot.slane %v1785, 5
        %v1801 = vrot.slane %v1786, 4
        %v1802 = vrot.slane %v1787, 3
        %v1803 = vrot.slane %v1788, 2
        %v1804 = vrot.slane %v1789, 1
        %v1805 = vsel %vm516, %v1782, %v1798
        %v1806 = vsel %vm518, %v1799, %v1800
        %v1807 = vsel %vm520, %v1805, %v1806
        %v1808 = vsel %vm522, %v1801, %v1802
        %v1809 = vsel %vm524, %v1803, %v1804
        %v1810 = vsel %vm526, %v1808, %v1809
        %v1811 = vsel %vm528, %v1807, %v1810
        %s1813 = scalar_lea.vmem [#allocation2], 129
        %1814 = vst [vmem:[%s1813] ss:$8 sm:$0xf] %v1811
        %1815 = vst [vmem:[%s1813] ss:$8 sm:$0xf0] %v1811
        %s1816 = scalar_lea.vmem [#allocation5], 130
        %v1817 = vld [vmem:[%s1816] ss:$8 sm:$0xf]
        %v1818 = vld [vmem:[%s1816] ss:$8 sm:$0xf0]
        %v1819 = vor.u32 %v1817, %v1818
        %v1821 = vperm.slane %v1819, 0
        %v1822 = vperm.slane %v1819, 1
        %v1823 = vperm.slane %v1819, 2
        %v1824 = vperm.slane %v1819, 3
        %v1825 = vperm.slane %v1819, 4
        %v1826 = vperm.slane %v1819, 5
        %v1827 = vperm.slane %v1819, 6
        %v1828 = vperm.slane %v1819, 7
        %v1837 = vmul.f32 %v471, %v1821
        %v1838 = vmul.f32 %v470, %v1822
        %v1839 = vmul.f32 %v469, %v1823
        %v1840 = vmul.f32 %v468, %v1824
        %v1841 = vmul.f32 %v467, %v1825
        %v1842 = vmul.f32 %v466, %v1826
        %v1843 = vmul.f32 %v465, %v1827
        %v1844 = vmul.f32 %v472, %v1828
        %v1853 = vrot.slane %v1838, 7
        %v1854 = vrot.slane %v1839, 6
        %v1855 = vrot.slane %v1840, 5
        %v1856 = vrot.slane %v1841, 4
        %v1857 = vrot.slane %v1842, 3
        %v1858 = vrot.slane %v1843, 2
        %v1859 = vrot.slane %v1844, 1
        %v1860 = vsel %vm516, %v1837, %v1853
        %v1861 = vsel %vm518, %v1854, %v1855
        %v1862 = vsel %vm520, %v1860, %v1861
        %v1863 = vsel %vm522, %v1856, %v1857
        %v1864 = vsel %vm524, %v1858, %v1859
        %v1865 = vsel %vm526, %v1863, %v1864
        %v1866 = vsel %vm528, %v1862, %v1865
        %s1868 = scalar_lea.vmem [#allocation2], 130
        %1869 = vst [vmem:[%s1868] ss:$8 sm:$0xf] %v1866
        %1870 = vst [vmem:[%s1868] ss:$8 sm:$0xf0] %v1866
        %s1871 = scalar_lea.vmem [#allocation5], 131
        %v1872 = vld [vmem:[%s1871] ss:$8 sm:$0xf]
        %v1873 = vld [vmem:[%s1871] ss:$8 sm:$0xf0]
        %v1874 = vor.u32 %v1872, %v1873
        %v1876 = vperm.slane %v1874, 0
        %v1877 = vperm.slane %v1874, 1
        %v1878 = vperm.slane %v1874, 2
        %v1879 = vperm.slane %v1874, 3
        %v1880 = vperm.slane %v1874, 4
        %v1881 = vperm.slane %v1874, 5
        %v1882 = vperm.slane %v1874, 6
        %v1883 = vperm.slane %v1874, 7
        %v1892 = vmul.f32 %v556, %v1876
        %v1893 = vmul.f32 %v555, %v1877
        %v1894 = vmul.f32 %v554, %v1878
        %v1895 = vmul.f32 %v553, %v1879
        %v1896 = vmul.f32 %v552, %v1880
        %v1897 = vmul.f32 %v551, %v1881
        %v1898 = vmul.f32 %v550, %v1882
        %v1899 = vmul.f32 %v557, %v1883
        %v1908 = vrot.slane %v1893, 7
        %v1909 = vrot.slane %v1894, 6
        %v1910 = vrot.slane %v1895, 5
        %v1911 = vrot.slane %v1896, 4
        %v1912 = vrot.slane %v1897, 3
        %v1913 = vrot.slane %v1898, 2
        %v1914 = vrot.slane %v1899, 1
        %v1915 = vsel %vm516, %v1892, %v1908
        %v1916 = vsel %vm518, %v1909, %v1910
        %v1917 = vsel %vm520, %v1915, %v1916
        %v1918 = vsel %vm522, %v1911, %v1912
        %v1919 = vsel %vm524, %v1913, %v1914
        %v1920 = vsel %vm526, %v1918, %v1919
        %v1921 = vsel %vm528, %v1917, %v1920
        %s1923 = scalar_lea.vmem [#allocation2], 131
        %1924 = vst [vmem:[%s1923] ss:$8 sm:$0xf] %v1921
        %1925 = vst [vmem:[%s1923] ss:$8 sm:$0xf0] %v1921
        %s1926 = scalar_lea.vmem [#allocation5], 132
        %v1927 = vld [vmem:[%s1926] ss:$8 sm:$0xf]
        %v1928 = vld [vmem:[%s1926] ss:$8 sm:$0xf0]
        %v1929 = vor.u32 %v1927, %v1928
        %v1931 = vperm.slane %v1929, 0
        %v1932 = vperm.slane %v1929, 1
        %v1933 = vperm.slane %v1929, 2
        %v1934 = vperm.slane %v1929, 3
        %v1935 = vperm.slane %v1929, 4
        %v1936 = vperm.slane %v1929, 5
        %v1937 = vperm.slane %v1929, 6
        %v1938 = vperm.slane %v1929, 7
        %v1947 = vmul.f32 %v636, %v1931
        %v1948 = vmul.f32 %v635, %v1932
        %v1949 = vmul.f32 %v634, %v1933
        %v1950 = vmul.f32 %v633, %v1934
        %v1951 = vmul.f32 %v632, %v1935
        %v1952 = vmul.f32 %v631, %v1936
        %v1953 = vmul.f32 %v630, %v1937
        %v1954 = vmul.f32 %v637, %v1938
        %v1963 = vrot.slane %v1948, 7
        %v1964 = vrot.slane %v1949, 6
        %v1965 = vrot.slane %v1950, 5
        %v1966 = vrot.slane %v1951, 4
        %v1967 = vrot.slane %v1952, 3
        %v1968 = vrot.slane %v1953, 2
        %v1969 = vrot.slane %v1954, 1
        %v1970 = vsel %vm516, %v1947, %v1963
        %v1971 = vsel %vm518, %v1964, %v1965
        %v1972 = vsel %vm520, %v1970, %v1971
        %v1973 = vsel %vm522, %v1966, %v1967
        %v1974 = vsel %vm524, %v1968, %v1969
        %v1975 = vsel %vm526, %v1973, %v1974
        %v1976 = vsel %vm528, %v1972, %v1975
        %s1978 = scalar_lea.vmem [#allocation2], 132
        %1979 = vst [vmem:[%s1978] ss:$8 sm:$0xf] %v1976
        %1980 = vst [vmem:[%s1978] ss:$8 sm:$0xf0] %v1976
        %s1981 = scalar_lea.vmem [#allocation5], 133
        %v1982 = vld [vmem:[%s1981] ss:$8 sm:$0xf]
        %v1983 = vld [vmem:[%s1981] ss:$8 sm:$0xf0]
        %v1984 = vor.u32 %v1982, %v1983
        %v1986 = vperm.slane %v1984, 0
        %v1987 = vperm.slane %v1984, 1
        %v1988 = vperm.slane %v1984, 2
        %v1989 = vperm.slane %v1984, 3
        %v1990 = vperm.slane %v1984, 4
        %v1991 = vperm.slane %v1984, 5
        %v1992 = vperm.slane %v1984, 6
        %v1993 = vperm.slane %v1984, 7
        %v2002 = vmul.f32 %v716, %v1986
        %v2003 = vmul.f32 %v715, %v1987
        %v2004 = vmul.f32 %v714, %v1988
        %v2005 = vmul.f32 %v713, %v1989
        %v2006 = vmul.f32 %v712, %v1990
        %v2007 = vmul.f32 %v711, %v1991
        %v2008 = vmul.f32 %v710, %v1992
        %v2009 = vmul.f32 %v717, %v1993
        %v2018 = vrot.slane %v2003, 7
        %v2019 = vrot.slane %v2004, 6
        %v2020 = vrot.slane %v2005, 5
        %v2021 = vrot.slane %v2006, 4
        %v2022 = vrot.slane %v2007, 3
        %v2023 = vrot.slane %v2008, 2
        %v2024 = vrot.slane %v2009, 1
        %v2025 = vsel %vm516, %v2002, %v2018
        %v2026 = vsel %vm518, %v2019, %v2020
        %v2027 = vsel %vm520, %v2025, %v2026
        %v2028 = vsel %vm522, %v2021, %v2022
        %v2029 = vsel %vm524, %v2023, %v2024
        %v2030 = vsel %vm526, %v2028, %v2029
        %v2031 = vsel %vm528, %v2027, %v2030
        %s2033 = scalar_lea.vmem [#allocation2], 133
        %2034 = vst [vmem:[%s2033] ss:$8 sm:$0xf] %v2031
        %2035 = vst [vmem:[%s2033] ss:$8 sm:$0xf0] %v2031
        %s2036 = scalar_lea.vmem [#allocation5], 134
        %v2037 = vld [vmem:[%s2036] ss:$8 sm:$0xf]
        %v2038 = vld [vmem:[%s2036] ss:$8 sm:$0xf0]
        %v2039 = vor.u32 %v2037, %v2038
        %v2041 = vperm.slane %v2039, 0
        %v2042 = vperm.slane %v2039, 1
        %v2043 = vperm.slane %v2039, 2
        %v2044 = vperm.slane %v2039, 3
        %v2045 = vperm.slane %v2039, 4
        %v2046 = vperm.slane %v2039, 5
        %v2047 = vperm.slane %v2039, 6
        %v2048 = vperm.slane %v2039, 7
        %v2057 = vmul.f32 %v796, %v2041
        %v2058 = vmul.f32 %v795, %v2042
        %v2059 = vmul.f32 %v794, %v2043
        %v2060 = vmul.f32 %v793, %v2044
        %v2061 = vmul.f32 %v792, %v2045
        %v2062 = vmul.f32 %v791, %v2046
        %v2063 = vmul.f32 %v790, %v2047
        %v2064 = vmul.f32 %v797, %v2048
        %v2073 = vrot.slane %v2058, 7
        %v2074 = vrot.slane %v2059, 6
        %v2075 = vrot.slane %v2060, 5
        %v2076 = vrot.slane %v2061, 4
        %v2077 = vrot.slane %v2062, 3
        %v2078 = vrot.slane %v2063, 2
        %v2079 = vrot.slane %v2064, 1
        %v2080 = vsel %vm516, %v2057, %v2073
        %v2081 = vsel %vm518, %v2074, %v2075
        %v2082 = vsel %vm520, %v2080, %v2081
        %v2083 = vsel %vm522, %v2076, %v2077
        %v2084 = vsel %vm524, %v2078, %v2079
        %v2085 = vsel %vm526, %v2083, %v2084
        %v2086 = vsel %vm528, %v2082, %v2085
        %s2088 = scalar_lea.vmem [#allocation2], 134
        %2089 = vst [vmem:[%s2088] ss:$8 sm:$0xf] %v2086
        %2090 = vst [vmem:[%s2088] ss:$8 sm:$0xf0] %v2086
        %s2091 = scalar_lea.vmem [#allocation5], 135
        %v2092 = vld [vmem:[%s2091] ss:$8 sm:$0xf]
        %v2093 = vld [vmem:[%s2091] ss:$8 sm:$0xf0]
        %v2094 = vor.u32 %v2092, %v2093
        %v2096 = vperm.slane %v2094, 0
        %v2097 = vperm.slane %v2094, 1
        %v2098 = vperm.slane %v2094, 2
        %v2099 = vperm.slane %v2094, 3
        %v2100 = vperm.slane %v2094, 4
        %v2101 = vperm.slane %v2094, 5
        %v2102 = vperm.slane %v2094, 6
        %v2103 = vperm.slane %v2094, 7
        %v2112 = vmul.f32 %v876, %v2096
        %v2113 = vmul.f32 %v875, %v2097
        %v2114 = vmul.f32 %v874, %v2098
        %v2115 = vmul.f32 %v873, %v2099
        %v2116 = vmul.f32 %v872, %v2100
        %v2117 = vmul.f32 %v871, %v2101
        %v2118 = vmul.f32 %v870, %v2102
        %v2119 = vmul.f32 %v877, %v2103
        %v2128 = vrot.slane %v2113, 7
        %v2129 = vrot.slane %v2114, 6
        %v2130 = vrot.slane %v2115, 5
        %v2131 = vrot.slane %v2116, 4
        %v2132 = vrot.slane %v2117, 3
        %v2133 = vrot.slane %v2118, 2
        %v2134 = vrot.slane %v2119, 1
        %v2135 = vsel %vm516, %v2112, %v2128
        %v2136 = vsel %vm518, %v2129, %v2130
        %v2137 = vsel %vm520, %v2135, %v2136
        %v2138 = vsel %vm522, %v2131, %v2132
        %v2139 = vsel %vm524, %v2133, %v2134
        %v2140 = vsel %vm526, %v2138, %v2139
        %v2141 = vsel %vm528, %v2137, %v2140
        %s2143 = scalar_lea.vmem [#allocation2], 135
        %2144 = vst [vmem:[%s2143] ss:$8 sm:$0xf] %v2141
        %2145 = vst [vmem:[%s2143] ss:$8 sm:$0xf0] %v2141
        %s2146 = scalar_lea.vmem [#allocation5], 192
        %v2147 = vld [vmem:[%s2146] ss:$8 sm:$0xf]
        %v2148 = vld [vmem:[%s2146] ss:$8 sm:$0xf0]
        %v2149 = vor.u32 %v2147, %v2148
        %v2151 = vperm.slane %v2149, 0
        %v2152 = vperm.slane %v2149, 1
        %v2153 = vperm.slane %v2149, 2
        %v2154 = vperm.slane %v2149, 3
        %v2155 = vperm.slane %v2149, 4
        %v2156 = vperm.slane %v2149, 5
        %v2157 = vperm.slane %v2149, 6
        %v2158 = vperm.slane %v2149, 7
        %v2167 = vmul.f32 %v956, %v2151
        %v2168 = vmul.f32 %v955, %v2152
        %v2169 = vmul.f32 %v954, %v2153
        %v2170 = vmul.f32 %v953, %v2154
        %v2171 = vmul.f32 %v952, %v2155
        %v2172 = vmul.f32 %v951, %v2156
        %v2173 = vmul.f32 %v950, %v2157
        %v2174 = vmul.f32 %v957, %v2158
        %v2183 = vrot.slane %v2168, 7
        %v2184 = vrot.slane %v2169, 6
        %v2185 = vrot.slane %v2170, 5
        %v2186 = vrot.slane %v2171, 4
        %v2187 = vrot.slane %v2172, 3
        %v2188 = vrot.slane %v2173, 2
        %v2189 = vrot.slane %v2174, 1
        %v2190 = vsel %vm516, %v2167, %v2183
        %v2191 = vsel %vm518, %v2184, %v2185
        %v2192 = vsel %vm520, %v2190, %v2191
        %v2193 = vsel %vm522, %v2186, %v2187
        %v2194 = vsel %vm524, %v2188, %v2189
        %v2195 = vsel %vm526, %v2193, %v2194
        %v2196 = vsel %vm528, %v2192, %v2195
        %s2198 = scalar_lea.vmem [#allocation2], 192
        %2199 = vst [vmem:[%s2198] ss:$8 sm:$0xf] %v2196
        %2200 = vst [vmem:[%s2198] ss:$8 sm:$0xf0] %v2196
        %s2201 = scalar_lea.vmem [#allocation5], 193
        %v2202 = vld [vmem:[%s2201] ss:$8 sm:$0xf]
        %v2203 = vld [vmem:[%s2201] ss:$8 sm:$0xf0]
        %v2204 = vor.u32 %v2202, %v2203
        %v2206 = vperm.slane %v2204, 0
        %v2207 = vperm.slane %v2204, 1
        %v2208 = vperm.slane %v2204, 2
        %v2209 = vperm.slane %v2204, 3
        %v2210 = vperm.slane %v2204, 4
        %v2211 = vperm.slane %v2204, 5
        %v2212 = vperm.slane %v2204, 6
        %v2213 = vperm.slane %v2204, 7
        %v2222 = vmul.f32 %v1036, %v2206
        %v2223 = vmul.f32 %v1035, %v2207
        %v2224 = vmul.f32 %v1034, %v2208
        %v2225 = vmul.f32 %v1033, %v2209
        %v2226 = vmul.f32 %v1032, %v2210
        %v2227 = vmul.f32 %v1031, %v2211
        %v2228 = vmul.f32 %v1030, %v2212
        %v2229 = vmul.f32 %v1037, %v2213
        %v2238 = vrot.slane %v2223, 7
        %v2239 = vrot.slane %v2224, 6
        %v2240 = vrot.slane %v2225, 5
        %v2241 = vrot.slane %v2226, 4
        %v2242 = vrot.slane %v2227, 3
        %v2243 = vrot.slane %v2228, 2
        %v2244 = vrot.slane %v2229, 1
        %v2245 = vsel %vm516, %v2222, %v2238
        %v2246 = vsel %vm518, %v2239, %v2240
        %v2247 = vsel %vm520, %v2245, %v2246
        %v2248 = vsel %vm522, %v2241, %v2242
        %v2249 = vsel %vm524, %v2243, %v2244
        %v2250 = vsel %vm526, %v2248, %v2249
        %v2251 = vsel %vm528, %v2247, %v2250
        %s2253 = scalar_lea.vmem [#allocation2], 193
        %2254 = vst [vmem:[%s2253] ss:$8 sm:$0xf] %v2251
        %2255 = vst [vmem:[%s2253] ss:$8 sm:$0xf0] %v2251
        %s2256 = scalar_lea.vmem [#allocation5], 194
        %v2257 = vld [vmem:[%s2256] ss:$8 sm:$0xf]
        %v2258 = vld [vmem:[%s2256] ss:$8 sm:$0xf0]
        %v2259 = vor.u32 %v2257, %v2258
        %v2261 = vperm.slane %v2259, 0
        %v2262 = vperm.slane %v2259, 1
        %v2263 = vperm.slane %v2259, 2
        %v2264 = vperm.slane %v2259, 3
        %v2265 = vperm.slane %v2259, 4
        %v2266 = vperm.slane %v2259, 5
        %v2267 = vperm.slane %v2259, 6
        %v2268 = vperm.slane %v2259, 7
        %v2277 = vmul.f32 %v1116, %v2261
        %v2278 = vmul.f32 %v1115, %v2262
        %v2279 = vmul.f32 %v1114, %v2263
        %v2280 = vmul.f32 %v1113, %v2264
        %v2281 = vmul.f32 %v1112, %v2265
        %v2282 = vmul.f32 %v1111, %v2266
        %v2283 = vmul.f32 %v1110, %v2267
        %v2284 = vmul.f32 %v1117, %v2268
        %v2293 = vrot.slane %v2278, 7
        %v2294 = vrot.slane %v2279, 6
        %v2295 = vrot.slane %v2280, 5
        %v2296 = vrot.slane %v2281, 4
        %v2297 = vrot.slane %v2282, 3
        %v2298 = vrot.slane %v2283, 2
        %v2299 = vrot.slane %v2284, 1
        %v2300 = vsel %vm516, %v2277, %v2293
        %v2301 = vsel %vm518, %v2294, %v2295
        %v2302 = vsel %vm520, %v2300, %v2301
        %v2303 = vsel %vm522, %v2296, %v2297
        %v2304 = vsel %vm524, %v2298, %v2299
        %v2305 = vsel %vm526, %v2303, %v2304
        %v2306 = vsel %vm528, %v2302, %v2305
        %s2308 = scalar_lea.vmem [#allocation2], 194
        %2309 = vst [vmem:[%s2308] ss:$8 sm:$0xf] %v2306
        %2310 = vst [vmem:[%s2308] ss:$8 sm:$0xf0] %v2306
        %v2311 = vld [vmem:[%s4] sm:$0xf]
        %v2312 = vld [vmem:[#allocation2] sm:$0xff]
        %v2313 = vld [vmem:[#allocation2 + $0x8] sm:$0xff]
        %v2314 = vld [vmem:[#allocation2 + $0x10] sm:$0xff]
        %v2315 = vld [vmem:[#allocation2 + $0x18] sm:$0xff]
        %v2316 = vld [vmem:[#allocation2 + $0x20] sm:$0xff]
        %v2317 = vld [vmem:[#allocation2 + $0x28] sm:$0xff]
        %v2318 = vld [vmem:[#allocation2 + $0x30] sm:$0xff]
        %v2319 = vld [vmem:[#allocation2 + $0x38] sm:$0xff]
        %v2320 = vld [vmem:[#allocation2 + $0x40] sm:$0xff]
        %v2321 = vld [vmem:[#allocation2 + $0x48] sm:$0xff]
        %v2322 = vld [vmem:[#allocation2 + $0x50] sm:$0xff]
        %v2323 = vld [vmem:[#allocation2 + $0x58] sm:$0xff]
        %v2324 = vld [vmem:[#allocation2 + $0x60] sm:$0xff]
        %v2325 = vld [vmem:[#allocation2 + $0x68] sm:$0xff]
        %v2326 = vld [vmem:[#allocation2 + $0x70] sm:$0xff]
        %v2327 = vld [vmem:[#allocation2 + $0x78] sm:$0xff]
        %v2328 = vld [vmem:[#allocation2 + $0x80] sm:$0xff]
        %v2329 = vld [vmem:[#allocation2 + $0x88] sm:$0xff]
        %v2330 = vld [vmem:[#allocation2 + $0x90] sm:$0xff]
        %v2331 = vld [vmem:[#allocation2 + $0x98] sm:$0xff]
        %v2332 = vld [vmem:[#allocation2 + $0xa0] sm:$0xff]
        %v2333 = vld [vmem:[#allocation2 + $0xa8] sm:$0xff]
        %v2334 = vld [vmem:[#allocation2 + $0xb0] sm:$0xff]
        %v2335 = vld [vmem:[#allocation2 + $0xb8] sm:$0xff]
        %v2336 = vld [vmem:[#allocation2 + $0xc0] sm:$0xff]
        %v2337 = vld [vmem:[#allocation2 + $0xc8] sm:$0xff]
        %v2338 = vld [vmem:[#allocation2 + $0xd0] sm:$0xff]
        %v2339 = vld [vmem:[#allocation2 + $0xd8] sm:$0xff]
        %v2340 = vld [vmem:[#allocation2 + $0xe0] sm:$0xff]
        %v2341 = vld [vmem:[#allocation2 + $0xe8] sm:$0xff]
        %v2342 = vld [vmem:[#allocation2 + $0xf0] sm:$0xff]
        %v2343 = vld [vmem:[#allocation2 + $0xf8] sm:$0xff]
        %vm2344 = vcmask 261120
        %v2346 = vsel %vm2344, %v2311, 0
        %2348 = vmatpush.msra.mxu0 0.0
        %2349 = vmatpush.msra.mxu0 0.0
        %2350 = vmatpush.msra.mxu0 0.0
        %2351 = vmatpush.msra.mxu0 0.0
        %2352 = vmatpush.msra.mxu0 0.0
        %2353 = vmatpush.msra.mxu0 0.0
        %2354 = vmatpush.msra.mxu0 0.0
        %2355 = vmatpush.msra.mxu0 0.0
        %2356 = vmatpush.msra.mxu0 0.0
        %2357 = vmatpush.msra.mxu0 0.0
        %2358 = vmatpush.msra.mxu0 0.0
        %2359 = vmatpush.msra.mxu0 0.0
        %2360 = vmatpush.msra.mxu0 %v2336
        %2361 = vmatpush.msra.mxu0 %v2328
        %2362 = vmatpush.msra.mxu0 %v2320
        %2363 = vmatpush.msra.mxu0 %v2312
        %2364 = vmatmul.f32.gmra.mxu0 %v2346
        %v2365 = vpop.f32.mrf.mxu0
        %v2366 = vadd.f32 0.0, %v2365
        %2367 = vdwg.mxu0
        %2368 = vmatpush.msra.mxu0 0.0
        %2369 = vmatpush.msra.mxu0 0.0
        %2370 = vmatpush.msra.mxu0 0.0
        %2371 = vmatpush.msra.mxu0 0.0
        %2372 = vmatpush.msra.mxu0 0.0
        %2373 = vmatpush.msra.mxu0 0.0
        %2374 = vmatpush.msra.mxu0 0.0
        %2375 = vmatpush.msra.mxu0 0.0
        %2376 = vmatpush.msra.mxu0 0.0
        %2377 = vmatpush.msra.mxu0 0.0
        %2378 = vmatpush.msra.mxu0 0.0
        %2379 = vmatpush.msra.mxu0 0.0
        %2380 = vmatpush.msra.mxu0 %v2337
        %2381 = vmatpush.msra.mxu0 %v2329
        %2382 = vmatpush.msra.mxu0 %v2321
        %2383 = vmatpush.msra.mxu0 %v2313
        %2384 = vmatmul.f32.gmra.mxu0 %v2346
        %v2385 = vpop.f32.mrf.mxu0
        %v2386 = vadd.f32 0.0, %v2385
        %2387 = vdwg.mxu0
        %2388 = vmatpush.msra.mxu0 0.0
        %2389 = vmatpush.msra.mxu0 0.0
        %2390 = vmatpush.msra.mxu0 0.0
        %2391 = vmatpush.msra.mxu0 0.0
        %2392 = vmatpush.msra.mxu0 0.0
        %2393 = vmatpush.msra.mxu0 0.0
        %2394 = vmatpush.msra.mxu0 0.0
        %2395 = vmatpush.msra.mxu0 0.0
        %2396 = vmatpush.msra.mxu0 0.0
        %2397 = vmatpush.msra.mxu0 0.0
        %2398 = vmatpush.msra.mxu0 0.0
        %2399 = vmatpush.msra.mxu0 0.0
        %2400 = vmatpush.msra.mxu0 %v2338
        %2401 = vmatpush.msra.mxu0 %v2330
        %2402 = vmatpush.msra.mxu0 %v2322
        %2403 = vmatpush.msra.mxu0 %v2314
        %2404 = vmatmul.f32.gmra.mxu0 %v2346
        %v2405 = vpop.f32.mrf.mxu0
        %v2406 = vadd.f32 0.0, %v2405
        %2407 = vdwg.mxu0
        %2408 = vmatpush.msra.mxu0 0.0
        %2409 = vmatpush.msra.mxu0 0.0
        %2410 = vmatpush.msra.mxu0 0.0
        %2411 = vmatpush.msra.mxu0 0.0
        %2412 = vmatpush.msra.mxu0 0.0
        %2413 = vmatpush.msra.mxu0 0.0
        %2414 = vmatpush.msra.mxu0 0.0
        %2415 = vmatpush.msra.mxu0 0.0
        %2416 = vmatpush.msra.mxu0 0.0
        %2417 = vmatpush.msra.mxu0 0.0
        %2418 = vmatpush.msra.mxu0 0.0
        %2419 = vmatpush.msra.mxu0 0.0
        %2420 = vmatpush.msra.mxu0 %v2339
        %2421 = vmatpush.msra.mxu0 %v2331
        %2422 = vmatpush.msra.mxu0 %v2323
        %2423 = vmatpush.msra.mxu0 %v2315
        %2424 = vmatmul.f32.gmra.mxu0 %v2346
        %v2425 = vpop.f32.mrf.mxu0
        %v2426 = vadd.f32 0.0, %v2425
        %2427 = vdwg.mxu0
        %2428 = vmatpush.msra.mxu0 0.0
        %2429 = vmatpush.msra.mxu0 0.0
        %2430 = vmatpush.msra.mxu0 0.0
        %2431 = vmatpush.msra.mxu0 0.0
        %2432 = vmatpush.msra.mxu0 0.0
        %2433 = vmatpush.msra.mxu0 0.0
        %2434 = vmatpush.msra.mxu0 0.0
        %2435 = vmatpush.msra.mxu0 0.0
        %2436 = vmatpush.msra.mxu0 0.0
        %2437 = vmatpush.msra.mxu0 0.0
        %2438 = vmatpush.msra.mxu0 0.0
        %2439 = vmatpush.msra.mxu0 0.0
        %2440 = vmatpush.msra.mxu0 %v2340
        %2441 = vmatpush.msra.mxu0 %v2332
        %2442 = vmatpush.msra.mxu0 %v2324
        %2443 = vmatpush.msra.mxu0 %v2316
        %2444 = vmatmul.f32.gmra.mxu0 %v2346
        %v2445 = vpop.f32.mrf.mxu0
        %v2446 = vadd.f32 0.0, %v2445
        %2447 = vdwg.mxu0
        %2448 = vmatpush.msra.mxu0 0.0
        %2449 = vmatpush.msra.mxu0 0.0
        %2450 = vmatpush.msra.mxu0 0.0
        %2451 = vmatpush.msra.mxu0 0.0
        %2452 = vmatpush.msra.mxu0 0.0
        %2453 = vmatpush.msra.mxu0 0.0
        %2454 = vmatpush.msra.mxu0 0.0
        %2455 = vmatpush.msra.mxu0 0.0
        %2456 = vmatpush.msra.mxu0 0.0
        %2457 = vmatpush.msra.mxu0 0.0
        %2458 = vmatpush.msra.mxu0 0.0
        %2459 = vmatpush.msra.mxu0 0.0
        %2460 = vmatpush.msra.mxu0 %v2341
        %2461 = vmatpush.msra.mxu0 %v2333
        %2462 = vmatpush.msra.mxu0 %v2325
        %2463 = vmatpush.msra.mxu0 %v2317
        %2464 = vmatmul.f32.gmra.mxu0 %v2346
        %v2465 = vpop.f32.mrf.mxu0
        %v2466 = vadd.f32 0.0, %v2465
        %2467 = vdwg.mxu0
        %2468 = vmatpush.msra.mxu0 0.0
        %2469 = vmatpush.msra.mxu0 0.0
        %2470 = vmatpush.msra.mxu0 0.0
        %2471 = vmatpush.msra.mxu0 0.0
        %2472 = vmatpush.msra.mxu0 0.0
        %2473 = vmatpush.msra.mxu0 0.0
        %2474 = vmatpush.msra.mxu0 0.0
        %2475 = vmatpush.msra.mxu0 0.0
        %2476 = vmatpush.msra.mxu0 0.0
        %2477 = vmatpush.msra.mxu0 0.0
        %2478 = vmatpush.msra.mxu0 0.0
        %2479 = vmatpush.msra.mxu0 0.0
        %2480 = vmatpush.msra.mxu0 %v2342
        %2481 = vmatpush.msra.mxu0 %v2334
        %2482 = vmatpush.msra.mxu0 %v2326
        %2483 = vmatpush.msra.mxu0 %v2318
        %2484 = vmatmul.f32.gmra.mxu0 %v2346
        %v2485 = vpop.f32.mrf.mxu0
        %v2486 = vadd.f32 0.0, %v2485
        %2487 = vdwg.mxu0
        %2488 = vmatpush.msra.mxu0 0.0
        %2489 = vmatpush.msra.mxu0 0.0
        %2490 = vmatpush.msra.mxu0 0.0
        %2491 = vmatpush.msra.mxu0 0.0
        %2492 = vmatpush.msra.mxu0 0.0
        %2493 = vmatpush.msra.mxu0 0.0
        %2494 = vmatpush.msra.mxu0 0.0
        %2495 = vmatpush.msra.mxu0 0.0
        %2496 = vmatpush.msra.mxu0 0.0
        %2497 = vmatpush.msra.mxu0 0.0
        %2498 = vmatpush.msra.mxu0 0.0
        %2499 = vmatpush.msra.mxu0 0.0
        %2500 = vmatpush.msra.mxu0 %v2343
        %2501 = vmatpush.msra.mxu0 %v2335
        %2502 = vmatpush.msra.mxu0 %v2327
        %2503 = vmatpush.msra.mxu0 %v2319
        %2504 = vmatmul.f32.gmra.mxu0 %v2346
        %v2505 = vpop.f32.mrf.mxu0
        %v2506 = vadd.f32 0.0, %v2505
        %2507 = vdwg.mxu0
        %v2508 = vld [vmem:[%s1] sm:$0xf]
        %2510 = vset.pattern.permute.xlu0 0
        %2511 = vperm.xlu0 %2510, %v2508
        %v2512 = vpop.permute.xlu0 %2511
        %v2514 = vmul.f32 %v2366, %v2512
        %v2515 = vmul.f32 %v2386, %v2512
        %v2516 = vmul.f32 %v2406, %v2512
        %v2517 = vmul.f32 %v2426, %v2512
        %v2518 = vmul.f32 %v2446, %v2512
        %v2519 = vmul.f32 %v2466, %v2512
        %v2520 = vmul.f32 %v2486, %v2512
        %v2521 = vmul.f32 %v2506, %v2512
        %2522 = vset.pattern.permute.xlu0 1
        %2523 = vperm.xlu0 %2522, %v2508
        %v2524 = vpop.permute.xlu0 %2523
        %v2526 = vadd.f32 %v2514, %v2524
        %v2527 = vadd.f32 %v2515, %v2524
        %v2528 = vadd.f32 %v2516, %v2524
        %v2529 = vadd.f32 %v2517, %v2524
        %v2530 = vadd.f32 %v2518, %v2524
        %v2531 = vadd.f32 %v2519, %v2524
        %v2532 = vadd.f32 %v2520, %v2524
        %v2533 = vadd.f32 %v2521, %v2524
        %v2534 = vmax.f32 %v2526, 0.0
        %v2535 = vmax.f32 %v2527, 0.0
        %v2536 = vmax.f32 %v2528, 0.0
        %v2537 = vmax.f32 %v2529, 0.0
        %v2538 = vmax.f32 %v2530, 0.0
        %v2539 = vmax.f32 %v2531, 0.0
        %v2540 = vmax.f32 %v2532, 0.0
        %v2541 = vmax.f32 %v2533, 0.0
        %2542 = vst [vmem:[#allocation3 + $0x340] sm:$0xf0] 0.0
        %2543 = vst [vmem:[#allocation3 + $0x348] sm:$0xf0] 0.0
        %2544 = vst [vmem:[#allocation3 + $0x350] sm:$0xf0] 0.0
        %2545 = vst [vmem:[#allocation3 + $0x358] sm:$0xf0] 0.0
        %2546 = vst [vmem:[#allocation3 + $0x360] sm:$0xf0] 0.0
        %2547 = vst [vmem:[#allocation3 + $0x368] sm:$0xf0] 0.0
        %2548 = vst [vmem:[#allocation3 + $0x370] sm:$0xf0] 0.0
        %2549 = vst [vmem:[#allocation3 + $0x378] sm:$0xf0] 0.0
        %2550 = vst [vmem:[#allocation3 + $0x380] sm:$0xff] 0.0
        %2551 = vst [vmem:[#allocation3 + $0x388] sm:$0xff] 0.0
        %2552 = vst [vmem:[#allocation3 + $0x390] sm:$0xff] 0.0
        %2553 = vst [vmem:[#allocation3 + $0x398] sm:$0xff] 0.0
        %2554 = vst [vmem:[#allocation3 + $0x3a0] sm:$0xff] 0.0
        %2555 = vst [vmem:[#allocation3 + $0x3a8] sm:$0xff] 0.0
        %2556 = vst [vmem:[#allocation3 + $0x3b0] sm:$0xff] 0.0
        %2557 = vst [vmem:[#allocation3 + $0x3b8] sm:$0xff] 0.0
        %2558 = vst [vmem:[#allocation3 + $0x3c0] sm:$0xff] 0.0
        %2559 = vst [vmem:[#allocation3 + $0x3c8] sm:$0xff] 0.0
        %2560 = vst [vmem:[#allocation3 + $0x3d0] sm:$0xff] 0.0
        %2561 = vst [vmem:[#allocation3 + $0x3d8] sm:$0xff] 0.0
        %2562 = vst [vmem:[#allocation3 + $0x3e0] sm:$0xff] 0.0
        %2563 = vst [vmem:[#allocation3 + $0x3e8] sm:$0xff] 0.0
        %2564 = vst [vmem:[#allocation3 + $0x3f0] sm:$0xff] 0.0
        %2565 = vst [vmem:[#allocation3 + $0x3f8] sm:$0xff] 0.0
        %2566 = vrot.lane.b32.xlu0 %v2534, 73
        %v2567 = vpop.permute.xlu0 %2566
        %2568 = vrot.lane.b32.xlu0 %v2535, 73
        %v2569 = vpop.permute.xlu0 %2568
        %2570 = vrot.lane.b32.xlu0 %v2536, 73
        %v2571 = vpop.permute.xlu0 %2570
        %2572 = vrot.lane.b32.xlu0 %v2537, 73
        %v2573 = vpop.permute.xlu0 %2572
        %2574 = vrot.lane.b32.xlu0 %v2538, 73
        %v2575 = vpop.permute.xlu0 %2574
        %2576 = vrot.lane.b32.xlu0 %v2539, 73
        %v2577 = vpop.permute.xlu0 %2576
        %2578 = vrot.lane.b32.xlu0 %v2540, 73
        %v2579 = vpop.permute.xlu0 %2578
        %2580 = vrot.lane.b32.xlu0 %v2541, 73
        %v2581 = vpop.permute.xlu0 %2580
        %v2582 = vsel %vm464, %v2579, %v2581
        %v2583 = vsel %vm464, %v2577, %v2579
        %v2584 = vsel %vm464, %v2575, %v2577
        %v2585 = vsel %vm464, %v2573, %v2575
        %v2586 = vsel %vm464, %v2571, %v2573
        %v2587 = vsel %vm464, %v2569, %v2571
        %v2588 = vsel %vm464, %v2567, %v2569
        %v2589 = vsel %vm464, %v2581, %v2567
        %v2590 = vld [vmem:[#allocation5] ss:$8 sm:$0xf]
        %v2591 = vld [vmem:[#allocation5] ss:$8 sm:$0xf0]
        %v2592 = vor.u32 %v2590, %v2591
        %v2594 = vperm.slane %v2592, 0
        %v2595 = vperm.slane %v2592, 1
        %v2596 = vperm.slane %v2592, 2
        %v2597 = vperm.slane %v2592, 3
        %v2598 = vperm.slane %v2592, 4
        %v2599 = vperm.slane %v2592, 5
        %v2600 = vperm.slane %v2592, 6
        %v2601 = vperm.slane %v2592, 7
        %v2610 = vmul.f32 %v2589, %v2594
        %v2611 = vmul.f32 %v2588, %v2595
        %v2612 = vmul.f32 %v2587, %v2596
        %v2613 = vmul.f32 %v2586, %v2597
        %v2614 = vmul.f32 %v2585, %v2598
        %v2615 = vmul.f32 %v2584, %v2599
        %v2616 = vmul.f32 %v2583, %v2600
        %v2617 = vmul.f32 %v2582, %v2601
        %2618 = vst [vmem:[#allocation3] sm:$0xf] %v2610
        %2619 = vst [vmem:[#allocation3 + $0x8] sm:$0xf] %v2611
        %2620 = vst [vmem:[#allocation3 + $0x10] sm:$0xf] %v2612
        %2621 = vst [vmem:[#allocation3 + $0x18] sm:$0xf] %v2613
        %2622 = vst [vmem:[#allocation3 + $0x20] sm:$0xf] %v2614
        %2623 = vst [vmem:[#allocation3 + $0x28] sm:$0xf] %v2615
        %2624 = vst [vmem:[#allocation3 + $0x30] sm:$0xf] %v2616
        %2625 = vst [vmem:[#allocation3 + $0x38] sm:$0xf] %v2617
        %2626 = vrot.lane.b32.xlu0 %v2534, 72
        %v2627 = vpop.permute.xlu0 %2626
        %2628 = vrot.lane.b32.xlu0 %v2535, 72
        %v2629 = vpop.permute.xlu0 %2628
        %2630 = vrot.lane.b32.xlu0 %v2536, 72
        %v2631 = vpop.permute.xlu0 %2630
        %2632 = vrot.lane.b32.xlu0 %v2537, 72
        %v2633 = vpop.permute.xlu0 %2632
        %2634 = vrot.lane.b32.xlu0 %v2538, 72
        %v2635 = vpop.permute.xlu0 %2634
        %2636 = vrot.lane.b32.xlu0 %v2539, 72
        %v2637 = vpop.permute.xlu0 %2636
        %2638 = vrot.lane.b32.xlu0 %v2540, 72
        %v2639 = vpop.permute.xlu0 %2638
        %2640 = vrot.lane.b32.xlu0 %v2541, 72
        %v2641 = vpop.permute.xlu0 %2640
        %v2642 = vsel %vm549, %v2639, %v2641
        %v2643 = vsel %vm549, %v2637, %v2639
        %v2644 = vsel %vm549, %v2635, %v2637
        %v2645 = vsel %vm549, %v2633, %v2635
        %v2646 = vsel %vm549, %v2631, %v2633
        %v2647 = vsel %vm549, %v2629, %v2631
        %v2648 = vsel %vm549, %v2627, %v2629
        %v2649 = vsel %vm549, %v2641, %v2627
        %v2650 = vld [vmem:[%s558] ss:$8 sm:$0xf]
        %v2651 = vld [vmem:[%s558] ss:$8 sm:$0xf0]
        %v2652 = vor.u32 %v2650, %v2651
        %v2654 = vperm.slane %v2652, 0
        %v2655 = vperm.slane %v2652, 1
        %v2656 = vperm.slane %v2652, 2
        %v2657 = vperm.slane %v2652, 3
        %v2658 = vperm.slane %v2652, 4
        %v2659 = vperm.slane %v2652, 5
        %v2660 = vperm.slane %v2652, 6
        %v2661 = vperm.slane %v2652, 7
        %v2670 = vmul.f32 %v2649, %v2654
        %v2671 = vmul.f32 %v2648, %v2655
        %v2672 = vmul.f32 %v2647, %v2656
        %v2673 = vmul.f32 %v2646, %v2657
        %v2674 = vmul.f32 %v2645, %v2658
        %v2675 = vmul.f32 %v2644, %v2659
        %v2676 = vmul.f32 %v2643, %v2660
        %v2677 = vmul.f32 %v2642, %v2661
        %v2686 = vrot.slane %v2670, 4
        %v2687 = vrot.slane %v2671, 4
        %v2688 = vrot.slane %v2672, 4
        %v2689 = vrot.slane %v2673, 4
        %v2690 = vrot.slane %v2674, 4
        %v2691 = vrot.slane %v2675, 4
        %v2692 = vrot.slane %v2676, 4
        %v2693 = vrot.slane %v2677, 4
        %2702 = vst [vmem:[#allocation3] sm:$0xf0] %v2686
        %2703 = vst [vmem:[#allocation3 + $0x8] sm:$0xf0] %v2687
        %2704 = vst [vmem:[#allocation3 + $0x10] sm:$0xf0] %v2688
        %2705 = vst [vmem:[#allocation3 + $0x18] sm:$0xf0] %v2689
        %2706 = vst [vmem:[#allocation3 + $0x20] sm:$0xf0] %v2690
        %2707 = vst [vmem:[#allocation3 + $0x28] sm:$0xf0] %v2691
        %2708 = vst [vmem:[#allocation3 + $0x30] sm:$0xf0] %v2692
        %2709 = vst [vmem:[#allocation3 + $0x38] sm:$0xf0] %v2693
        %2710 = vrot.lane.b32.xlu0 %v2534, 71
        %v2711 = vpop.permute.xlu0 %2710
        %2712 = vrot.lane.b32.xlu0 %v2535, 71
        %v2713 = vpop.permute.xlu0 %2712
        %2714 = vrot.lane.b32.xlu0 %v2536, 71
        %v2715 = vpop.permute.xlu0 %2714
        %2716 = vrot.lane.b32.xlu0 %v2537, 71
        %v2717 = vpop.permute.xlu0 %2716
        %2718 = vrot.lane.b32.xlu0 %v2538, 71
        %v2719 = vpop.permute.xlu0 %2718
        %2720 = vrot.lane.b32.xlu0 %v2539, 71
        %v2721 = vpop.permute.xlu0 %2720
        %2722 = vrot.lane.b32.xlu0 %v2540, 71
        %v2723 = vpop.permute.xlu0 %2722
        %2724 = vrot.lane.b32.xlu0 %v2541, 71
        %v2725 = vpop.permute.xlu0 %2724
        %v2726 = vsel %vm629, %v2723, %v2725
        %v2727 = vsel %vm629, %v2721, %v2723
        %v2728 = vsel %vm629, %v2719, %v2721
        %v2729 = vsel %vm629, %v2717, %v2719
        %v2730 = vsel %vm629, %v2715, %v2717
        %v2731 = vsel %vm629, %v2713, %v2715
        %v2732 = vsel %vm629, %v2711, %v2713
        %v2733 = vsel %vm629, %v2725, %v2711
        %v2734 = vld [vmem:[%s638] ss:$8 sm:$0xf]
        %v2735 = vld [vmem:[%s638] ss:$8 sm:$0xf0]
        %v2736 = vor.u32 %v2734, %v2735
        %v2738 = vperm.slane %v2736, 0
        %v2739 = vperm.slane %v2736, 1
        %v2740 = vperm.slane %v2736, 2
        %v2741 = vperm.slane %v2736, 3
        %v2742 = vperm.slane %v2736, 4
        %v2743 = vperm.slane %v2736, 5
        %v2744 = vperm.slane %v2736, 6
        %v2745 = vperm.slane %v2736, 7
        %v2754 = vmul.f32 %v2733, %v2738
        %v2755 = vmul.f32 %v2732, %v2739
        %v2756 = vmul.f32 %v2731, %v2740
        %v2757 = vmul.f32 %v2730, %v2741
        %v2758 = vmul.f32 %v2729, %v2742
        %v2759 = vmul.f32 %v2728, %v2743
        %v2760 = vmul.f32 %v2727, %v2744
        %v2761 = vmul.f32 %v2726, %v2745
        %2762 = vst [vmem:[#allocation3 + $0x40] sm:$0xf] %v2754
        %2763 = vst [vmem:[#allocation3 + $0x48] sm:$0xf] %v2755
        %2764 = vst [vmem:[#allocation3 + $0x50] sm:$0xf] %v2756
        %2765 = vst [vmem:[#allocation3 + $0x58] sm:$0xf] %v2757
        %2766 = vst [vmem:[#allocation3 + $0x60] sm:$0xf] %v2758
        %2767 = vst [vmem:[#allocation3 + $0x68] sm:$0xf] %v2759
        %2768 = vst [vmem:[#allocation3 + $0x70] sm:$0xf] %v2760
        %2769 = vst [vmem:[#allocation3 + $0x78] sm:$0xf] %v2761
        %2770 = vrot.lane.b32.xlu0 %v2534, 65
        %v2771 = vpop.permute.xlu0 %2770
        %2772 = vrot.lane.b32.xlu0 %v2535, 65
        %v2773 = vpop.permute.xlu0 %2772
        %2774 = vrot.lane.b32.xlu0 %v2536, 65
        %v2775 = vpop.permute.xlu0 %2774
        %2776 = vrot.lane.b32.xlu0 %v2537, 65
        %v2777 = vpop.permute.xlu0 %2776
        %2778 = vrot.lane.b32.xlu0 %v2538, 65
        %v2779 = vpop.permute.xlu0 %2778
        %2780 = vrot.lane.b32.xlu0 %v2539, 65
        %v2781 = vpop.permute.xlu0 %2780
        %2782 = vrot.lane.b32.xlu0 %v2540, 65
        %v2783 = vpop.permute.xlu0 %2782
        %2784 = vrot.lane.b32.xlu0 %v2541, 65
        %v2785 = vpop.permute.xlu0 %2784
        %v2786 = vsel %vm709, %v2783, %v2785
        %v2787 = vsel %vm709, %v2781, %v2783
        %v2788 = vsel %vm709, %v2779, %v2781
        %v2789 = vsel %vm709, %v2777, %v2779
        %v2790 = vsel %vm709, %v2775, %v2777
        %v2791 = vsel %vm709, %v2773, %v2775
        %v2792 = vsel %vm709, %v2771, %v2773
        %v2793 = vsel %vm709, %v2785, %v2771
        %v2794 = vld [vmem:[%s718] ss:$8 sm:$0xf]
        %v2795 = vld [vmem:[%s718] ss:$8 sm:$0xf0]
        %v2796 = vor.u32 %v2794, %v2795
        %v2798 = vperm.slane %v2796, 0
        %v2799 = vperm.slane %v2796, 1
        %v2800 = vperm.slane %v2796, 2
        %v2801 = vperm.slane %v2796, 3
        %v2802 = vperm.slane %v2796, 4
        %v2803 = vperm.slane %v2796, 5
        %v2804 = vperm.slane %v2796, 6
        %v2805 = vperm.slane %v2796, 7
        %v2814 = vmul.f32 %v2793, %v2798
        %v2815 = vmul.f32 %v2792, %v2799
        %v2816 = vmul.f32 %v2791, %v2800
        %v2817 = vmul.f32 %v2790, %v2801
        %v2818 = vmul.f32 %v2789, %v2802
        %v2819 = vmul.f32 %v2788, %v2803
        %v2820 = vmul.f32 %v2787, %v2804
        %v2821 = vmul.f32 %v2786, %v2805
        %v2830 = vrot.slane %v2814, 4
        %v2831 = vrot.slane %v2815, 4
        %v2832 = vrot.slane %v2816, 4
        %v2833 = vrot.slane %v2817, 4
        %v2834 = vrot.slane %v2818, 4
        %v2835 = vrot.slane %v2819, 4
        %v2836 = vrot.slane %v2820, 4
        %v2837 = vrot.slane %v2821, 4
        %2846 = vst [vmem:[#allocation3 + $0x40] sm:$0xf0] %v2830
        %2847 = vst [vmem:[#allocation3 + $0x48] sm:$0xf0] %v2831
        %2848 = vst [vmem:[#allocation3 + $0x50] sm:$0xf0] %v2832
        %2849 = vst [vmem:[#allocation3 + $0x58] sm:$0xf0] %v2833
        %2850 = vst [vmem:[#allocation3 + $0x60] sm:$0xf0] %v2834
        %2851 = vst [vmem:[#allocation3 + $0x68] sm:$0xf0] %v2835
        %2852 = vst [vmem:[#allocation3 + $0x70] sm:$0xf0] %v2836
        %2853 = vst [vmem:[#allocation3 + $0x78] sm:$0xf0] %v2837
        %2854 = vrot.lane.b32.xlu0 %v2534, 64
        %v2855 = vpop.permute.xlu0 %2854
        %2856 = vrot.lane.b32.xlu0 %v2535, 64
        %v2857 = vpop.permute.xlu0 %2856
        %2858 = vrot.lane.b32.xlu0 %v2536, 64
        %v2859 = vpop.permute.xlu0 %2858
        %2860 = vrot.lane.b32.xlu0 %v2537, 64
        %v2861 = vpop.permute.xlu0 %2860
        %2862 = vrot.lane.b32.xlu0 %v2538, 64
        %v2863 = vpop.permute.xlu0 %2862
        %2864 = vrot.lane.b32.xlu0 %v2539, 64
        %v2865 = vpop.permute.xlu0 %2864
        %2866 = vrot.lane.b32.xlu0 %v2540, 64
        %v2867 = vpop.permute.xlu0 %2866
        %2868 = vrot.lane.b32.xlu0 %v2541, 64
        %v2869 = vpop.permute.xlu0 %2868
        %v2870 = vsel %vm789, %v2867, %v2869
        %v2871 = vsel %vm789, %v2865, %v2867
        %v2872 = vsel %vm789, %v2863, %v2865
        %v2873 = vsel %vm789, %v2861, %v2863
        %v2874 = vsel %vm789, %v2859, %v2861
        %v2875 = vsel %vm789, %v2857, %v2859
        %v2876 = vsel %vm789, %v2855, %v2857
        %v2877 = vsel %vm789, %v2869, %v2855
        %v2878 = vld [vmem:[%s798] ss:$8 sm:$0xf]
        %v2879 = vld [vmem:[%s798] ss:$8 sm:$0xf0]
        %v2880 = vor.u32 %v2878, %v2879
        %v2882 = vperm.slane %v2880, 0
        %v2883 = vperm.slane %v2880, 1
        %v2884 = vperm.slane %v2880, 2
        %v2885 = vperm.slane %v2880, 3
        %v2886 = vperm.slane %v2880, 4
        %v2887 = vperm.slane %v2880, 5
        %v2888 = vperm.slane %v2880, 6
        %v2889 = vperm.slane %v2880, 7
        %v2898 = vmul.f32 %v2877, %v2882
        %v2899 = vmul.f32 %v2876, %v2883
        %v2900 = vmul.f32 %v2875, %v2884
        %v2901 = vmul.f32 %v2874, %v2885
        %v2902 = vmul.f32 %v2873, %v2886
        %v2903 = vmul.f32 %v2872, %v2887
        %v2904 = vmul.f32 %v2871, %v2888
        %v2905 = vmul.f32 %v2870, %v2889
        %2906 = vst [vmem:[#allocation3 + $0x80] sm:$0xf] %v2898
        %2907 = vst [vmem:[#allocation3 + $0x88] sm:$0xf] %v2899
        %2908 = vst [vmem:[#allocation3 + $0x90] sm:$0xf] %v2900
        %2909 = vst [vmem:[#allocation3 + $0x98] sm:$0xf] %v2901
        %2910 = vst [vmem:[#allocation3 + $0xa0] sm:$0xf] %v2902
        %2911 = vst [vmem:[#allocation3 + $0xa8] sm:$0xf] %v2903
        %2912 = vst [vmem:[#allocation3 + $0xb0] sm:$0xf] %v2904
        %2913 = vst [vmem:[#allocation3 + $0xb8] sm:$0xf] %v2905
        %2914 = vrot.lane.b32.xlu0 %v2534, 63
        %v2915 = vpop.permute.xlu0 %2914
        %2916 = vrot.lane.b32.xlu0 %v2535, 63
        %v2917 = vpop.permute.xlu0 %2916
        %2918 = vrot.lane.b32.xlu0 %v2536, 63
        %v2919 = vpop.permute.xlu0 %2918
        %2920 = vrot.lane.b32.xlu0 %v2537, 63
        %v2921 = vpop.permute.xlu0 %2920
        %2922 = vrot.lane.b32.xlu0 %v2538, 63
        %v2923 = vpop.permute.xlu0 %2922
        %2924 = vrot.lane.b32.xlu0 %v2539, 63
        %v2925 = vpop.permute.xlu0 %2924
        %2926 = vrot.lane.b32.xlu0 %v2540, 63
        %v2927 = vpop.permute.xlu0 %2926
        %2928 = vrot.lane.b32.xlu0 %v2541, 63
        %v2929 = vpop.permute.xlu0 %2928
        %v2930 = vsel %vm869, %v2927, %v2929
        %v2931 = vsel %vm869, %v2925, %v2927
        %v2932 = vsel %vm869, %v2923, %v2925
        %v2933 = vsel %vm869, %v2921, %v2923
        %v2934 = vsel %vm869, %v2919, %v2921
        %v2935 = vsel %vm869, %v2917, %v2919
        %v2936 = vsel %vm869, %v2915, %v2917
        %v2937 = vsel %vm869, %v2929, %v2915
        %v2938 = vld [vmem:[%s878] ss:$8 sm:$0xf]
        %v2939 = vld [vmem:[%s878] ss:$8 sm:$0xf0]
        %v2940 = vor.u32 %v2938, %v2939
        %v2942 = vperm.slane %v2940, 0
        %v2943 = vperm.slane %v2940, 1
        %v2944 = vperm.slane %v2940, 2
        %v2945 = vperm.slane %v2940, 3
        %v2946 = vperm.slane %v2940, 4
        %v2947 = vperm.slane %v2940, 5
        %v2948 = vperm.slane %v2940, 6
        %v2949 = vperm.slane %v2940, 7
        %v2958 = vmul.f32 %v2937, %v2942
        %v2959 = vmul.f32 %v2936, %v2943
        %v2960 = vmul.f32 %v2935, %v2944
        %v2961 = vmul.f32 %v2934, %v2945
        %v2962 = vmul.f32 %v2933, %v2946
        %v2963 = vmul.f32 %v2932, %v2947
        %v2964 = vmul.f32 %v2931, %v2948
        %v2965 = vmul.f32 %v2930, %v2949
        %v2974 = vrot.slane %v2958, 4
        %v2975 = vrot.slane %v2959, 4
        %v2976 = vrot.slane %v2960, 4
        %v2977 = vrot.slane %v2961, 4
        %v2978 = vrot.slane %v2962, 4
        %v2979 = vrot.slane %v2963, 4
        %v2980 = vrot.slane %v2964, 4
        %v2981 = vrot.slane %v2965, 4
        %2990 = vst [vmem:[#allocation3 + $0x80] sm:$0xf0] %v2974
        %2991 = vst [vmem:[#allocation3 + $0x88] sm:$0xf0] %v2975
        %2992 = vst [vmem:[#allocation3 + $0x90] sm:$0xf0] %v2976
        %2993 = vst [vmem:[#allocation3 + $0x98] sm:$0xf0] %v2977
        %2994 = vst [vmem:[#allocation3 + $0xa0] sm:$0xf0] %v2978
        %2995 = vst [vmem:[#allocation3 + $0xa8] sm:$0xf0] %v2979
        %2996 = vst [vmem:[#allocation3 + $0xb0] sm:$0xf0] %v2980
        %2997 = vst [vmem:[#allocation3 + $0xb8] sm:$0xf0] %v2981
        %2998 = vrot.lane.b32.xlu0 %v2534, 57
        %v2999 = vpop.permute.xlu0 %2998
        %3000 = vrot.lane.b32.xlu0 %v2535, 57
        %v3001 = vpop.permute.xlu0 %3000
        %3002 = vrot.lane.b32.xlu0 %v2536, 57
        %v3003 = vpop.permute.xlu0 %3002
        %3004 = vrot.lane.b32.xlu0 %v2537, 57
        %v3005 = vpop.permute.xlu0 %3004
        %3006 = vrot.lane.b32.xlu0 %v2538, 57
        %v3007 = vpop.permute.xlu0 %3006
        %3008 = vrot.lane.b32.xlu0 %v2539, 57
        %v3009 = vpop.permute.xlu0 %3008
        %3010 = vrot.lane.b32.xlu0 %v2540, 57
        %v3011 = vpop.permute.xlu0 %3010
        %3012 = vrot.lane.b32.xlu0 %v2541, 57
        %v3013 = vpop.permute.xlu0 %3012
        %v3014 = vsel %vm949, %v3011, %v3013
        %v3015 = vsel %vm949, %v3009, %v3011
        %v3016 = vsel %vm949, %v3007, %v3009
        %v3017 = vsel %vm949, %v3005, %v3007
        %v3018 = vsel %vm949, %v3003, %v3005
        %v3019 = vsel %vm949, %v3001, %v3003
        %v3020 = vsel %vm949, %v2999, %v3001
        %v3021 = vsel %vm949, %v3013, %v2999
        %v3022 = vld [vmem:[%s958] ss:$8 sm:$0xf]
        %v3023 = vld [vmem:[%s958] ss:$8 sm:$0xf0]
        %v3024 = vor.u32 %v3022, %v3023
        %v3026 = vperm.slane %v3024, 0
        %v3027 = vperm.slane %v3024, 1
        %v3028 = vperm.slane %v3024, 2
        %v3029 = vperm.slane %v3024, 3
        %v3030 = vperm.slane %v3024, 4
        %v3031 = vperm.slane %v3024, 5
        %v3032 = vperm.slane %v3024, 6
        %v3033 = vperm.slane %v3024, 7
        %v3042 = vmul.f32 %v3021, %v3026
        %v3043 = vmul.f32 %v3020, %v3027
        %v3044 = vmul.f32 %v3019, %v3028
        %v3045 = vmul.f32 %v3018, %v3029
        %v3046 = vmul.f32 %v3017, %v3030
        %v3047 = vmul.f32 %v3016, %v3031
        %v3048 = vmul.f32 %v3015, %v3032
        %v3049 = vmul.f32 %v3014, %v3033
        %3050 = vst [vmem:[#allocation3 + $0xc0] sm:$0xf] %v3042
        %3051 = vst [vmem:[#allocation3 + $0xc8] sm:$0xf] %v3043
        %3052 = vst [vmem:[#allocation3 + $0xd0] sm:$0xf] %v3044
        %3053 = vst [vmem:[#allocation3 + $0xd8] sm:$0xf] %v3045
        %3054 = vst [vmem:[#allocation3 + $0xe0] sm:$0xf] %v3046
        %3055 = vst [vmem:[#allocation3 + $0xe8] sm:$0xf] %v3047
        %3056 = vst [vmem:[#allocation3 + $0xf0] sm:$0xf] %v3048
        %3057 = vst [vmem:[#allocation3 + $0xf8] sm:$0xf] %v3049
        %3058 = vrot.lane.b32.xlu0 %v2534, 56
        %v3059 = vpop.permute.xlu0 %3058
        %3060 = vrot.lane.b32.xlu0 %v2535, 56
        %v3061 = vpop.permute.xlu0 %3060
        %3062 = vrot.lane.b32.xlu0 %v2536, 56
        %v3063 = vpop.permute.xlu0 %3062
        %3064 = vrot.lane.b32.xlu0 %v2537, 56
        %v3065 = vpop.permute.xlu0 %3064
        %3066 = vrot.lane.b32.xlu0 %v2538, 56
        %v3067 = vpop.permute.xlu0 %3066
        %3068 = vrot.lane.b32.xlu0 %v2539, 56
        %v3069 = vpop.permute.xlu0 %3068
        %3070 = vrot.lane.b32.xlu0 %v2540, 56
        %v3071 = vpop.permute.xlu0 %3070
        %3072 = vrot.lane.b32.xlu0 %v2541, 56
        %v3073 = vpop.permute.xlu0 %3072
        %v3074 = vsel %vm1029, %v3071, %v3073
        %v3075 = vsel %vm1029, %v3069, %v3071
        %v3076 = vsel %vm1029, %v3067, %v3069
        %v3077 = vsel %vm1029, %v3065, %v3067
        %v3078 = vsel %vm1029, %v3063, %v3065
        %v3079 = vsel %vm1029, %v3061, %v3063
        %v3080 = vsel %vm1029, %v3059, %v3061
        %v3081 = vsel %vm1029, %v3073, %v3059
        %v3082 = vld [vmem:[%s1038] ss:$8 sm:$0xf]
        %v3083 = vld [vmem:[%s1038] ss:$8 sm:$0xf0]
        %v3084 = vor.u32 %v3082, %v3083
        %v3086 = vperm.slane %v3084, 0
        %v3087 = vperm.slane %v3084, 1
        %v3088 = vperm.slane %v3084, 2
        %v3089 = vperm.slane %v3084, 3
        %v3090 = vperm.slane %v3084, 4
        %v3091 = vperm.slane %v3084, 5
        %v3092 = vperm.slane %v3084, 6
        %v3093 = vperm.slane %v3084, 7
        %v3102 = vmul.f32 %v3081, %v3086
        %v3103 = vmul.f32 %v3080, %v3087
        %v3104 = vmul.f32 %v3079, %v3088
        %v3105 = vmul.f32 %v3078, %v3089
        %v3106 = vmul.f32 %v3077, %v3090
        %v3107 = vmul.f32 %v3076, %v3091
        %v3108 = vmul.f32 %v3075, %v3092
        %v3109 = vmul.f32 %v3074, %v3093
        %v3118 = vrot.slane %v3102, 4
        %v3119 = vrot.slane %v3103, 4
        %v3120 = vrot.slane %v3104, 4
        %v3121 = vrot.slane %v3105, 4
        %v3122 = vrot.slane %v3106, 4
        %v3123 = vrot.slane %v3107, 4
        %v3124 = vrot.slane %v3108, 4
        %v3125 = vrot.slane %v3109, 4
        %3134 = vst [vmem:[#allocation3 + $0xc0] sm:$0xf0] %v3118
        %3135 = vst [vmem:[#allocation3 + $0xc8] sm:$0xf0] %v3119
        %3136 = vst [vmem:[#allocation3 + $0xd0] sm:$0xf0] %v3120
        %3137 = vst [vmem:[#allocation3 + $0xd8] sm:$0xf0] %v3121
        %3138 = vst [vmem:[#allocation3 + $0xe0] sm:$0xf0] %v3122
        %3139 = vst [vmem:[#allocation3 + $0xe8] sm:$0xf0] %v3123
        %3140 = vst [vmem:[#allocation3 + $0xf0] sm:$0xf0] %v3124
        %3141 = vst [vmem:[#allocation3 + $0xf8] sm:$0xf0] %v3125
        %3142 = vrot.lane.b32.xlu0 %v2534, 55
        %v3143 = vpop.permute.xlu0 %3142
        %3144 = vrot.lane.b32.xlu0 %v2535, 55
        %v3145 = vpop.permute.xlu0 %3144
        %3146 = vrot.lane.b32.xlu0 %v2536, 55
        %v3147 = vpop.permute.xlu0 %3146
        %3148 = vrot.lane.b32.xlu0 %v2537, 55
        %v3149 = vpop.permute.xlu0 %3148
        %3150 = vrot.lane.b32.xlu0 %v2538, 55
        %v3151 = vpop.permute.xlu0 %3150
        %3152 = vrot.lane.b32.xlu0 %v2539, 55
        %v3153 = vpop.permute.xlu0 %3152
        %3154 = vrot.lane.b32.xlu0 %v2540, 55
        %v3155 = vpop.permute.xlu0 %3154
        %3156 = vrot.lane.b32.xlu0 %v2541, 55
        %v3157 = vpop.permute.xlu0 %3156
        %v3158 = vsel %vm1109, %v3155, %v3157
        %v3159 = vsel %vm1109, %v3153, %v3155
        %v3160 = vsel %vm1109, %v3151, %v3153
        %v3161 = vsel %vm1109, %v3149, %v3151
        %v3162 = vsel %vm1109, %v3147, %v3149
        %v3163 = vsel %vm1109, %v3145, %v3147
        %v3164 = vsel %vm1109, %v3143, %v3145
        %v3165 = vsel %vm1109, %v3157, %v3143
        %v3166 = vld [vmem:[%s1118] ss:$8 sm:$0xf]
        %v3167 = vld [vmem:[%s1118] ss:$8 sm:$0xf0]
        %v3168 = vor.u32 %v3166, %v3167
        %v3170 = vperm.slane %v3168, 0
        %v3171 = vperm.slane %v3168, 1
        %v3172 = vperm.slane %v3168, 2
        %v3173 = vperm.slane %v3168, 3
        %v3174 = vperm.slane %v3168, 4
        %v3175 = vperm.slane %v3168, 5
        %v3176 = vperm.slane %v3168, 6
        %v3177 = vperm.slane %v3168, 7
        %v3186 = vmul.f32 %v3165, %v3170
        %v3187 = vmul.f32 %v3164, %v3171
        %v3188 = vmul.f32 %v3163, %v3172
        %v3189 = vmul.f32 %v3162, %v3173
        %v3190 = vmul.f32 %v3161, %v3174
        %v3191 = vmul.f32 %v3160, %v3175
        %v3192 = vmul.f32 %v3159, %v3176
        %v3193 = vmul.f32 %v3158, %v3177
        %3194 = vst [vmem:[#allocation3 + $0x100] sm:$0xf] %v3186
        %3195 = vst [vmem:[#allocation3 + $0x108] sm:$0xf] %v3187
        %3196 = vst [vmem:[#allocation3 + $0x110] sm:$0xf] %v3188
        %3197 = vst [vmem:[#allocation3 + $0x118] sm:$0xf] %v3189
        %3198 = vst [vmem:[#allocation3 + $0x120] sm:$0xf] %v3190
        %3199 = vst [vmem:[#allocation3 + $0x128] sm:$0xf] %v3191
        %3200 = vst [vmem:[#allocation3 + $0x130] sm:$0xf] %v3192
        %3201 = vst [vmem:[#allocation3 + $0x138] sm:$0xf] %v3193
        %3202 = vrot.lane.b32.xlu0 %v2534, 9
        %v3203 = vpop.permute.xlu0 %3202
        %3204 = vrot.lane.b32.xlu0 %v2535, 9
        %v3205 = vpop.permute.xlu0 %3204
        %3206 = vrot.lane.b32.xlu0 %v2536, 9
        %v3207 = vpop.permute.xlu0 %3206
        %3208 = vrot.lane.b32.xlu0 %v2537, 9
        %v3209 = vpop.permute.xlu0 %3208
        %3210 = vrot.lane.b32.xlu0 %v2538, 9
        %v3211 = vpop.permute.xlu0 %3210
        %3212 = vrot.lane.b32.xlu0 %v2539, 9
        %v3213 = vpop.permute.xlu0 %3212
        %3214 = vrot.lane.b32.xlu0 %v2540, 9
        %v3215 = vpop.permute.xlu0 %3214
        %3216 = vrot.lane.b32.xlu0 %v2541, 9
        %v3217 = vpop.permute.xlu0 %3216
        %v3218 = vsel %vm1189, %v3215, %v3217
        %v3219 = vsel %vm1189, %v3213, %v3215
        %v3220 = vsel %vm1189, %v3211, %v3213
        %v3221 = vsel %vm1189, %v3209, %v3211
        %v3222 = vsel %vm1189, %v3207, %v3209
        %v3223 = vsel %vm1189, %v3205, %v3207
        %v3224 = vsel %vm1189, %v3203, %v3205
        %v3225 = vsel %vm1189, %v3217, %v3203
        %v3226 = vld [vmem:[%s1198] ss:$8 sm:$0xf]
        %v3227 = vld [vmem:[%s1198] ss:$8 sm:$0xf0]
        %v3228 = vor.u32 %v3226, %v3227
        %v3230 = vperm.slane %v3228, 0
        %v3231 = vperm.slane %v3228, 1
        %v3232 = vperm.slane %v3228, 2
        %v3233 = vperm.slane %v3228, 3
        %v3234 = vperm.slane %v3228, 4
        %v3235 = vperm.slane %v3228, 5
        %v3236 = vperm.slane %v3228, 6
        %v3237 = vperm.slane %v3228, 7
        %v3246 = vmul.f32 %v3225, %v3230
        %v3247 = vmul.f32 %v3224, %v3231
        %v3248 = vmul.f32 %v3223, %v3232
        %v3249 = vmul.f32 %v3222, %v3233
        %v3250 = vmul.f32 %v3221, %v3234
        %v3251 = vmul.f32 %v3220, %v3235
        %v3252 = vmul.f32 %v3219, %v3236
        %v3253 = vmul.f32 %v3218, %v3237
        %v3262 = vrot.slane %v3246, 4
        %v3263 = vrot.slane %v3247, 4
        %v3264 = vrot.slane %v3248, 4
        %v3265 = vrot.slane %v3249, 4
        %v3266 = vrot.slane %v3250, 4
        %v3267 = vrot.slane %v3251, 4
        %v3268 = vrot.slane %v3252, 4
        %v3269 = vrot.slane %v3253, 4
        %3278 = vst [vmem:[#allocation3 + $0x100] sm:$0xf0] %v3262
        %3279 = vst [vmem:[#allocation3 + $0x108] sm:$0xf0] %v3263
        %3280 = vst [vmem:[#allocation3 + $0x110] sm:$0xf0] %v3264
        %3281 = vst [vmem:[#allocation3 + $0x118] sm:$0xf0] %v3265
        %3282 = vst [vmem:[#allocation3 + $0x120] sm:$0xf0] %v3266
        %3283 = vst [vmem:[#allocation3 + $0x128] sm:$0xf0] %v3267
        %3284 = vst [vmem:[#allocation3 + $0x130] sm:$0xf0] %v3268
        %3285 = vst [vmem:[#allocation3 + $0x138] sm:$0xf0] %v3269
        %3286 = vrot.lane.b32.xlu0 %v2534, 8
        %v3287 = vpop.permute.xlu0 %3286
        %3288 = vrot.lane.b32.xlu0 %v2535, 8
        %v3289 = vpop.permute.xlu0 %3288
        %3290 = vrot.lane.b32.xlu0 %v2536, 8
        %v3291 = vpop.permute.xlu0 %3290
        %3292 = vrot.lane.b32.xlu0 %v2537, 8
        %v3293 = vpop.permute.xlu0 %3292
        %3294 = vrot.lane.b32.xlu0 %v2538, 8
        %v3295 = vpop.permute.xlu0 %3294
        %3296 = vrot.lane.b32.xlu0 %v2539, 8
        %v3297 = vpop.permute.xlu0 %3296
        %3298 = vrot.lane.b32.xlu0 %v2540, 8
        %v3299 = vpop.permute.xlu0 %3298
        %3300 = vrot.lane.b32.xlu0 %v2541, 8
        %v3301 = vpop.permute.xlu0 %3300
        %v3302 = vsel %vm1269, %v3299, %v3301
        %v3303 = vsel %vm1269, %v3297, %v3299
        %v3304 = vsel %vm1269, %v3295, %v3297
        %v3305 = vsel %vm1269, %v3293, %v3295
        %v3306 = vsel %vm1269, %v3291, %v3293
        %v3307 = vsel %vm1269, %v3289, %v3291
        %v3308 = vsel %vm1269, %v3287, %v3289
        %v3309 = vsel %vm1269, %v3301, %v3287
        %v3310 = vld [vmem:[%s1278] ss:$8 sm:$0xf]
        %v3311 = vld [vmem:[%s1278] ss:$8 sm:$0xf0]
        %v3312 = vor.u32 %v3310, %v3311
        %v3314 = vperm.slane %v3312, 0
        %v3315 = vperm.slane %v3312, 1
        %v3316 = vperm.slane %v3312, 2
        %v3317 = vperm.slane %v3312, 3
        %v3318 = vperm.slane %v3312, 4
        %v3319 = vperm.slane %v3312, 5
        %v3320 = vperm.slane %v3312, 6
        %v3321 = vperm.slane %v3312, 7
        %v3330 = vmul.f32 %v3309, %v3314
        %v3331 = vmul.f32 %v3308, %v3315
        %v3332 = vmul.f32 %v3307, %v3316
        %v3333 = vmul.f32 %v3306, %v3317
        %v3334 = vmul.f32 %v3305, %v3318
        %v3335 = vmul.f32 %v3304, %v3319
        %v3336 = vmul.f32 %v3303, %v3320
        %v3337 = vmul.f32 %v3302, %v3321
        %3338 = vst [vmem:[#allocation3 + $0x140] sm:$0xf] %v3330
        %3339 = vst [vmem:[#allocation3 + $0x148] sm:$0xf] %v3331
        %3340 = vst [vmem:[#allocation3 + $0x150] sm:$0xf] %v3332
        %3341 = vst [vmem:[#allocation3 + $0x158] sm:$0xf] %v3333
        %3342 = vst [vmem:[#allocation3 + $0x160] sm:$0xf] %v3334
        %3343 = vst [vmem:[#allocation3 + $0x168] sm:$0xf] %v3335
        %3344 = vst [vmem:[#allocation3 + $0x170] sm:$0xf] %v3336
        %3345 = vst [vmem:[#allocation3 + $0x178] sm:$0xf] %v3337
        %3346 = vrot.lane.b32.xlu0 %v2534, 7
        %v3347 = vpop.permute.xlu0 %3346
        %3348 = vrot.lane.b32.xlu0 %v2535, 7
        %v3349 = vpop.permute.xlu0 %3348
        %3350 = vrot.lane.b32.xlu0 %v2536, 7
        %v3351 = vpop.permute.xlu0 %3350
        %3352 = vrot.lane.b32.xlu0 %v2537, 7
        %v3353 = vpop.permute.xlu0 %3352
        %3354 = vrot.lane.b32.xlu0 %v2538, 7
        %v3355 = vpop.permute.xlu0 %3354
        %3356 = vrot.lane.b32.xlu0 %v2539, 7
        %v3357 = vpop.permute.xlu0 %3356
        %3358 = vrot.lane.b32.xlu0 %v2540, 7
        %v3359 = vpop.permute.xlu0 %3358
        %3360 = vrot.lane.b32.xlu0 %v2541, 7
        %v3361 = vpop.permute.xlu0 %3360
        %v3362 = vsel %vm1349, %v3359, %v3361
        %v3363 = vsel %vm1349, %v3357, %v3359
        %v3364 = vsel %vm1349, %v3355, %v3357
        %v3365 = vsel %vm1349, %v3353, %v3355
        %v3366 = vsel %vm1349, %v3351, %v3353
        %v3367 = vsel %vm1349, %v3349, %v3351
        %v3368 = vsel %vm1349, %v3347, %v3349
        %v3369 = vsel %vm1349, %v3361, %v3347
        %v3370 = vld [vmem:[%s1358] ss:$8 sm:$0xf]
        %v3371 = vld [vmem:[%s1358] ss:$8 sm:$0xf0]
        %v3372 = vor.u32 %v3370, %v3371
        %v3374 = vperm.slane %v3372, 0
        %v3375 = vperm.slane %v3372, 1
        %v3376 = vperm.slane %v3372, 2
        %v3377 = vperm.slane %v3372, 3
        %v3378 = vperm.slane %v3372, 4
        %v3379 = vperm.slane %v3372, 5
        %v3380 = vperm.slane %v3372, 6
        %v3381 = vperm.slane %v3372, 7
        %v3390 = vmul.f32 %v3369, %v3374
        %v3391 = vmul.f32 %v3368, %v3375
        %v3392 = vmul.f32 %v3367, %v3376
        %v3393 = vmul.f32 %v3366, %v3377
        %v3394 = vmul.f32 %v3365, %v3378
        %v3395 = vmul.f32 %v3364, %v3379
        %v3396 = vmul.f32 %v3363, %v3380
        %v3397 = vmul.f32 %v3362, %v3381
        %v3406 = vrot.slane %v3390, 4
        %v3407 = vrot.slane %v3391, 4
        %v3408 = vrot.slane %v3392, 4
        %v3409 = vrot.slane %v3393, 4
        %v3410 = vrot.slane %v3394, 4
        %v3411 = vrot.slane %v3395, 4
        %v3412 = vrot.slane %v3396, 4
        %v3413 = vrot.slane %v3397, 4
        %3422 = vst [vmem:[#allocation3 + $0x140] sm:$0xf0] %v3406
        %3423 = vst [vmem:[#allocation3 + $0x148] sm:$0xf0] %v3407
        %3424 = vst [vmem:[#allocation3 + $0x150] sm:$0xf0] %v3408
        %3425 = vst [vmem:[#allocation3 + $0x158] sm:$0xf0] %v3409
        %3426 = vst [vmem:[#allocation3 + $0x160] sm:$0xf0] %v3410
        %3427 = vst [vmem:[#allocation3 + $0x168] sm:$0xf0] %v3411
        %3428 = vst [vmem:[#allocation3 + $0x170] sm:$0xf0] %v3412
        %3429 = vst [vmem:[#allocation3 + $0x178] sm:$0xf0] %v3413
        %3430 = vrot.lane.b32.xlu0 %v2534, 1
        %v3431 = vpop.permute.xlu0 %3430
        %3432 = vrot.lane.b32.xlu0 %v2535, 1
        %v3433 = vpop.permute.xlu0 %3432
        %3434 = vrot.lane.b32.xlu0 %v2536, 1
        %v3435 = vpop.permute.xlu0 %3434
        %3436 = vrot.lane.b32.xlu0 %v2537, 1
        %v3437 = vpop.permute.xlu0 %3436
        %3438 = vrot.lane.b32.xlu0 %v2538, 1
        %v3439 = vpop.permute.xlu0 %3438
        %3440 = vrot.lane.b32.xlu0 %v2539, 1
        %v3441 = vpop.permute.xlu0 %3440
        %3442 = vrot.lane.b32.xlu0 %v2540, 1
        %v3443 = vpop.permute.xlu0 %3442
        %3444 = vrot.lane.b32.xlu0 %v2541, 1
        %v3445 = vpop.permute.xlu0 %3444
        %v3446 = vsel %vm1429, %v3443, %v3445
        %v3447 = vsel %vm1429, %v3441, %v3443
        %v3448 = vsel %vm1429, %v3439, %v3441
        %v3449 = vsel %vm1429, %v3437, %v3439
        %v3450 = vsel %vm1429, %v3435, %v3437
        %v3451 = vsel %vm1429, %v3433, %v3435
        %v3452 = vsel %vm1429, %v3431, %v3433
        %v3453 = vsel %vm1429, %v3445, %v3431
        %v3454 = vld [vmem:[%s1438] ss:$8 sm:$0xf]
        %v3455 = vld [vmem:[%s1438] ss:$8 sm:$0xf0]
        %v3456 = vor.u32 %v3454, %v3455
        %v3458 = vperm.slane %v3456, 0
        %v3459 = vperm.slane %v3456, 1
        %v3460 = vperm.slane %v3456, 2
        %v3461 = vperm.slane %v3456, 3
        %v3462 = vperm.slane %v3456, 4
        %v3463 = vperm.slane %v3456, 5
        %v3464 = vperm.slane %v3456, 6
        %v3465 = vperm.slane %v3456, 7
        %v3474 = vmul.f32 %v3453, %v3458
        %v3475 = vmul.f32 %v3452, %v3459
        %v3476 = vmul.f32 %v3451, %v3460
        %v3477 = vmul.f32 %v3450, %v3461
        %v3478 = vmul.f32 %v3449, %v3462
        %v3479 = vmul.f32 %v3448, %v3463
        %v3480 = vmul.f32 %v3447, %v3464
        %v3481 = vmul.f32 %v3446, %v3465
        %3482 = vst [vmem:[#allocation3 + $0x180] sm:$0xf] %v3474
        %3483 = vst [vmem:[#allocation3 + $0x188] sm:$0xf] %v3475
        %3484 = vst [vmem:[#allocation3 + $0x190] sm:$0xf] %v3476
        %3485 = vst [vmem:[#allocation3 + $0x198] sm:$0xf] %v3477
        %3486 = vst [vmem:[#allocation3 + $0x1a0] sm:$0xf] %v3478
        %3487 = vst [vmem:[#allocation3 + $0x1a8] sm:$0xf] %v3479
        %3488 = vst [vmem:[#allocation3 + $0x1b0] sm:$0xf] %v3480
        %3489 = vst [vmem:[#allocation3 + $0x1b8] sm:$0xf] %v3481
        %v3498 = vrot.slane %v2534, 4
        %v3499 = vrot.slane %v2535, 4
        %v3500 = vrot.slane %v2536, 4
        %v3501 = vrot.slane %v2537, 4
        %v3502 = vrot.slane %v2538, 4
        %v3503 = vrot.slane %v2539, 4
        %v3504 = vrot.slane %v2540, 4
        %v3505 = vrot.slane %v2541, 4
        %3514 = vst [vmem:[#allocation3 + $0x180] sm:$0xf0] %v3498
        %3515 = vst [vmem:[#allocation3 + $0x188] sm:$0xf0] %v3499
        %3516 = vst [vmem:[#allocation3 + $0x190] sm:$0xf0] %v3500
        %3517 = vst [vmem:[#allocation3 + $0x198] sm:$0xf0] %v3501
        %3518 = vst [vmem:[#allocation3 + $0x1a0] sm:$0xf0] %v3502
        %3519 = vst [vmem:[#allocation3 + $0x1a8] sm:$0xf0] %v3503
        %3520 = vst [vmem:[#allocation3 + $0x1b0] sm:$0xf0] %v3504
        %3521 = vst [vmem:[#allocation3 + $0x1b8] sm:$0xf0] %v3505
        %3522 = vrot.lane.b32.xlu0 %v2534, 127
        %v3523 = vpop.permute.xlu0 %3522
        %3524 = vrot.lane.b32.xlu0 %v2535, 127
        %v3525 = vpop.permute.xlu0 %3524
        %3526 = vrot.lane.b32.xlu0 %v2536, 127
        %v3527 = vpop.permute.xlu0 %3526
        %3528 = vrot.lane.b32.xlu0 %v2537, 127
        %v3529 = vpop.permute.xlu0 %3528
        %3530 = vrot.lane.b32.xlu0 %v2538, 127
        %v3531 = vpop.permute.xlu0 %3530
        %3532 = vrot.lane.b32.xlu0 %v2539, 127
        %v3533 = vpop.permute.xlu0 %3532
        %3534 = vrot.lane.b32.xlu0 %v2540, 127
        %v3535 = vpop.permute.xlu0 %3534
        %3536 = vrot.lane.b32.xlu0 %v2541, 127
        %v3537 = vpop.permute.xlu0 %3536
        %v3538 = vsel %vm1512, %v3535, %v3537
        %v3539 = vsel %vm1512, %v3533, %v3535
        %v3540 = vsel %vm1512, %v3531, %v3533
        %v3541 = vsel %vm1512, %v3529, %v3531
        %v3542 = vsel %vm1512, %v3527, %v3529
        %v3543 = vsel %vm1512, %v3525, %v3527
        %v3544 = vsel %vm1512, %v3523, %v3525
        %v3545 = vsel %vm1512, %v3537, %v3523
        %v3546 = vld [vmem:[%s1521] ss:$8 sm:$0xf]
        %v3547 = vld [vmem:[%s1521] ss:$8 sm:$0xf0]
        %v3548 = vor.u32 %v3546, %v3547
        %v3550 = vperm.slane %v3548, 0
        %v3551 = vperm.slane %v3548, 1
        %v3552 = vperm.slane %v3548, 2
        %v3553 = vperm.slane %v3548, 3
        %v3554 = vperm.slane %v3548, 4
        %v3555 = vperm.slane %v3548, 5
        %v3556 = vperm.slane %v3548, 6
        %v3557 = vperm.slane %v3548, 7
        %v3566 = vmul.f32 %v3544, %v3550
        %v3567 = vmul.f32 %v3543, %v3551
        %v3568 = vmul.f32 %v3542, %v3552
        %v3569 = vmul.f32 %v3541, %v3553
        %v3570 = vmul.f32 %v3540, %v3554
        %v3571 = vmul.f32 %v3539, %v3555
        %v3572 = vmul.f32 %v3538, %v3556
        %v3573 = vmul.f32 %v3545, %v3557
        %3574 = vst [vmem:[#allocation3 + $0x1c0] sm:$0xf] %v3566
        %3575 = vst [vmem:[#allocation3 + $0x1c8] sm:$0xf] %v3567
        %3576 = vst [vmem:[#allocation3 + $0x1d0] sm:$0xf] %v3568
        %3577 = vst [vmem:[#allocation3 + $0x1d8] sm:$0xf] %v3569
        %3578 = vst [vmem:[#allocation3 + $0x1e0] sm:$0xf] %v3570
        %3579 = vst [vmem:[#allocation3 + $0x1e8] sm:$0xf] %v3571
        %3580 = vst [vmem:[#allocation3 + $0x1f0] sm:$0xf] %v3572
        %3581 = vst [vmem:[#allocation3 + $0x1f8] sm:$0xf] %v3573
        %3582 = vrot.lane.b32.xlu0 %v2534, 121
        %v3583 = vpop.permute.xlu0 %3582
        %3584 = vrot.lane.b32.xlu0 %v2535, 121
        %v3585 = vpop.permute.xlu0 %3584
        %3586 = vrot.lane.b32.xlu0 %v2536, 121
        %v3587 = vpop.permute.xlu0 %3586
        %3588 = vrot.lane.b32.xlu0 %v2537, 121
        %v3589 = vpop.permute.xlu0 %3588
        %3590 = vrot.lane.b32.xlu0 %v2538, 121
        %v3591 = vpop.permute.xlu0 %3590
        %3592 = vrot.lane.b32.xlu0 %v2539, 121
        %v3593 = vpop.permute.xlu0 %3592
        %3594 = vrot.lane.b32.xlu0 %v2540, 121
        %v3595 = vpop.permute.xlu0 %3594
        %3596 = vrot.lane.b32.xlu0 %v2541, 121
        %v3597 = vpop.permute.xlu0 %3596
        %v3598 = vsel %vm1592, %v3595, %v3597
        %v3599 = vsel %vm1592, %v3593, %v3595
        %v3600 = vsel %vm1592, %v3591, %v3593
        %v3601 = vsel %vm1592, %v3589, %v3591
        %v3602 = vsel %vm1592, %v3587, %v3589
        %v3603 = vsel %vm1592, %v3585, %v3587
        %v3604 = vsel %vm1592, %v3583, %v3585
        %v3605 = vsel %vm1592, %v3597, %v3583
        %v3606 = vld [vmem:[%s1601] ss:$8 sm:$0xf]
        %v3607 = vld [vmem:[%s1601] ss:$8 sm:$0xf0]
        %v3608 = vor.u32 %v3606, %v3607
        %v3610 = vperm.slane %v3608, 0
        %v3611 = vperm.slane %v3608, 1
        %v3612 = vperm.slane %v3608, 2
        %v3613 = vperm.slane %v3608, 3
        %v3614 = vperm.slane %v3608, 4
        %v3615 = vperm.slane %v3608, 5
        %v3616 = vperm.slane %v3608, 6
        %v3617 = vperm.slane %v3608, 7
        %v3626 = vmul.f32 %v3604, %v3610
        %v3627 = vmul.f32 %v3603, %v3611
        %v3628 = vmul.f32 %v3602, %v3612
        %v3629 = vmul.f32 %v3601, %v3613
        %v3630 = vmul.f32 %v3600, %v3614
        %v3631 = vmul.f32 %v3599, %v3615
        %v3632 = vmul.f32 %v3598, %v3616
        %v3633 = vmul.f32 %v3605, %v3617
        %v3642 = vrot.slane %v3626, 4
        %v3643 = vrot.slane %v3627, 4
        %v3644 = vrot.slane %v3628, 4
        %v3645 = vrot.slane %v3629, 4
        %v3646 = vrot.slane %v3630, 4
        %v3647 = vrot.slane %v3631, 4
        %v3648 = vrot.slane %v3632, 4
        %v3649 = vrot.slane %v3633, 4
        %3658 = vst [vmem:[#allocation3 + $0x1c0] sm:$0xf0] %v3642
        %3659 = vst [vmem:[#allocation3 + $0x1c8] sm:$0xf0] %v3643
        %3660 = vst [vmem:[#allocation3 + $0x1d0] sm:$0xf0] %v3644
        %3661 = vst [vmem:[#allocation3 + $0x1d8] sm:$0xf0] %v3645
        %3662 = vst [vmem:[#allocation3 + $0x1e0] sm:$0xf0] %v3646
        %3663 = vst [vmem:[#allocation3 + $0x1e8] sm:$0xf0] %v3647
        %3664 = vst [vmem:[#allocation3 + $0x1f0] sm:$0xf0] %v3648
        %3665 = vst [vmem:[#allocation3 + $0x1f8] sm:$0xf0] %v3649
        %3666 = vrot.lane.b32.xlu0 %v2534, 120
        %v3667 = vpop.permute.xlu0 %3666
        %3668 = vrot.lane.b32.xlu0 %v2535, 120
        %v3669 = vpop.permute.xlu0 %3668
        %3670 = vrot.lane.b32.xlu0 %v2536, 120
        %v3671 = vpop.permute.xlu0 %3670
        %3672 = vrot.lane.b32.xlu0 %v2537, 120
        %v3673 = vpop.permute.xlu0 %3672
        %3674 = vrot.lane.b32.xlu0 %v2538, 120
        %v3675 = vpop.permute.xlu0 %3674
        %3676 = vrot.lane.b32.xlu0 %v2539, 120
        %v3677 = vpop.permute.xlu0 %3676
        %3678 = vrot.lane.b32.xlu0 %v2540, 120
        %v3679 = vpop.permute.xlu0 %3678
        %3680 = vrot.lane.b32.xlu0 %v2541, 120
        %v3681 = vpop.permute.xlu0 %3680
        %v3682 = vsel %vm1672, %v3679, %v3681
        %v3683 = vsel %vm1672, %v3677, %v3679
        %v3684 = vsel %vm1672, %v3675, %v3677
        %v3685 = vsel %vm1672, %v3673, %v3675
        %v3686 = vsel %vm1672, %v3671, %v3673
        %v3687 = vsel %vm1672, %v3669, %v3671
        %v3688 = vsel %vm1672, %v3667, %v3669
        %v3689 = vsel %vm1672, %v3681, %v3667
        %v3690 = vld [vmem:[%s1681] ss:$8 sm:$0xf]
        %v3691 = vld [vmem:[%s1681] ss:$8 sm:$0xf0]
        %v3692 = vor.u32 %v3690, %v3691
        %v3694 = vperm.slane %v3692, 0
        %v3695 = vperm.slane %v3692, 1
        %v3696 = vperm.slane %v3692, 2
        %v3697 = vperm.slane %v3692, 3
        %v3698 = vperm.slane %v3692, 4
        %v3699 = vperm.slane %v3692, 5
        %v3700 = vperm.slane %v3692, 6
        %v3701 = vperm.slane %v3692, 7
        %v3710 = vmul.f32 %v3688, %v3694
        %v3711 = vmul.f32 %v3687, %v3695
        %v3712 = vmul.f32 %v3686, %v3696
        %v3713 = vmul.f32 %v3685, %v3697
        %v3714 = vmul.f32 %v3684, %v3698
        %v3715 = vmul.f32 %v3683, %v3699
        %v3716 = vmul.f32 %v3682, %v3700
        %v3717 = vmul.f32 %v3689, %v3701
        %3718 = vst [vmem:[#allocation3 + $0x200] sm:$0xf] %v3710
        %3719 = vst [vmem:[#allocation3 + $0x208] sm:$0xf] %v3711
        %3720 = vst [vmem:[#allocation3 + $0x210] sm:$0xf] %v3712
        %3721 = vst [vmem:[#allocation3 + $0x218] sm:$0xf] %v3713
        %3722 = vst [vmem:[#allocation3 + $0x220] sm:$0xf] %v3714
        %3723 = vst [vmem:[#allocation3 + $0x228] sm:$0xf] %v3715
        %3724 = vst [vmem:[#allocation3 + $0x230] sm:$0xf] %v3716
        %3725 = vst [vmem:[#allocation3 + $0x238] sm:$0xf] %v3717
        %3726 = vrot.lane.b32.xlu0 %v2534, 119
        %v3727 = vpop.permute.xlu0 %3726
        %3728 = vrot.lane.b32.xlu0 %v2535, 119
        %v3729 = vpop.permute.xlu0 %3728
        %3730 = vrot.lane.b32.xlu0 %v2536, 119
        %v3731 = vpop.permute.xlu0 %3730
        %3732 = vrot.lane.b32.xlu0 %v2537, 119
        %v3733 = vpop.permute.xlu0 %3732
        %3734 = vrot.lane.b32.xlu0 %v2538, 119
        %v3735 = vpop.permute.xlu0 %3734
        %3736 = vrot.lane.b32.xlu0 %v2539, 119
        %v3737 = vpop.permute.xlu0 %3736
        %3738 = vrot.lane.b32.xlu0 %v2540, 119
        %v3739 = vpop.permute.xlu0 %3738
        %3740 = vrot.lane.b32.xlu0 %v2541, 119
        %v3741 = vpop.permute.xlu0 %3740
        %v3742 = vsel %vm1752, %v3739, %v3741
        %v3743 = vsel %vm1752, %v3737, %v3739
        %v3744 = vsel %vm1752, %v3735, %v3737
        %v3745 = vsel %vm1752, %v3733, %v3735
        %v3746 = vsel %vm1752, %v3731, %v3733
        %v3747 = vsel %vm1752, %v3729, %v3731
        %v3748 = vsel %vm1752, %v3727, %v3729
        %v3749 = vsel %vm1752, %v3741, %v3727
        %v3750 = vld [vmem:[%s1761] ss:$8 sm:$0xf]
        %v3751 = vld [vmem:[%s1761] ss:$8 sm:$0xf0]
        %v3752 = vor.u32 %v3750, %v3751
        %v3754 = vperm.slane %v3752, 0
        %v3755 = vperm.slane %v3752, 1
        %v3756 = vperm.slane %v3752, 2
        %v3757 = vperm.slane %v3752, 3
        %v3758 = vperm.slane %v3752, 4
        %v3759 = vperm.slane %v3752, 5
        %v3760 = vperm.slane %v3752, 6
        %v3761 = vperm.slane %v3752, 7
        %v3770 = vmul.f32 %v3748, %v3754
        %v3771 = vmul.f32 %v3747, %v3755
        %v3772 = vmul.f32 %v3746, %v3756
        %v3773 = vmul.f32 %v3745, %v3757
        %v3774 = vmul.f32 %v3744, %v3758
        %v3775 = vmul.f32 %v3743, %v3759
        %v3776 = vmul.f32 %v3742, %v3760
        %v3777 = vmul.f32 %v3749, %v3761
        %v3786 = vrot.slane %v3770, 4
        %v3787 = vrot.slane %v3771, 4
        %v3788 = vrot.slane %v3772, 4
        %v3789 = vrot.slane %v3773, 4
        %v3790 = vrot.slane %v3774, 4
        %v3791 = vrot.slane %v3775, 4
        %v3792 = vrot.slane %v3776, 4
        %v3793 = vrot.slane %v3777, 4
        %3802 = vst [vmem:[#allocation3 + $0x200] sm:$0xf0] %v3786
        %3803 = vst [vmem:[#allocation3 + $0x208] sm:$0xf0] %v3787
        %3804 = vst [vmem:[#allocation3 + $0x210] sm:$0xf0] %v3788
        %3805 = vst [vmem:[#allocation3 + $0x218] sm:$0xf0] %v3789
        %3806 = vst [vmem:[#allocation3 + $0x220] sm:$0xf0] %v3790
        %3807 = vst [vmem:[#allocation3 + $0x228] sm:$0xf0] %v3791
        %3808 = vst [vmem:[#allocation3 + $0x230] sm:$0xf0] %v3792
        %3809 = vst [vmem:[#allocation3 + $0x238] sm:$0xf0] %v3793
        %v3810 = vld [vmem:[%s1816] ss:$8 sm:$0xf]
        %v3811 = vld [vmem:[%s1816] ss:$8 sm:$0xf0]
        %v3812 = vor.u32 %v3810, %v3811
        %v3814 = vperm.slane %v3812, 0
        %v3815 = vperm.slane %v3812, 1
        %v3816 = vperm.slane %v3812, 2
        %v3817 = vperm.slane %v3812, 3
        %v3818 = vperm.slane %v3812, 4
        %v3819 = vperm.slane %v3812, 5
        %v3820 = vperm.slane %v3812, 6
        %v3821 = vperm.slane %v3812, 7
        %v3830 = vmul.f32 %v2588, %v3814
        %v3831 = vmul.f32 %v2587, %v3815
        %v3832 = vmul.f32 %v2586, %v3816
        %v3833 = vmul.f32 %v2585, %v3817
        %v3834 = vmul.f32 %v2584, %v3818
        %v3835 = vmul.f32 %v2583, %v3819
        %v3836 = vmul.f32 %v2582, %v3820
        %v3837 = vmul.f32 %v2589, %v3821
        %3838 = vst [vmem:[#allocation3 + $0x240] sm:$0xf] %v3830
        %3839 = vst [vmem:[#allocation3 + $0x248] sm:$0xf] %v3831
        %3840 = vst [vmem:[#allocation3 + $0x250] sm:$0xf] %v3832
        %3841 = vst [vmem:[#allocation3 + $0x258] sm:$0xf] %v3833
        %3842 = vst [vmem:[#allocation3 + $0x260] sm:$0xf] %v3834
        %3843 = vst [vmem:[#allocation3 + $0x268] sm:$0xf] %v3835
        %3844 = vst [vmem:[#allocation3 + $0x270] sm:$0xf] %v3836
        %3845 = vst [vmem:[#allocation3 + $0x278] sm:$0xf] %v3837
        %v3846 = vld [vmem:[%s1871] ss:$8 sm:$0xf]
        %v3847 = vld [vmem:[%s1871] ss:$8 sm:$0xf0]
        %v3848 = vor.u32 %v3846, %v3847
        %v3850 = vperm.slane %v3848, 0
        %v3851 = vperm.slane %v3848, 1
        %v3852 = vperm.slane %v3848, 2
        %v3853 = vperm.slane %v3848, 3
        %v3854 = vperm.slane %v3848, 4
        %v3855 = vperm.slane %v3848, 5
        %v3856 = vperm.slane %v3848, 6
        %v3857 = vperm.slane %v3848, 7
        %v3866 = vmul.f32 %v2648, %v3850
        %v3867 = vmul.f32 %v2647, %v3851
        %v3868 = vmul.f32 %v2646, %v3852
        %v3869 = vmul.f32 %v2645, %v3853
        %v3870 = vmul.f32 %v2644, %v3854
        %v3871 = vmul.f32 %v2643, %v3855
        %v3872 = vmul.f32 %v2642, %v3856
        %v3873 = vmul.f32 %v2649, %v3857
        %v3882 = vrot.slane %v3866, 4
        %v3883 = vrot.slane %v3867, 4
        %v3884 = vrot.slane %v3868, 4
        %v3885 = vrot.slane %v3869, 4
        %v3886 = vrot.slane %v3870, 4
        %v3887 = vrot.slane %v3871, 4
        %v3888 = vrot.slane %v3872, 4
        %v3889 = vrot.slane %v3873, 4
        %3898 = vst [vmem:[#allocation3 + $0x240] sm:$0xf0] %v3882
        %3899 = vst [vmem:[#allocation3 + $0x248] sm:$0xf0] %v3883
        %3900 = vst [vmem:[#allocation3 + $0x250] sm:$0xf0] %v3884
        %3901 = vst [vmem:[#allocation3 + $0x258] sm:$0xf0] %v3885
        %3902 = vst [vmem:[#allocation3 + $0x260] sm:$0xf0] %v3886
        %3903 = vst [vmem:[#allocation3 + $0x268] sm:$0xf0] %v3887
        %3904 = vst [vmem:[#allocation3 + $0x270] sm:$0xf0] %v3888
        %3905 = vst [vmem:[#allocation3 + $0x278] sm:$0xf0] %v3889
        %v3906 = vld [vmem:[%s1926] ss:$8 sm:$0xf]
        %v3907 = vld [vmem:[%s1926] ss:$8 sm:$0xf0]
        %v3908 = vor.u32 %v3906, %v3907
        %v3910 = vperm.slane %v3908, 0
        %v3911 = vperm.slane %v3908, 1
        %v3912 = vperm.slane %v3908, 2
        %v3913 = vperm.slane %v3908, 3
        %v3914 = vperm.slane %v3908, 4
        %v3915 = vperm.slane %v3908, 5
        %v3916 = vperm.slane %v3908, 6
        %v3917 = vperm.slane %v3908, 7
        %v3926 = vmul.f32 %v2732, %v3910
        %v3927 = vmul.f32 %v2731, %v3911
        %v3928 = vmul.f32 %v2730, %v3912
        %v3929 = vmul.f32 %v2729, %v3913
        %v3930 = vmul.f32 %v2728, %v3914
        %v3931 = vmul.f32 %v2727, %v3915
        %v3932 = vmul.f32 %v2726, %v3916
        %v3933 = vmul.f32 %v2733, %v3917
        %3934 = vst [vmem:[#allocation3 + $0x280] sm:$0xf] %v3926
        %3935 = vst [vmem:[#allocation3 + $0x288] sm:$0xf] %v3927
        %3936 = vst [vmem:[#allocation3 + $0x290] sm:$0xf] %v3928
        %3937 = vst [vmem:[#allocation3 + $0x298] sm:$0xf] %v3929
        %3938 = vst [vmem:[#allocation3 + $0x2a0] sm:$0xf] %v3930
        %3939 = vst [vmem:[#allocation3 + $0x2a8] sm:$0xf] %v3931
        %3940 = vst [vmem:[#allocation3 + $0x2b0] sm:$0xf] %v3932
        %3941 = vst [vmem:[#allocation3 + $0x2b8] sm:$0xf] %v3933
        %v3942 = vld [vmem:[%s1981] ss:$8 sm:$0xf]
        %v3943 = vld [vmem:[%s1981] ss:$8 sm:$0xf0]
        %v3944 = vor.u32 %v3942, %v3943
        %v3946 = vperm.slane %v3944, 0
        %v3947 = vperm.slane %v3944, 1
        %v3948 = vperm.slane %v3944, 2
        %v3949 = vperm.slane %v3944, 3
        %v3950 = vperm.slane %v3944, 4
        %v3951 = vperm.slane %v3944, 5
        %v3952 = vperm.slane %v3944, 6
        %v3953 = vperm.slane %v3944, 7
        %v3962 = vmul.f32 %v2792, %v3946
        %v3963 = vmul.f32 %v2791, %v3947
        %v3964 = vmul.f32 %v2790, %v3948
        %v3965 = vmul.f32 %v2789, %v3949
        %v3966 = vmul.f32 %v2788, %v3950
        %v3967 = vmul.f32 %v2787, %v3951
        %v3968 = vmul.f32 %v2786, %v3952
        %v3969 = vmul.f32 %v2793, %v3953
        %v3978 = vrot.slane %v3962, 4
        %v3979 = vrot.slane %v3963, 4
        %v3980 = vrot.slane %v3964, 4
        %v3981 = vrot.slane %v3965, 4
        %v3982 = vrot.slane %v3966, 4
        %v3983 = vrot.slane %v3967, 4
        %v3984 = vrot.slane %v3968, 4
        %v3985 = vrot.slane %v3969, 4
        %3994 = vst [vmem:[#allocation3 + $0x280] sm:$0xf0] %v3978
        %3995 = vst [vmem:[#allocation3 + $0x288] sm:$0xf0] %v3979
        %3996 = vst [vmem:[#allocation3 + $0x290] sm:$0xf0] %v3980
        %3997 = vst [vmem:[#allocation3 + $0x298] sm:$0xf0] %v3981
        %3998 = vst [vmem:[#allocation3 + $0x2a0] sm:$0xf0] %v3982
        %3999 = vst [vmem:[#allocation3 + $0x2a8] sm:$0xf0] %v3983
        %4000 = vst [vmem:[#allocation3 + $0x2b0] sm:$0xf0] %v3984
        %4001 = vst [vmem:[#allocation3 + $0x2b8] sm:$0xf0] %v3985
        %v4002 = vld [vmem:[%s2036] ss:$8 sm:$0xf]
        %v4003 = vld [vmem:[%s2036] ss:$8 sm:$0xf0]
        %v4004 = vor.u32 %v4002, %v4003
        %v4006 = vperm.slane %v4004, 0
        %v4007 = vperm.slane %v4004, 1
        %v4008 = vperm.slane %v4004, 2
        %v4009 = vperm.slane %v4004, 3
        %v4010 = vperm.slane %v4004, 4
        %v4011 = vperm.slane %v4004, 5
        %v4012 = vperm.slane %v4004, 6
        %v4013 = vperm.slane %v4004, 7
        %v4022 = vmul.f32 %v2876, %v4006
        %v4023 = vmul.f32 %v2875, %v4007
        %v4024 = vmul.f32 %v2874, %v4008
        %v4025 = vmul.f32 %v2873, %v4009
        %v4026 = vmul.f32 %v2872, %v4010
        %v4027 = vmul.f32 %v2871, %v4011
        %v4028 = vmul.f32 %v2870, %v4012
        %v4029 = vmul.f32 %v2877, %v4013
        %4030 = vst [vmem:[#allocation3 + $0x2c0] sm:$0xf] %v4022
        %4031 = vst [vmem:[#allocation3 + $0x2c8] sm:$0xf] %v4023
        %4032 = vst [vmem:[#allocation3 + $0x2d0] sm:$0xf] %v4024
        %4033 = vst [vmem:[#allocation3 + $0x2d8] sm:$0xf] %v4025
        %4034 = vst [vmem:[#allocation3 + $0x2e0] sm:$0xf] %v4026
        %4035 = vst [vmem:[#allocation3 + $0x2e8] sm:$0xf] %v4027
        %4036 = vst [vmem:[#allocation3 + $0x2f0] sm:$0xf] %v4028
        %4037 = vst [vmem:[#allocation3 + $0x2f8] sm:$0xf] %v4029
        %v4038 = vld [vmem:[%s2091] ss:$8 sm:$0xf]
        %v4039 = vld [vmem:[%s2091] ss:$8 sm:$0xf0]
        %v4040 = vor.u32 %v4038, %v4039
        %v4042 = vperm.slane %v4040, 0
        %v4043 = vperm.slane %v4040, 1
        %v4044 = vperm.slane %v4040, 2
        %v4045 = vperm.slane %v4040, 3
        %v4046 = vperm.slane %v4040, 4
        %v4047 = vperm.slane %v4040, 5
        %v4048 = vperm.slane %v4040, 6
        %v4049 = vperm.slane %v4040, 7
        %v4058 = vmul.f32 %v2936, %v4042
        %v4059 = vmul.f32 %v2935, %v4043
        %v4060 = vmul.f32 %v2934, %v4044
        %v4061 = vmul.f32 %v2933, %v4045
        %v4062 = vmul.f32 %v2932, %v4046
        %v4063 = vmul.f32 %v2931, %v4047
        %v4064 = vmul.f32 %v2930, %v4048
        %v4065 = vmul.f32 %v2937, %v4049
        %v4074 = vrot.slane %v4058, 4
        %v4075 = vrot.slane %v4059, 4
        %v4076 = vrot.slane %v4060, 4
        %v4077 = vrot.slane %v4061, 4
        %v4078 = vrot.slane %v4062, 4
        %v4079 = vrot.slane %v4063, 4
        %v4080 = vrot.slane %v4064, 4
        %v4081 = vrot.slane %v4065, 4
        %4090 = vst [vmem:[#allocation3 + $0x2c0] sm:$0xf0] %v4074
        %4091 = vst [vmem:[#allocation3 + $0x2c8] sm:$0xf0] %v4075
        %4092 = vst [vmem:[#allocation3 + $0x2d0] sm:$0xf0] %v4076
        %4093 = vst [vmem:[#allocation3 + $0x2d8] sm:$0xf0] %v4077
        %4094 = vst [vmem:[#allocation3 + $0x2e0] sm:$0xf0] %v4078
        %4095 = vst [vmem:[#allocation3 + $0x2e8] sm:$0xf0] %v4079
        %4096 = vst [vmem:[#allocation3 + $0x2f0] sm:$0xf0] %v4080
        %4097 = vst [vmem:[#allocation3 + $0x2f8] sm:$0xf0] %v4081
        %v4098 = vld [vmem:[%s2146] ss:$8 sm:$0xf]
        %v4099 = vld [vmem:[%s2146] ss:$8 sm:$0xf0]
        %v4100 = vor.u32 %v4098, %v4099
        %v4102 = vperm.slane %v4100, 0
        %v4103 = vperm.slane %v4100, 1
        %v4104 = vperm.slane %v4100, 2
        %v4105 = vperm.slane %v4100, 3
        %v4106 = vperm.slane %v4100, 4
        %v4107 = vperm.slane %v4100, 5
        %v4108 = vperm.slane %v4100, 6
        %v4109 = vperm.slane %v4100, 7
        %v4118 = vmul.f32 %v3020, %v4102
        %v4119 = vmul.f32 %v3019, %v4103
        %v4120 = vmul.f32 %v3018, %v4104
        %v4121 = vmul.f32 %v3017, %v4105
        %v4122 = vmul.f32 %v3016, %v4106
        %v4123 = vmul.f32 %v3015, %v4107
        %v4124 = vmul.f32 %v3014, %v4108
        %v4125 = vmul.f32 %v3021, %v4109
        %4126 = vst [vmem:[#allocation3 + $0x300] sm:$0xf] %v4118
        %4127 = vst [vmem:[#allocation3 + $0x308] sm:$0xf] %v4119
        %4128 = vst [vmem:[#allocation3 + $0x310] sm:$0xf] %v4120
        %4129 = vst [vmem:[#allocation3 + $0x318] sm:$0xf] %v4121
        %4130 = vst [vmem:[#allocation3 + $0x320] sm:$0xf] %v4122
        %4131 = vst [vmem:[#allocation3 + $0x328] sm:$0xf] %v4123
        %4132 = vst [vmem:[#allocation3 + $0x330] sm:$0xf] %v4124
        %4133 = vst [vmem:[#allocation3 + $0x338] sm:$0xf] %v4125
        %v4134 = vld [vmem:[%s2201] ss:$8 sm:$0xf]
        %v4135 = vld [vmem:[%s2201] ss:$8 sm:$0xf0]
        %v4136 = vor.u32 %v4134, %v4135
        %v4138 = vperm.slane %v4136, 0
        %v4139 = vperm.slane %v4136, 1
        %v4140 = vperm.slane %v4136, 2
        %v4141 = vperm.slane %v4136, 3
        %v4142 = vperm.slane %v4136, 4
        %v4143 = vperm.slane %v4136, 5
        %v4144 = vperm.slane %v4136, 6
        %v4145 = vperm.slane %v4136, 7
        %v4154 = vmul.f32 %v3080, %v4138
        %v4155 = vmul.f32 %v3079, %v4139
        %v4156 = vmul.f32 %v3078, %v4140
        %v4157 = vmul.f32 %v3077, %v4141
        %v4158 = vmul.f32 %v3076, %v4142
        %v4159 = vmul.f32 %v3075, %v4143
        %v4160 = vmul.f32 %v3074, %v4144
        %v4161 = vmul.f32 %v3081, %v4145
        %v4170 = vrot.slane %v4154, 4
        %v4171 = vrot.slane %v4155, 4
        %v4172 = vrot.slane %v4156, 4
        %v4173 = vrot.slane %v4157, 4
        %v4174 = vrot.slane %v4158, 4
        %v4175 = vrot.slane %v4159, 4
        %v4176 = vrot.slane %v4160, 4
        %v4177 = vrot.slane %v4161, 4
        %4186 = vst [vmem:[#allocation3 + $0x300] sm:$0xf0] %v4170
        %4187 = vst [vmem:[#allocation3 + $0x308] sm:$0xf0] %v4171
        %4188 = vst [vmem:[#allocation3 + $0x310] sm:$0xf0] %v4172
        %4189 = vst [vmem:[#allocation3 + $0x318] sm:$0xf0] %v4173
        %4190 = vst [vmem:[#allocation3 + $0x320] sm:$0xf0] %v4174
        %4191 = vst [vmem:[#allocation3 + $0x328] sm:$0xf0] %v4175
        %4192 = vst [vmem:[#allocation3 + $0x330] sm:$0xf0] %v4176
        %4193 = vst [vmem:[#allocation3 + $0x338] sm:$0xf0] %v4177
        %v4194 = vld [vmem:[%s2256] ss:$8 sm:$0xf]
        %v4195 = vld [vmem:[%s2256] ss:$8 sm:$0xf0]
        %v4196 = vor.u32 %v4194, %v4195
        %v4198 = vperm.slane %v4196, 0
        %v4199 = vperm.slane %v4196, 1
        %v4200 = vperm.slane %v4196, 2
        %v4201 = vperm.slane %v4196, 3
        %v4202 = vperm.slane %v4196, 4
        %v4203 = vperm.slane %v4196, 5
        %v4204 = vperm.slane %v4196, 6
        %v4205 = vperm.slane %v4196, 7
        %v4214 = vmul.f32 %v3164, %v4198
        %v4215 = vmul.f32 %v3163, %v4199
        %v4216 = vmul.f32 %v3162, %v4200
        %v4217 = vmul.f32 %v3161, %v4201
        %v4218 = vmul.f32 %v3160, %v4202
        %v4219 = vmul.f32 %v3159, %v4203
        %v4220 = vmul.f32 %v3158, %v4204
        %v4221 = vmul.f32 %v3165, %v4205
        %4222 = vst [vmem:[#allocation3 + $0x340] sm:$0xf] %v4214
        %4223 = vst [vmem:[#allocation3 + $0x348] sm:$0xf] %v4215
        %4224 = vst [vmem:[#allocation3 + $0x350] sm:$0xf] %v4216
        %4225 = vst [vmem:[#allocation3 + $0x358] sm:$0xf] %v4217
        %4226 = vst [vmem:[#allocation3 + $0x360] sm:$0xf] %v4218
        %4227 = vst [vmem:[#allocation3 + $0x368] sm:$0xf] %v4219
        %4228 = vst [vmem:[#allocation3 + $0x370] sm:$0xf] %v4220
        %4229 = vst [vmem:[#allocation3 + $0x378] sm:$0xf] %v4221
        %v4230 = vld [vmem:[%s5] sm:$0xf]
        %v4231 = vld [vmem:[#allocation3] sm:$0xff]
        %v4232 = vld [vmem:[#allocation3 + $0x8] sm:$0xff]
        %v4233 = vld [vmem:[#allocation3 + $0x10] sm:$0xff]
        %v4234 = vld [vmem:[#allocation3 + $0x18] sm:$0xff]
        %v4235 = vld [vmem:[#allocation3 + $0x20] sm:$0xff]
        %v4236 = vld [vmem:[#allocation3 + $0x28] sm:$0xff]
        %v4237 = vld [vmem:[#allocation3 + $0x30] sm:$0xff]
        %v4238 = vld [vmem:[#allocation3 + $0x38] sm:$0xff]
        %v4239 = vld [vmem:[#allocation3 + $0x40] sm:$0xff]
        %v4240 = vld [vmem:[#allocation3 + $0x48] sm:$0xff]
        %v4241 = vld [vmem:[#allocation3 + $0x50] sm:$0xff]
        %v4242 = vld [vmem:[#allocation3 + $0x58] sm:$0xff]
        %v4243 = vld [vmem:[#allocation3 + $0x60] sm:$0xff]
        %v4244 = vld [vmem:[#allocation3 + $0x68] sm:$0xff]
        %v4245 = vld [vmem:[#allocation3 + $0x70] sm:$0xff]
        %v4246 = vld [vmem:[#allocation3 + $0x78] sm:$0xff]
        %v4247 = vld [vmem:[#allocation3 + $0x80] sm:$0xff]
        %v4248 = vld [vmem:[#allocation3 + $0x88] sm:$0xff]
        %v4249 = vld [vmem:[#allocation3 + $0x90] sm:$0xff]
        %v4250 = vld [vmem:[#allocation3 + $0x98] sm:$0xff]
        %v4251 = vld [vmem:[#allocation3 + $0xa0] sm:$0xff]
        %v4252 = vld [vmem:[#allocation3 + $0xa8] sm:$0xff]
        %v4253 = vld [vmem:[#allocation3 + $0xb0] sm:$0xff]
        %v4254 = vld [vmem:[#allocation3 + $0xb8] sm:$0xff]
        %v4255 = vld [vmem:[#allocation3 + $0xc0] sm:$0xff]
        %v4256 = vld [vmem:[#allocation3 + $0xc8] sm:$0xff]
        %v4257 = vld [vmem:[#allocation3 + $0xd0] sm:$0xff]
        %v4258 = vld [vmem:[#allocation3 + $0xd8] sm:$0xff]
        %v4259 = vld [vmem:[#allocation3 + $0xe0] sm:$0xff]
        %v4260 = vld [vmem:[#allocation3 + $0xe8] sm:$0xff]
        %v4261 = vld [vmem:[#allocation3 + $0xf0] sm:$0xff]
        %v4262 = vld [vmem:[#allocation3 + $0xf8] sm:$0xff]
        %v4263 = vld [vmem:[#allocation3 + $0x100] sm:$0xff]
        %v4264 = vld [vmem:[#allocation3 + $0x108] sm:$0xff]
        %v4265 = vld [vmem:[#allocation3 + $0x110] sm:$0xff]
        %v4266 = vld [vmem:[#allocation3 + $0x118] sm:$0xff]
        %v4267 = vld [vmem:[#allocation3 + $0x120] sm:$0xff]
        %v4268 = vld [vmem:[#allocation3 + $0x128] sm:$0xff]
        %v4269 = vld [vmem:[#allocation3 + $0x130] sm:$0xff]
        %v4270 = vld [vmem:[#allocation3 + $0x138] sm:$0xff]
        %v4271 = vld [vmem:[#allocation3 + $0x140] sm:$0xff]
        %v4272 = vld [vmem:[#allocation3 + $0x148] sm:$0xff]
        %v4273 = vld [vmem:[#allocation3 + $0x150] sm:$0xff]
        %v4274 = vld [vmem:[#allocation3 + $0x158] sm:$0xff]
        %v4275 = vld [vmem:[#allocation3 + $0x160] sm:$0xff]
        %v4276 = vld [vmem:[#allocation3 + $0x168] sm:$0xff]
        %v4277 = vld [vmem:[#allocation3 + $0x170] sm:$0xff]
        %v4278 = vld [vmem:[#allocation3 + $0x178] sm:$0xff]
        %v4279 = vld [vmem:[#allocation3 + $0x180] sm:$0xff]
        %v4280 = vld [vmem:[#allocation3 + $0x188] sm:$0xff]
        %v4281 = vld [vmem:[#allocation3 + $0x190] sm:$0xff]
        %v4282 = vld [vmem:[#allocation3 + $0x198] sm:$0xff]
        %v4283 = vld [vmem:[#allocation3 + $0x1a0] sm:$0xff]
        %v4284 = vld [vmem:[#allocation3 + $0x1a8] sm:$0xff]
        %v4285 = vld [vmem:[#allocation3 + $0x1b0] sm:$0xff]
        %v4286 = vld [vmem:[#allocation3 + $0x1b8] sm:$0xff]
        %v4287 = vld [vmem:[#allocation3 + $0x1c0] sm:$0xff]
        %v4288 = vld [vmem:[#allocation3 + $0x1c8] sm:$0xff]
        %v4289 = vld [vmem:[#allocation3 + $0x1d0] sm:$0xff]
        %v4290 = vld [vmem:[#allocation3 + $0x1d8] sm:$0xff]
        %v4291 = vld [vmem:[#allocation3 + $0x1e0] sm:$0xff]
        %v4292 = vld [vmem:[#allocation3 + $0x1e8] sm:$0xff]
        %v4293 = vld [vmem:[#allocation3 + $0x1f0] sm:$0xff]
        %v4294 = vld [vmem:[#allocation3 + $0x1f8] sm:$0xff]
        %v4295 = vld [vmem:[#allocation3 + $0x200] sm:$0xff]
        %v4296 = vld [vmem:[#allocation3 + $0x208] sm:$0xff]
        %v4297 = vld [vmem:[#allocation3 + $0x210] sm:$0xff]
        %v4298 = vld [vmem:[#allocation3 + $0x218] sm:$0xff]
        %v4299 = vld [vmem:[#allocation3 + $0x220] sm:$0xff]
        %v4300 = vld [vmem:[#allocation3 + $0x228] sm:$0xff]
        %v4301 = vld [vmem:[#allocation3 + $0x230] sm:$0xff]
        %v4302 = vld [vmem:[#allocation3 + $0x238] sm:$0xff]
        %v4303 = vld [vmem:[#allocation3 + $0x240] sm:$0xff]
        %v4304 = vld [vmem:[#allocation3 + $0x248] sm:$0xff]
        %v4305 = vld [vmem:[#allocation3 + $0x250] sm:$0xff]
        %v4306 = vld [vmem:[#allocation3 + $0x258] sm:$0xff]
        %v4307 = vld [vmem:[#allocation3 + $0x260] sm:$0xff]
        %v4308 = vld [vmem:[#allocation3 + $0x268] sm:$0xff]
        %v4309 = vld [vmem:[#allocation3 + $0x270] sm:$0xff]
        %v4310 = vld [vmem:[#allocation3 + $0x278] sm:$0xff]
        %v4311 = vld [vmem:[#allocation3 + $0x280] sm:$0xff]
        %v4312 = vld [vmem:[#allocation3 + $0x288] sm:$0xff]
        %v4313 = vld [vmem:[#allocation3 + $0x290] sm:$0xff]
        %v4314 = vld [vmem:[#allocation3 + $0x298] sm:$0xff]
        %v4315 = vld [vmem:[#allocation3 + $0x2a0] sm:$0xff]
        %v4316 = vld [vmem:[#allocation3 + $0x2a8] sm:$0xff]
        %v4317 = vld [vmem:[#allocation3 + $0x2b0] sm:$0xff]
        %v4318 = vld [vmem:[#allocation3 + $0x2b8] sm:$0xff]
        %v4319 = vld [vmem:[#allocation3 + $0x2c0] sm:$0xff]
        %v4320 = vld [vmem:[#allocation3 + $0x2c8] sm:$0xff]
        %v4321 = vld [vmem:[#allocation3 + $0x2d0] sm:$0xff]
        %v4322 = vld [vmem:[#allocation3 + $0x2d8] sm:$0xff]
        %v4323 = vld [vmem:[#allocation3 + $0x2e0] sm:$0xff]
        %v4324 = vld [vmem:[#allocation3 + $0x2e8] sm:$0xff]
        %v4325 = vld [vmem:[#allocation3 + $0x2f0] sm:$0xff]
        %v4326 = vld [vmem:[#allocation3 + $0x2f8] sm:$0xff]
        %v4327 = vld [vmem:[#allocation3 + $0x300] sm:$0xff]
        %v4328 = vld [vmem:[#allocation3 + $0x308] sm:$0xff]
        %v4329 = vld [vmem:[#allocation3 + $0x310] sm:$0xff]
        %v4330 = vld [vmem:[#allocation3 + $0x318] sm:$0xff]
        %v4331 = vld [vmem:[#allocation3 + $0x320] sm:$0xff]
        %v4332 = vld [vmem:[#allocation3 + $0x328] sm:$0xff]
        %v4333 = vld [vmem:[#allocation3 + $0x330] sm:$0xff]
        %v4334 = vld [vmem:[#allocation3 + $0x338] sm:$0xff]
        %v4335 = vld [vmem:[#allocation3 + $0x340] sm:$0xff]
        %v4336 = vld [vmem:[#allocation3 + $0x348] sm:$0xff]
        %v4337 = vld [vmem:[#allocation3 + $0x350] sm:$0xff]
        %v4338 = vld [vmem:[#allocation3 + $0x358] sm:$0xff]
        %v4339 = vld [vmem:[#allocation3 + $0x360] sm:$0xff]
        %v4340 = vld [vmem:[#allocation3 + $0x368] sm:$0xff]
        %v4341 = vld [vmem:[#allocation3 + $0x370] sm:$0xff]
        %v4342 = vld [vmem:[#allocation3 + $0x378] sm:$0xff]
        %v4343 = vld [vmem:[#allocation3 + $0x380] sm:$0xff]
        %v4344 = vld [vmem:[#allocation3 + $0x388] sm:$0xff]
        %v4345 = vld [vmem:[#allocation3 + $0x390] sm:$0xff]
        %v4346 = vld [vmem:[#allocation3 + $0x398] sm:$0xff]
        %v4347 = vld [vmem:[#allocation3 + $0x3a0] sm:$0xff]
        %v4348 = vld [vmem:[#allocation3 + $0x3a8] sm:$0xff]
        %v4349 = vld [vmem:[#allocation3 + $0x3b0] sm:$0xff]
        %v4350 = vld [vmem:[#allocation3 + $0x3b8] sm:$0xff]
        %v4351 = vld [vmem:[#allocation3 + $0x3c0] sm:$0xff]
        %v4352 = vld [vmem:[#allocation3 + $0x3c8] sm:$0xff]
        %v4353 = vld [vmem:[#allocation3 + $0x3d0] sm:$0xff]
        %v4354 = vld [vmem:[#allocation3 + $0x3d8] sm:$0xff]
        %v4355 = vld [vmem:[#allocation3 + $0x3e0] sm:$0xff]
        %v4356 = vld [vmem:[#allocation3 + $0x3e8] sm:$0xff]
        %v4357 = vld [vmem:[#allocation3 + $0x3f0] sm:$0xff]
        %v4358 = vld [vmem:[#allocation3 + $0x3f8] sm:$0xff]
        %4359 = vmatpush.msra.mxu0 %v4351
        %4360 = vmatpush.msra.mxu0 %v4343
        %4361 = vmatpush.msra.mxu0 %v4335
        %4362 = vmatpush.msra.mxu0 %v4327
        %4363 = vmatpush.msra.mxu0 %v4319
        %4364 = vmatpush.msra.mxu0 %v4311
        %4365 = vmatpush.msra.mxu0 %v4303
        %4366 = vmatpush.msra.mxu0 %v4295
        %4367 = vmatpush.msra.mxu0 %v4287
        %4368 = vmatpush.msra.mxu0 %v4279
        %4369 = vmatpush.msra.mxu0 %v4271
        %4370 = vmatpush.msra.mxu0 %v4263
        %4371 = vmatpush.msra.mxu0 %v4255
        %4372 = vmatpush.msra.mxu0 %v4247
        %4373 = vmatpush.msra.mxu0 %v4239
        %4374 = vmatpush.msra.mxu0 %v4231
        %4375 = vmatmul.f32.gmra.mxu0 %v4230
        %v4376 = vpop.f32.mrf.mxu0
        %v4377 = vadd.f32 0.0, %v4376
        %4378 = vdwg.mxu0
        %4379 = vmatpush.msra.mxu0 %v4352
        %4380 = vmatpush.msra.mxu0 %v4344
        %4381 = vmatpush.msra.mxu0 %v4336
        %4382 = vmatpush.msra.mxu0 %v4328
        %4383 = vmatpush.msra.mxu0 %v4320
        %4384 = vmatpush.msra.mxu0 %v4312
        %4385 = vmatpush.msra.mxu0 %v4304
        %4386 = vmatpush.msra.mxu0 %v4296
        %4387 = vmatpush.msra.mxu0 %v4288
        %4388 = vmatpush.msra.mxu0 %v4280
        %4389 = vmatpush.msra.mxu0 %v4272
        %4390 = vmatpush.msra.mxu0 %v4264
        %4391 = vmatpush.msra.mxu0 %v4256
        %4392 = vmatpush.msra.mxu0 %v4248
        %4393 = vmatpush.msra.mxu0 %v4240
        %4394 = vmatpush.msra.mxu0 %v4232
        %4395 = vmatmul.f32.gmra.mxu0 %v4230
        %v4396 = vpop.f32.mrf.mxu0
        %v4397 = vadd.f32 0.0, %v4396
        %4398 = vdwg.mxu0
        %4399 = vmatpush.msra.mxu0 %v4353
        %4400 = vmatpush.msra.mxu0 %v4345
        %4401 = vmatpush.msra.mxu0 %v4337
        %4402 = vmatpush.msra.mxu0 %v4329
        %4403 = vmatpush.msra.mxu0 %v4321
        %4404 = vmatpush.msra.mxu0 %v4313
        %4405 = vmatpush.msra.mxu0 %v4305
        %4406 = vmatpush.msra.mxu0 %v4297
        %4407 = vmatpush.msra.mxu0 %v4289
        %4408 = vmatpush.msra.mxu0 %v4281
        %4409 = vmatpush.msra.mxu0 %v4273
        %4410 = vmatpush.msra.mxu0 %v4265
        %4411 = vmatpush.msra.mxu0 %v4257
        %4412 = vmatpush.msra.mxu0 %v4249
        %4413 = vmatpush.msra.mxu0 %v4241
        %4414 = vmatpush.msra.mxu0 %v4233
        %4415 = vmatmul.f32.gmra.mxu0 %v4230
        %v4416 = vpop.f32.mrf.mxu0
        %v4417 = vadd.f32 0.0, %v4416
        %4418 = vdwg.mxu0
        %4419 = vmatpush.msra.mxu0 %v4354
        %4420 = vmatpush.msra.mxu0 %v4346
        %4421 = vmatpush.msra.mxu0 %v4338
        %4422 = vmatpush.msra.mxu0 %v4330
        %4423 = vmatpush.msra.mxu0 %v4322
        %4424 = vmatpush.msra.mxu0 %v4314
        %4425 = vmatpush.msra.mxu0 %v4306
        %4426 = vmatpush.msra.mxu0 %v4298
        %4427 = vmatpush.msra.mxu0 %v4290
        %4428 = vmatpush.msra.mxu0 %v4282
        %4429 = vmatpush.msra.mxu0 %v4274
        %4430 = vmatpush.msra.mxu0 %v4266
        %4431 = vmatpush.msra.mxu0 %v4258
        %4432 = vmatpush.msra.mxu0 %v4250
        %4433 = vmatpush.msra.mxu0 %v4242
        %4434 = vmatpush.msra.mxu0 %v4234
        %4435 = vmatmul.f32.gmra.mxu0 %v4230
        %v4436 = vpop.f32.mrf.mxu0
        %v4437 = vadd.f32 0.0, %v4436
        %4438 = vdwg.mxu0
        %4439 = vmatpush.msra.mxu0 %v4355
        %4440 = vmatpush.msra.mxu0 %v4347
        %4441 = vmatpush.msra.mxu0 %v4339
        %4442 = vmatpush.msra.mxu0 %v4331
        %4443 = vmatpush.msra.mxu0 %v4323
        %4444 = vmatpush.msra.mxu0 %v4315
        %4445 = vmatpush.msra.mxu0 %v4307
        %4446 = vmatpush.msra.mxu0 %v4299
        %4447 = vmatpush.msra.mxu0 %v4291
        %4448 = vmatpush.msra.mxu0 %v4283
        %4449 = vmatpush.msra.mxu0 %v4275
        %4450 = vmatpush.msra.mxu0 %v4267
        %4451 = vmatpush.msra.mxu0 %v4259
        %4452 = vmatpush.msra.mxu0 %v4251
        %4453 = vmatpush.msra.mxu0 %v4243
        %4454 = vmatpush.msra.mxu0 %v4235
        %4455 = vmatmul.f32.gmra.mxu0 %v4230
        %v4456 = vpop.f32.mrf.mxu0
        %v4457 = vadd.f32 0.0, %v4456
        %4458 = vdwg.mxu0
        %4459 = vmatpush.msra.mxu0 %v4356
        %4460 = vmatpush.msra.mxu0 %v4348
        %4461 = vmatpush.msra.mxu0 %v4340
        %4462 = vmatpush.msra.mxu0 %v4332
        %4463 = vmatpush.msra.mxu0 %v4324
        %4464 = vmatpush.msra.mxu0 %v4316
        %4465 = vmatpush.msra.mxu0 %v4308
        %4466 = vmatpush.msra.mxu0 %v4300
        %4467 = vmatpush.msra.mxu0 %v4292
        %4468 = vmatpush.msra.mxu0 %v4284
        %4469 = vmatpush.msra.mxu0 %v4276
        %4470 = vmatpush.msra.mxu0 %v4268
        %4471 = vmatpush.msra.mxu0 %v4260
        %4472 = vmatpush.msra.mxu0 %v4252
        %4473 = vmatpush.msra.mxu0 %v4244
        %4474 = vmatpush.msra.mxu0 %v4236
        %4475 = vmatmul.f32.gmra.mxu0 %v4230
        %v4476 = vpop.f32.mrf.mxu0
        %v4477 = vadd.f32 0.0, %v4476
        %4478 = vdwg.mxu0
        %4479 = vmatpush.msra.mxu0 %v4357
        %4480 = vmatpush.msra.mxu0 %v4349
        %4481 = vmatpush.msra.mxu0 %v4341
        %4482 = vmatpush.msra.mxu0 %v4333
        %4483 = vmatpush.msra.mxu0 %v4325
        %4484 = vmatpush.msra.mxu0 %v4317
        %4485 = vmatpush.msra.mxu0 %v4309
        %4486 = vmatpush.msra.mxu0 %v4301
        %4487 = vmatpush.msra.mxu0 %v4293
        %4488 = vmatpush.msra.mxu0 %v4285
        %4489 = vmatpush.msra.mxu0 %v4277
        %4490 = vmatpush.msra.mxu0 %v4269
        %4491 = vmatpush.msra.mxu0 %v4261
        %4492 = vmatpush.msra.mxu0 %v4253
        %4493 = vmatpush.msra.mxu0 %v4245
        %4494 = vmatpush.msra.mxu0 %v4237
        %4495 = vmatmul.f32.gmra.mxu0 %v4230
        %v4496 = vpop.f32.mrf.mxu0
        %v4497 = vadd.f32 0.0, %v4496
        %4498 = vdwg.mxu0
        %4499 = vmatpush.msra.mxu0 %v4358
        %4500 = vmatpush.msra.mxu0 %v4350
        %4501 = vmatpush.msra.mxu0 %v4342
        %4502 = vmatpush.msra.mxu0 %v4334
        %4503 = vmatpush.msra.mxu0 %v4326
        %4504 = vmatpush.msra.mxu0 %v4318
        %4505 = vmatpush.msra.mxu0 %v4310
        %4506 = vmatpush.msra.mxu0 %v4302
        %4507 = vmatpush.msra.mxu0 %v4294
        %4508 = vmatpush.msra.mxu0 %v4286
        %4509 = vmatpush.msra.mxu0 %v4278
        %4510 = vmatpush.msra.mxu0 %v4270
        %4511 = vmatpush.msra.mxu0 %v4262
        %4512 = vmatpush.msra.mxu0 %v4254
        %4513 = vmatpush.msra.mxu0 %v4246
        %4514 = vmatpush.msra.mxu0 %v4238
        %4515 = vmatmul.f32.gmra.mxu0 %v4230
        %v4516 = vpop.f32.mrf.mxu0
        %v4517 = vadd.f32 0.0, %v4516
        %4518 = vdwg.mxu0
        %v4519 = vld [vmem:[%s1] sm:$0xf]
        %v4520 = vld [vmem:[#allocation7] sm:$0xff]
        %v4521 = vld [vmem:[#allocation7 + $0x8] sm:$0xff]
        %v4522 = vld [vmem:[#allocation7 + $0x10] sm:$0xff]
        %v4523 = vld [vmem:[#allocation7 + $0x18] sm:$0xff]
        %v4524 = vld [vmem:[#allocation7 + $0x20] sm:$0xff]
        %v4525 = vld [vmem:[#allocation7 + $0x28] sm:$0xff]
        %v4526 = vld [vmem:[#allocation7 + $0x30] sm:$0xff]
        %v4527 = vld [vmem:[#allocation7 + $0x38] sm:$0xff]
        %v4528 = vld [vmem:[#allocation7 + $0x40] sm:$0xff]
        %v4529 = vld [vmem:[#allocation7 + $0x48] sm:$0xff]
        %v4530 = vld [vmem:[#allocation7 + $0x50] sm:$0xff]
        %v4531 = vld [vmem:[#allocation7 + $0x58] sm:$0xff]
        %v4532 = vld [vmem:[#allocation7 + $0x60] sm:$0xff]
        %v4533 = vld [vmem:[#allocation7 + $0x68] sm:$0xff]
        %v4534 = vld [vmem:[#allocation7 + $0x70] sm:$0xff]
        %v4535 = vld [vmem:[#allocation7 + $0x78] sm:$0xff]
        %v4536 = vld [vmem:[#allocation7 + $0x80] sm:$0xff]
        %v4537 = vld [vmem:[#allocation7 + $0x88] sm:$0xff]
        %v4538 = vld [vmem:[#allocation7 + $0x90] sm:$0xff]
        %v4539 = vld [vmem:[#allocation7 + $0x98] sm:$0xff]
        %v4540 = vld [vmem:[#allocation7 + $0xa0] sm:$0xff]
        %v4541 = vld [vmem:[#allocation7 + $0xa8] sm:$0xff]
        %v4542 = vld [vmem:[#allocation7 + $0xb0] sm:$0xff]
        %v4543 = vld [vmem:[#allocation7 + $0xb8] sm:$0xff]
        %v4544 = vld [vmem:[#allocation7 + $0xc0] sm:$0xff]
        %v4545 = vld [vmem:[#allocation7 + $0xc8] sm:$0xff]
        %v4546 = vld [vmem:[#allocation7 + $0xd0] sm:$0xff]
        %v4547 = vld [vmem:[#allocation7 + $0xd8] sm:$0xff]
        %v4548 = vld [vmem:[#allocation7 + $0xe0] sm:$0xff]
        %v4549 = vld [vmem:[#allocation7 + $0xe8] sm:$0xff]
        %v4550 = vld [vmem:[#allocation7 + $0xf0] sm:$0xff]
        %v4551 = vld [vmem:[#allocation7 + $0xf8] sm:$0xff]
        %v4552 = vld [vmem:[#allocation7 + $0x100] sm:$0xff]
        %v4553 = vld [vmem:[#allocation7 + $0x108] sm:$0xff]
        %v4554 = vld [vmem:[#allocation7 + $0x110] sm:$0xff]
        %v4555 = vld [vmem:[#allocation7 + $0x118] sm:$0xff]
        %v4556 = vld [vmem:[#allocation7 + $0x120] sm:$0xff]
        %v4557 = vld [vmem:[#allocation7 + $0x128] sm:$0xff]
        %v4558 = vld [vmem:[#allocation7 + $0x130] sm:$0xff]
        %v4559 = vld [vmem:[#allocation7 + $0x138] sm:$0xff]
        %v4560 = vld [vmem:[#allocation7 + $0x140] sm:$0xff]
        %v4561 = vld [vmem:[#allocation7 + $0x148] sm:$0xff]
        %v4562 = vld [vmem:[#allocation7 + $0x150] sm:$0xff]
        %v4563 = vld [vmem:[#allocation7 + $0x158] sm:$0xff]
        %v4564 = vld [vmem:[#allocation7 + $0x160] sm:$0xff]
        %v4565 = vld [vmem:[#allocation7 + $0x168] sm:$0xff]
        %v4566 = vld [vmem:[#allocation7 + $0x170] sm:$0xff]
        %v4567 = vld [vmem:[#allocation7 + $0x178] sm:$0xff]
        %v4568 = vld [vmem:[#allocation7 + $0x180] sm:$0xff]
        %v4569 = vld [vmem:[#allocation7 + $0x188] sm:$0xff]
        %v4570 = vld [vmem:[#allocation7 + $0x190] sm:$0xff]
        %v4571 = vld [vmem:[#allocation7 + $0x198] sm:$0xff]
        %v4572 = vld [vmem:[#allocation7 + $0x1a0] sm:$0xff]
        %v4573 = vld [vmem:[#allocation7 + $0x1a8] sm:$0xff]
        %v4574 = vld [vmem:[#allocation7 + $0x1b0] sm:$0xff]
        %v4575 = vld [vmem:[#allocation7 + $0x1b8] sm:$0xff]
        %v4576 = vld [vmem:[#allocation7 + $0x1c0] sm:$0xff]
        %v4577 = vld [vmem:[#allocation7 + $0x1c8] sm:$0xff]
        %v4578 = vld [vmem:[#allocation7 + $0x1d0] sm:$0xff]
        %v4579 = vld [vmem:[#allocation7 + $0x1d8] sm:$0xff]
        %v4580 = vld [vmem:[#allocation7 + $0x1e0] sm:$0xff]
        %v4581 = vld [vmem:[#allocation7 + $0x1e8] sm:$0xff]
        %v4582 = vld [vmem:[#allocation7 + $0x1f0] sm:$0xff]
        %v4583 = vld [vmem:[#allocation7 + $0x1f8] sm:$0xff]
        %v4584 = vld [vmem:[#allocation7 + $0x200] sm:$0xff]
        %v4585 = vld [vmem:[#allocation7 + $0x208] sm:$0xff]
        %v4586 = vld [vmem:[#allocation7 + $0x210] sm:$0xff]
        %v4587 = vld [vmem:[#allocation7 + $0x218] sm:$0xff]
        %v4588 = vld [vmem:[#allocation7 + $0x220] sm:$0xff]
        %v4589 = vld [vmem:[#allocation7 + $0x228] sm:$0xff]
        %v4590 = vld [vmem:[#allocation7 + $0x230] sm:$0xff]
        %v4591 = vld [vmem:[#allocation7 + $0x238] sm:$0xff]
        %v4592 = vld [vmem:[#allocation7 + $0x240] sm:$0xff]
        %v4593 = vld [vmem:[#allocation7 + $0x248] sm:$0xff]
        %v4594 = vld [vmem:[#allocation7 + $0x250] sm:$0xff]
        %v4595 = vld [vmem:[#allocation7 + $0x258] sm:$0xff]
        %v4596 = vld [vmem:[#allocation7 + $0x260] sm:$0xff]
        %v4597 = vld [vmem:[#allocation7 + $0x268] sm:$0xff]
        %v4598 = vld [vmem:[#allocation7 + $0x270] sm:$0xff]
        %v4599 = vld [vmem:[#allocation7 + $0x278] sm:$0xff]
        %v4600 = vld [vmem:[#allocation7 + $0x280] sm:$0xff]
        %v4601 = vld [vmem:[#allocation7 + $0x288] sm:$0xff]
        %v4602 = vld [vmem:[#allocation7 + $0x290] sm:$0xff]
        %v4603 = vld [vmem:[#allocation7 + $0x298] sm:$0xff]
        %v4604 = vld [vmem:[#allocation7 + $0x2a0] sm:$0xff]
        %v4605 = vld [vmem:[#allocation7 + $0x2a8] sm:$0xff]
        %v4606 = vld [vmem:[#allocation7 + $0x2b0] sm:$0xff]
        %v4607 = vld [vmem:[#allocation7 + $0x2b8] sm:$0xff]
        %v4608 = vld [vmem:[#allocation7 + $0x2c0] sm:$0xff]
        %v4609 = vld [vmem:[#allocation7 + $0x2c8] sm:$0xff]
        %v4610 = vld [vmem:[#allocation7 + $0x2d0] sm:$0xff]
        %v4611 = vld [vmem:[#allocation7 + $0x2d8] sm:$0xff]
        %v4612 = vld [vmem:[#allocation7 + $0x2e0] sm:$0xff]
        %v4613 = vld [vmem:[#allocation7 + $0x2e8] sm:$0xff]
        %v4614 = vld [vmem:[#allocation7 + $0x2f0] sm:$0xff]
        %v4615 = vld [vmem:[#allocation7 + $0x2f8] sm:$0xff]
        %v4616 = vld [vmem:[#allocation7 + $0x300] sm:$0xff]
        %v4617 = vld [vmem:[#allocation7 + $0x308] sm:$0xff]
        %v4618 = vld [vmem:[#allocation7 + $0x310] sm:$0xff]
        %v4619 = vld [vmem:[#allocation7 + $0x318] sm:$0xff]
        %v4620 = vld [vmem:[#allocation7 + $0x320] sm:$0xff]
        %v4621 = vld [vmem:[#allocation7 + $0x328] sm:$0xff]
        %v4622 = vld [vmem:[#allocation7 + $0x330] sm:$0xff]
        %v4623 = vld [vmem:[#allocation7 + $0x338] sm:$0xff]
        %v4624 = vld [vmem:[#allocation7 + $0x340] sm:$0xff]
        %v4625 = vld [vmem:[#allocation7 + $0x348] sm:$0xff]
        %v4626 = vld [vmem:[#allocation7 + $0x350] sm:$0xff]
        %v4627 = vld [vmem:[#allocation7 + $0x358] sm:$0xff]
        %v4628 = vld [vmem:[#allocation7 + $0x360] sm:$0xff]
        %v4629 = vld [vmem:[#allocation7 + $0x368] sm:$0xff]
        %v4630 = vld [vmem:[#allocation7 + $0x370] sm:$0xff]
        %v4631 = vld [vmem:[#allocation7 + $0x378] sm:$0xff]
        %v4632 = vld [vmem:[#allocation7 + $0x380] sm:$0xff]
        %v4633 = vld [vmem:[#allocation7 + $0x388] sm:$0xff]
        %v4634 = vld [vmem:[#allocation7 + $0x390] sm:$0xff]
        %v4635 = vld [vmem:[#allocation7 + $0x398] sm:$0xff]
        %v4636 = vld [vmem:[#allocation7 + $0x3a0] sm:$0xff]
        %v4637 = vld [vmem:[#allocation7 + $0x3a8] sm:$0xff]
        %v4638 = vld [vmem:[#allocation7 + $0x3b0] sm:$0xff]
        %v4639 = vld [vmem:[#allocation7 + $0x3b8] sm:$0xff]
        %v4640 = vld [vmem:[#allocation7 + $0x3c0] sm:$0xff]
        %v4641 = vld [vmem:[#allocation7 + $0x3c8] sm:$0xff]
        %v4642 = vld [vmem:[#allocation7 + $0x3d0] sm:$0xff]
        %v4643 = vld [vmem:[#allocation7 + $0x3d8] sm:$0xff]
        %v4644 = vld [vmem:[#allocation7 + $0x3e0] sm:$0xff]
        %v4645 = vld [vmem:[#allocation7 + $0x3e8] sm:$0xff]
        %v4646 = vld [vmem:[#allocation7 + $0x3f0] sm:$0xff]
        %v4647 = vld [vmem:[#allocation7 + $0x3f8] sm:$0xff]
        %4648 = vmatpush.msra.mxu0 %v4535
        %4649 = vmatpush.msra.mxu0 %v4534
        %4650 = vmatpush.msra.mxu0 %v4533
        %4651 = vmatpush.msra.mxu0 %v4532
        %4652 = vmatpush.msra.mxu0 %v4531
        %4653 = vmatpush.msra.mxu0 %v4530
        %4654 = vmatpush.msra.mxu0 %v4529
        %4655 = vmatpush.msra.mxu0 %v4528
        %4656 = vmatpush.msra.mxu0 %v4527
        %4657 = vmatpush.msra.mxu0 %v4526
        %4658 = vmatpush.msra.mxu0 %v4525
        %4659 = vmatpush.msra.mxu0 %v4524
        %4660 = vmatpush.msra.mxu0 %v4523
        %4661 = vmatpush.msra.mxu0 %v4522
        %4662 = vmatpush.msra.mxu0 %v4521
        %4663 = vmatpush.msra.mxu0 %v4520
        %4664 = vmatmul.f32.gmra.mxu0 %v4377
        %v4665 = vpop.f32.mrf.mxu0
        %v4666 = vadd.f32 0.0, %v4665
        %4667 = vdwg.mxu0
        %4668 = vmatpush.msra.mxu0 %v4551
        %4669 = vmatpush.msra.mxu0 %v4550
        %4670 = vmatpush.msra.mxu0 %v4549
        %4671 = vmatpush.msra.mxu0 %v4548
        %4672 = vmatpush.msra.mxu0 %v4547
        %4673 = vmatpush.msra.mxu0 %v4546
        %4674 = vmatpush.msra.mxu0 %v4545
        %4675 = vmatpush.msra.mxu0 %v4544
        %4676 = vmatpush.msra.mxu0 %v4543
        %4677 = vmatpush.msra.mxu0 %v4542
        %4678 = vmatpush.msra.mxu0 %v4541
        %4679 = vmatpush.msra.mxu0 %v4540
        %4680 = vmatpush.msra.mxu0 %v4539
        %4681 = vmatpush.msra.mxu0 %v4538
        %4682 = vmatpush.msra.mxu0 %v4537
        %4683 = vmatpush.msra.mxu0 %v4536
        %4684 = vmatmul.f32.gmra.mxu0 %v4397
        %v4685 = vpop.f32.mrf.mxu0
        %v4686 = vadd.f32 %v4666, %v4685
        %4687 = vdwg.mxu0
        %4688 = vmatpush.msra.mxu0 %v4567
        %4689 = vmatpush.msra.mxu0 %v4566
        %4690 = vmatpush.msra.mxu0 %v4565
        %4691 = vmatpush.msra.mxu0 %v4564
        %4692 = vmatpush.msra.mxu0 %v4563
        %4693 = vmatpush.msra.mxu0 %v4562
        %4694 = vmatpush.msra.mxu0 %v4561
        %4695 = vmatpush.msra.mxu0 %v4560
        %4696 = vmatpush.msra.mxu0 %v4559
        %4697 = vmatpush.msra.mxu0 %v4558
        %4698 = vmatpush.msra.mxu0 %v4557
        %4699 = vmatpush.msra.mxu0 %v4556
        %4700 = vmatpush.msra.mxu0 %v4555
        %4701 = vmatpush.msra.mxu0 %v4554
        %4702 = vmatpush.msra.mxu0 %v4553
        %4703 = vmatpush.msra.mxu0 %v4552
        %4704 = vmatmul.f32.gmra.mxu0 %v4417
        %v4705 = vpop.f32.mrf.mxu0
        %v4706 = vadd.f32 %v4686, %v4705
        %4707 = vdwg.mxu0
        %4708 = vmatpush.msra.mxu0 %v4583
        %4709 = vmatpush.msra.mxu0 %v4582
        %4710 = vmatpush.msra.mxu0 %v4581
        %4711 = vmatpush.msra.mxu0 %v4580
        %4712 = vmatpush.msra.mxu0 %v4579
        %4713 = vmatpush.msra.mxu0 %v4578
        %4714 = vmatpush.msra.mxu0 %v4577
        %4715 = vmatpush.msra.mxu0 %v4576
        %4716 = vmatpush.msra.mxu0 %v4575
        %4717 = vmatpush.msra.mxu0 %v4574
        %4718 = vmatpush.msra.mxu0 %v4573
        %4719 = vmatpush.msra.mxu0 %v4572
        %4720 = vmatpush.msra.mxu0 %v4571
        %4721 = vmatpush.msra.mxu0 %v4570
        %4722 = vmatpush.msra.mxu0 %v4569
        %4723 = vmatpush.msra.mxu0 %v4568
        %4724 = vmatmul.f32.gmra.mxu0 %v4437
        %v4725 = vpop.f32.mrf.mxu0
        %v4726 = vadd.f32 %v4706, %v4725
        %4727 = vdwg.mxu0
        %4728 = vmatpush.msra.mxu0 %v4599
        %4729 = vmatpush.msra.mxu0 %v4598
        %4730 = vmatpush.msra.mxu0 %v4597
        %4731 = vmatpush.msra.mxu0 %v4596
        %4732 = vmatpush.msra.mxu0 %v4595
        %4733 = vmatpush.msra.mxu0 %v4594
        %4734 = vmatpush.msra.mxu0 %v4593
        %4735 = vmatpush.msra.mxu0 %v4592
        %4736 = vmatpush.msra.mxu0 %v4591
        %4737 = vmatpush.msra.mxu0 %v4590
        %4738 = vmatpush.msra.mxu0 %v4589
        %4739 = vmatpush.msra.mxu0 %v4588
        %4740 = vmatpush.msra.mxu0 %v4587
        %4741 = vmatpush.msra.mxu0 %v4586
        %4742 = vmatpush.msra.mxu0 %v4585
        %4743 = vmatpush.msra.mxu0 %v4584
        %4744 = vmatmul.f32.gmra.mxu0 %v4457
        %v4745 = vpop.f32.mrf.mxu0
        %v4746 = vadd.f32 %v4726, %v4745
        %4747 = vdwg.mxu0
        %4748 = vmatpush.msra.mxu0 %v4615
        %4749 = vmatpush.msra.mxu0 %v4614
        %4750 = vmatpush.msra.mxu0 %v4613
        %4751 = vmatpush.msra.mxu0 %v4612
        %4752 = vmatpush.msra.mxu0 %v4611
        %4753 = vmatpush.msra.mxu0 %v4610
        %4754 = vmatpush.msra.mxu0 %v4609
        %4755 = vmatpush.msra.mxu0 %v4608
        %4756 = vmatpush.msra.mxu0 %v4607
        %4757 = vmatpush.msra.mxu0 %v4606
        %4758 = vmatpush.msra.mxu0 %v4605
        %4759 = vmatpush.msra.mxu0 %v4604
        %4760 = vmatpush.msra.mxu0 %v4603
        %4761 = vmatpush.msra.mxu0 %v4602
        %4762 = vmatpush.msra.mxu0 %v4601
        %4763 = vmatpush.msra.mxu0 %v4600
        %4764 = vmatmul.f32.gmra.mxu0 %v4477
        %v4765 = vpop.f32.mrf.mxu0
        %v4766 = vadd.f32 %v4746, %v4765
        %4767 = vdwg.mxu0
        %4768 = vmatpush.msra.mxu0 %v4631
        %4769 = vmatpush.msra.mxu0 %v4630
        %4770 = vmatpush.msra.mxu0 %v4629
        %4771 = vmatpush.msra.mxu0 %v4628
        %4772 = vmatpush.msra.mxu0 %v4627
        %4773 = vmatpush.msra.mxu0 %v4626
        %4774 = vmatpush.msra.mxu0 %v4625
        %4775 = vmatpush.msra.mxu0 %v4624
        %4776 = vmatpush.msra.mxu0 %v4623
        %4777 = vmatpush.msra.mxu0 %v4622
        %4778 = vmatpush.msra.mxu0 %v4621
        %4779 = vmatpush.msra.mxu0 %v4620
        %4780 = vmatpush.msra.mxu0 %v4619
        %4781 = vmatpush.msra.mxu0 %v4618
        %4782 = vmatpush.msra.mxu0 %v4617
        %4783 = vmatpush.msra.mxu0 %v4616
        %4784 = vmatmul.f32.gmra.mxu0 %v4497
        %v4785 = vpop.f32.mrf.mxu0
        %v4786 = vadd.f32 %v4766, %v4785
        %4787 = vdwg.mxu0
        %4788 = vmatpush.msra.mxu0 %v4647
        %4789 = vmatpush.msra.mxu0 %v4646
        %4790 = vmatpush.msra.mxu0 %v4645
        %4791 = vmatpush.msra.mxu0 %v4644
        %4792 = vmatpush.msra.mxu0 %v4643
        %4793 = vmatpush.msra.mxu0 %v4642
        %4794 = vmatpush.msra.mxu0 %v4641
        %4795 = vmatpush.msra.mxu0 %v4640
        %4796 = vmatpush.msra.mxu0 %v4639
        %4797 = vmatpush.msra.mxu0 %v4638
        %4798 = vmatpush.msra.mxu0 %v4637
        %4799 = vmatpush.msra.mxu0 %v4636
        %4800 = vmatpush.msra.mxu0 %v4635
        %4801 = vmatpush.msra.mxu0 %v4634
        %4802 = vmatpush.msra.mxu0 %v4633
        %4803 = vmatpush.msra.mxu0 %v4632
        %4804 = vmatmul.f32.gmra.mxu0 %v4517
        %v4805 = vpop.f32.mrf.mxu0
        %v4806 = vadd.f32 %v4786, %v4805
        %4807 = vdwg.mxu0
        %4809 = vset.pattern.permute.xlu0 2
        %4810 = vperm.xlu0 %4809, %v4519
        %v4811 = vpop.permute.xlu0 %4810
        %v4813 = vmul.f32 %v4806, %v4811
        %4814 = vset.pattern.permute.xlu0 3
        %4815 = vperm.xlu0 %4814, %v4519
        %v4816 = vpop.permute.xlu0 %4815
        %v4818 = vadd.f32 %v4813, %v4816
        %v4819 = vmax.f32 %v4818, 0.0
        %4820 = vst [vmem:[#allocation4 + $0x6c] sm:$0xff] 0.0
        %4821 = vst [vmem:[#allocation4 + $0x74] sm:$0xff] 0.0
        %4822 = vst [vmem:[#allocation4 + $0x7c] sm:$0xf] 0.0
        %4823 = vrot.lane.b32.xlu0 %v4819, 21
        %v4824 = vpop.permute.xlu0 %4823
        %v4825 = vld [vmem:[%s3] sm:$0x1]
        %v4826 = vperm.slane %v4825, 0
        %v4827 = vmul.f32 %v4824, %v4826
        %4828 = vst [vmem:[#allocation4] sm:$0xf] %v4827
        %4829 = vrot.lane.b32.xlu0 %v4819, 20
        %v4830 = vpop.permute.xlu0 %4829
        %v4831 = vld [vmem:[%s3 + $0x1] sm:$0x1]
        %v4832 = vperm.slane %v4831, 0
        %v4833 = vmul.f32 %v4830, %v4832
        %4834 = vst [vmem:[#allocation4 + $0x4] sm:$0xf] %v4833
        %4835 = vrot.lane.b32.xlu0 %v4819, 19
        %v4836 = vpop.permute.xlu0 %4835
        %v4837 = vld [vmem:[%s3 + $0x2] sm:$0x1]
        %v4838 = vperm.slane %v4837, 0
        %v4839 = vmul.f32 %v4836, %v4838
        %4840 = vst [vmem:[#allocation4 + $0x8] sm:$0xf] %v4839
        %4841 = vrot.lane.b32.xlu0 %v4819, 17
        %v4842 = vpop.permute.xlu0 %4841
        %v4843 = vld [vmem:[%s3 + $0x3] sm:$0x1]
        %v4844 = vperm.slane %v4843, 0
        %v4845 = vmul.f32 %v4842, %v4844
        %4846 = vst [vmem:[#allocation4 + $0xc] sm:$0xf] %v4845
        %4847 = vrot.lane.b32.xlu0 %v4819, 16
        %v4848 = vpop.permute.xlu0 %4847
        %v4849 = vld [vmem:[%s3 + $0x4] sm:$0x1]
        %v4850 = vperm.slane %v4849, 0
        %v4851 = vmul.f32 %v4848, %v4850
        %4852 = vst [vmem:[#allocation4 + $0x10] sm:$0xf] %v4851
        %4853 = vrot.lane.b32.xlu0 %v4819, 15
        %v4854 = vpop.permute.xlu0 %4853
        %v4855 = vld [vmem:[%s3 + $0x5] sm:$0x1]
        %v4856 = vperm.slane %v4855, 0
        %v4857 = vmul.f32 %v4854, %v4856
        %4858 = vst [vmem:[#allocation4 + $0x14] sm:$0xf] %v4857
        %4859 = vrot.lane.b32.xlu0 %v4819, 13
        %v4860 = vpop.permute.xlu0 %4859
        %v4861 = vld [vmem:[%s3 + $0x6] sm:$0x1]
        %v4862 = vperm.slane %v4861, 0
        %v4863 = vmul.f32 %v4860, %v4862
        %4864 = vst [vmem:[#allocation4 + $0x18] sm:$0xf] %v4863
        %4865 = vrot.lane.b32.xlu0 %v4819, 12
        %v4866 = vpop.permute.xlu0 %4865
        %v4867 = vld [vmem:[%s3 + $0x7] sm:$0x1]
        %v4868 = vperm.slane %v4867, 0
        %v4869 = vmul.f32 %v4866, %v4868
        %4870 = vst [vmem:[#allocation4 + $0x1c] sm:$0xf] %v4869
        %4871 = vrot.lane.b32.xlu0 %v4819, 11
        %v4872 = vpop.permute.xlu0 %4871
        %v4873 = vld [vmem:[%s3 + $0x8] sm:$0x1]
        %v4874 = vperm.slane %v4873, 0
        %v4875 = vmul.f32 %v4872, %v4874
        %4876 = vst [vmem:[#allocation4 + $0x20] sm:$0xf] %v4875
        %4877 = vrot.lane.b32.xlu0 %v4819, 5
        %v4878 = vpop.permute.xlu0 %4877
        %v4879 = vld [vmem:[%s3 + $0x9] sm:$0x1]
        %v4880 = vperm.slane %v4879, 0
        %v4881 = vmul.f32 %v4878, %v4880
        %4882 = vst [vmem:[#allocation4 + $0x24] sm:$0xf] %v4881
        %4883 = vrot.lane.b32.xlu0 %v4819, 4
        %v4884 = vpop.permute.xlu0 %4883
        %v4885 = vld [vmem:[%s3 + $0xa] sm:$0x1]
        %v4886 = vperm.slane %v4885, 0
        %v4887 = vmul.f32 %v4884, %v4886
        %4888 = vst [vmem:[#allocation4 + $0x28] sm:$0xf] %v4887
        %4889 = vrot.lane.b32.xlu0 %v4819, 3
        %v4890 = vpop.permute.xlu0 %4889
        %v4891 = vld [vmem:[%s3 + $0xb] sm:$0x1]
        %v4892 = vperm.slane %v4891, 0
        %v4893 = vmul.f32 %v4890, %v4892
        %4894 = vst [vmem:[#allocation4 + $0x2c] sm:$0xf] %v4893
        %4895 = vrot.lane.b32.xlu0 %v4819, 1
        %v4896 = vpop.permute.xlu0 %4895
        %v4897 = vld [vmem:[%s3 + $0xc] sm:$0x1]
        %v4898 = vperm.slane %v4897, 0
        %v4899 = vmul.f32 %v4896, %v4898
        %4900 = vst [vmem:[#allocation4 + $0x30] sm:$0xf] %v4899
        %4901 = vst [vmem:[#allocation4 + $0x34] sm:$0xf] %v4819
        %4902 = vrot.lane.b32.xlu0 %v4819, 127
        %v4903 = vpop.permute.xlu0 %4902
        %v4904 = vld [vmem:[%s3 + $0xe] sm:$0x1]
        %v4905 = vperm.slane %v4904, 0
        %v4906 = vmul.f32 %v4903, %v4905
        %4907 = vst [vmem:[#allocation4 + $0x38] sm:$0xf] %v4906
        %4908 = vrot.lane.b32.xlu0 %v4819, 125
        %v4909 = vpop.permute.xlu0 %4908
        %v4910 = vld [vmem:[%s3 + $0xf] sm:$0x1]
        %v4911 = vperm.slane %v4910, 0
        %v4912 = vmul.f32 %v4909, %v4911
        %4913 = vst [vmem:[#allocation4 + $0x3c] sm:$0xf] %v4912
        %4914 = vrot.lane.b32.xlu0 %v4819, 124
        %v4915 = vpop.permute.xlu0 %4914
        %v4916 = vld [vmem:[%s3 + $0x10] sm:$0x1]
        %v4917 = vperm.slane %v4916, 0
        %v4918 = vmul.f32 %v4915, %v4917
        %4919 = vst [vmem:[#allocation4 + $0x40] sm:$0xf] %v4918
        %4920 = vrot.lane.b32.xlu0 %v4819, 123
        %v4921 = vpop.permute.xlu0 %4920
        %v4922 = vld [vmem:[%s3 + $0x11] sm:$0x1]
        %v4923 = vperm.slane %v4922, 0
        %v4924 = vmul.f32 %v4921, %v4923
        %4925 = vst [vmem:[#allocation4 + $0x44] sm:$0xf] %v4924
        %4926 = vrot.lane.b32.xlu0 %v4819, 117
        %v4927 = vpop.permute.xlu0 %4926
        %v4928 = vld [vmem:[%s3 + $0x12] sm:$0x1]
        %v4929 = vperm.slane %v4928, 0
        %v4930 = vmul.f32 %v4927, %v4929
        %4931 = vst [vmem:[#allocation4 + $0x48] sm:$0xf] %v4930
        %4932 = vrot.lane.b32.xlu0 %v4819, 116
        %v4933 = vpop.permute.xlu0 %4932
        %v4934 = vld [vmem:[%s3 + $0x13] sm:$0x1]
        %v4935 = vperm.slane %v4934, 0
        %v4936 = vmul.f32 %v4933, %v4935
        %4937 = vst [vmem:[#allocation4 + $0x4c] sm:$0xf] %v4936
        %4938 = vrot.lane.b32.xlu0 %v4819, 115
        %v4939 = vpop.permute.xlu0 %4938
        %v4940 = vld [vmem:[%s3 + $0x14] sm:$0x1]
        %v4941 = vperm.slane %v4940, 0
        %v4942 = vmul.f32 %v4939, %v4941
        %4943 = vst [vmem:[#allocation4 + $0x50] sm:$0xf] %v4942
        %4944 = vrot.lane.b32.xlu0 %v4819, 113
        %v4945 = vpop.permute.xlu0 %4944
        %v4946 = vld [vmem:[%s3 + $0x15] sm:$0x1]
        %v4947 = vperm.slane %v4946, 0
        %v4948 = vmul.f32 %v4945, %v4947
        %4949 = vst [vmem:[#allocation4 + $0x54] sm:$0xf] %v4948
        %4950 = vrot.lane.b32.xlu0 %v4819, 112
        %v4951 = vpop.permute.xlu0 %4950
        %v4952 = vld [vmem:[%s3 + $0x16] sm:$0x1]
        %v4953 = vperm.slane %v4952, 0
        %v4954 = vmul.f32 %v4951, %v4953
        %4955 = vst [vmem:[#allocation4 + $0x58] sm:$0xf] %v4954
        %4956 = vrot.lane.b32.xlu0 %v4819, 111
        %v4957 = vpop.permute.xlu0 %4956
        %v4958 = vld [vmem:[%s3 + $0x17] sm:$0x1]
        %v4959 = vperm.slane %v4958, 0
        %v4960 = vmul.f32 %v4957, %v4959
        %4961 = vst [vmem:[#allocation4 + $0x5c] sm:$0xf] %v4960
        %4962 = vrot.lane.b32.xlu0 %v4819, 109
        %v4963 = vpop.permute.xlu0 %4962
        %v4964 = vld [vmem:[%s3 + $0x18] sm:$0x1]
        %v4965 = vperm.slane %v4964, 0
        %v4966 = vmul.f32 %v4963, %v4965
        %4967 = vst [vmem:[#allocation4 + $0x60] sm:$0xf] %v4966
        %4968 = vrot.lane.b32.xlu0 %v4819, 108
        %v4969 = vpop.permute.xlu0 %4968
        %v4970 = vld [vmem:[%s3 + $0x19] sm:$0x1]
        %v4971 = vperm.slane %v4970, 0
        %v4972 = vmul.f32 %v4969, %v4971
        %4973 = vst [vmem:[#allocation4 + $0x64] sm:$0xf] %v4972
        %4974 = vrot.lane.b32.xlu0 %v4819, 107
        %v4975 = vpop.permute.xlu0 %4974
        %v4976 = vld [vmem:[%s3 + $0x1a] sm:$0x1]
        %v4977 = vperm.slane %v4976, 0
        %v4978 = vmul.f32 %v4975, %v4977
        %4979 = vst [vmem:[#allocation4 + $0x68] sm:$0xf] %v4978
        %v4980 = vld [vmem:[%s6] sm:$0xff]
        %v4981 = vld [vmem:[#allocation4] sm:$0xff]
        %v4982 = vld [vmem:[#allocation4 + $0x8] sm:$0xff]
        %v4983 = vld [vmem:[#allocation4 + $0x10] sm:$0xff]
        %v4984 = vld [vmem:[#allocation4 + $0x18] sm:$0xff]
        %v4985 = vld [vmem:[#allocation4 + $0x20] sm:$0xff]
        %v4986 = vld [vmem:[#allocation4 + $0x28] sm:$0xff]
        %v4987 = vld [vmem:[#allocation4 + $0x30] sm:$0xff]
        %v4988 = vld [vmem:[#allocation4 + $0x38] sm:$0xff]
        %v4989 = vld [vmem:[#allocation4 + $0x40] sm:$0xff]
        %v4990 = vld [vmem:[#allocation4 + $0x48] sm:$0xff]
        %v4991 = vld [vmem:[#allocation4 + $0x50] sm:$0xff]
        %v4992 = vld [vmem:[#allocation4 + $0x58] sm:$0xff]
        %v4993 = vld [vmem:[#allocation4 + $0x60] sm:$0xff]
        %v4994 = vld [vmem:[#allocation4 + $0x68] sm:$0xff]
        %v4995 = vld [vmem:[#allocation4 + $0x70] sm:$0xff]
        %v4996 = vld [vmem:[#allocation4 + $0x78] sm:$0xff]
        %4997 = vmatpush.msra.mxu0 %v4996
        %4998 = vmatpush.msra.mxu0 %v4995
        %4999 = vmatpush.msra.mxu0 %v4994
        %5000 = vmatpush.msra.mxu0 %v4993
        %5001 = vmatpush.msra.mxu0 %v4992
        %5002 = vmatpush.msra.mxu0 %v4991
        %5003 = vmatpush.msra.mxu0 %v4990
        %5004 = vmatpush.msra.mxu0 %v4989
        %5005 = vmatpush.msra.mxu0 %v4988
        %5006 = vmatpush.msra.mxu0 %v4987
        %5007 = vmatpush.msra.mxu0 %v4986
        %5008 = vmatpush.msra.mxu0 %v4985
        %5009 = vmatpush.msra.mxu0 %v4984
        %5010 = vmatpush.msra.mxu0 %v4983
        %5011 = vmatpush.msra.mxu0 %v4982
        %5012 = vmatpush.msra.mxu0 %v4981
        %5013 = vmatmul.f32.gmra.mxu0 %v4980
        %v5014 = vpop.f32.mrf.mxu0
        %v5015 = vadd.f32 0.0, %v5014
        %5016 = vdwg.mxu0
        %v5017 = vld [vmem:[%s1] sm:$0xff]
        %5019 = vset.pattern.permute.xlu0 4
        %5020 = vperm.xlu0 %5019, %v5017
        %v5021 = vpop.permute.xlu0 %5020
        %v5023 = vmul.f32 %v5015, %v5021
        %5024 = vset.pattern.permute.xlu0 5
        %5025 = vperm.xlu0 %5024, %v5017
        %v5026 = vpop.permute.xlu0 %5025
        %v5028 = vadd.f32 %v5023, %v5026
        %v5029 = vmax.f32 %v5028, 0.0
        %v5030 = vld [vmem:[%s8] sm:$0xff]
        %v5031 = vld [vmem:[%s8 + $0x8] sm:$0xff]
        %v5032 = vld [vmem:[%s8 + $0x10] sm:$0xff]
        %v5033 = vld [vmem:[%s8 + $0x18] sm:$0xff]
        %v5034 = vld [vmem:[%s8 + $0x20] sm:$0xff]
        %v5035 = vld [vmem:[%s8 + $0x28] sm:$0xff]
        %v5036 = vld [vmem:[%s8 + $0x30] sm:$0xff]
        %v5037 = vld [vmem:[%s8 + $0x38] sm:$0xff]
        %v5038 = vld [vmem:[%s8 + $0x40] sm:$0xff]
        %v5039 = vld [vmem:[%s8 + $0x48] sm:$0xff]
        %v5040 = vld [vmem:[%s8 + $0x50] sm:$0xff]
        %v5041 = vld [vmem:[%s8 + $0x58] sm:$0xff]
        %v5042 = vld [vmem:[%s8 + $0x60] sm:$0xff]
        %v5043 = vld [vmem:[%s8 + $0x68] sm:$0xff]
        %v5044 = vld [vmem:[%s8 + $0x70] sm:$0xff]
        %v5045 = vld [vmem:[%s8 + $0x78] sm:$0xff]
        %5046 = vmatpush.msra.mxu0 %v5045
        %5047 = vmatpush.msra.mxu0 %v5044
        %5048 = vmatpush.msra.mxu0 %v5043
        %5049 = vmatpush.msra.mxu0 %v5042
        %5050 = vmatpush.msra.mxu0 %v5041
        %5051 = vmatpush.msra.mxu0 %v5040
        %5052 = vmatpush.msra.mxu0 %v5039
        %5053 = vmatpush.msra.mxu0 %v5038
        %5054 = vmatpush.msra.mxu0 %v5037
        %5055 = vmatpush.msra.mxu0 %v5036
        %5056 = vmatpush.msra.mxu0 %v5035
        %5057 = vmatpush.msra.mxu0 %v5034
        %5058 = vmatpush.msra.mxu0 %v5033
        %5059 = vmatpush.msra.mxu0 %v5032
        %5060 = vmatpush.msra.mxu0 %v5031
        %5061 = vmatpush.msra.mxu0 %v5030
        %5062 = vmatmul.f32.gmra.mxu0 %v5029
        %v5063 = vpop.f32.mrf.mxu0
        %v5064 = vadd.f32 0.0, %v5063
        %5065 = vdwg.mxu0
        %v5066 = vld [vmem:[%s9] sm:$0xff]
        %v5067 = vld [vmem:[%s9 + $0x8] sm:$0x3]
        %v5068 = vld [vmem:[%s10] sm:$0xff]
        %v5069 = vld [vmem:[%s10 + $0x8] sm:$0x3]
        %5071 = vset.pattern.permute.xlu0 0
        %5072 = vperm.xlu0 %5071, %v5068
        %v5073 = vpop.permute.xlu0 %5072
        %5076 = vset.pattern.permute.xlu0 0
        %5077 = vperm.xlu0 %5076, %v5069
        %v5078 = vpop.permute.xlu0 %5077
        %vm5080 = vcmask 64512
        %v5082 = vsel %vm5080, %v5066, 0
        %v5085 = vsel %vm5080, %v5067, 0
        %5087 = vmatpush.msra.mxu0 0.0
        %5088 = vmatpush.msra.mxu0 0.0
        %5089 = vmatpush.msra.mxu0 0.0
        %5090 = vmatpush.msra.mxu0 0.0
        %5091 = vmatpush.msra.mxu0 0.0
        %5092 = vmatpush.msra.mxu0 0.0
        %5093 = vmatpush.msra.mxu0 0.0
        %5094 = vmatpush.msra.mxu0 0.0
        %5095 = vmatpush.msra.mxu0 0.0
        %5096 = vmatpush.msra.mxu0 0.0
        %5097 = vmatpush.msra.mxu0 0.0
        %5098 = vmatpush.msra.mxu0 0.0
        %5099 = vmatpush.msra.mxu0 0.0
        %5100 = vmatpush.msra.mxu0 0.0
        %5101 = vmatpush.msra.mxu0 0.0
        %5102 = vmatpush.msra.mxu0 %v5064
        %5103 = vmatmul.f32.gmra.mxu0 %v5082
        %v5104 = vpop.f32.mrf.mxu0
        %v5105 = vadd.f32 %v5073, %v5104
        %5106 = vmatmul.f32.gmra.mxu0 %v5085
        %v5107 = vpop.f32.mrf.mxu0
        %v5108 = vadd.f32 %v5078, %v5107
        %5109 = vdwg.mxu0
        %vm5110 = vcmask 15360
        %v5111 = vsel %vm5110, %v5105, -inf
        %vm5112 = vcmask 9216
        %v5113 = vsel %vm5112, %v5108, -inf
        %v5114 = vmax.f32 %v5111, %v5113
        %v5115 = vrot.slane %v5114, 4
        %v5116 = vmax.f32 %v5114, %v5115
        %v5117 = vrot.slane %v5116, 2
        %v5118 = vmax.f32 %v5116, %v5117
        %v5119 = vrot.slane %v5118, 1
        %v5120 = vmax.f32 %v5118, %v5119
        %v5121 = vsub.f32 %v5105, %v5120
        %v5122 = vsub.f32 %v5108, %v5120
        %v5123 = vmul.f32 %v5121, 1.442695
        %v5124 = vpow.pop %v5123
        %v5125 = vmul.f32 %v5122, 1.442695
        %v5126 = vpow.pop %v5125
        %v5127 = vsel %vm5110, %v5124, 0.0
        %v5128 = vsel %vm5112, %v5126, 0.0
        %v5129 = vadd.f32 %v5127, %v5128
        %v5130 = vrot.slane %v5129, 4
        %v5131 = vadd.f32 %v5129, %v5130
        %v5132 = vrot.slane %v5131, 2
        %v5133 = vadd.f32 %v5131, %v5132
        %v5134 = vrot.slane %v5133, 1
        %v5135 = vadd.f32 %v5133, %v5134
        %v5136 = vlog2.pop %v5135
        %v5137 = vmul.f32 %v5136, 0.6931472
        %v5138 = vsub.f32 %v5121, %v5137
        %v5139 = vsub.f32 %v5122, %v5137
        %5140 = vst.msk [vmem:[%s419] sm:$0xff] %vm5110, %v5138
        %5141 = vst.msk [vmem:[%s419 + $0x8] sm:$0x3] %vm5112, %v5139
        %p5142 = scmp.lt.s32.totalorder %s24, 1
        %s5143 = scalar_select %p5142, %s24, 1
        %s5144 = smul.addr %s5143, 2
        %s5145 = smul.addr %s5144, 8
        %s5146 = scalar_lea.vmem %s11, %s5145
        // Predicated region
        $region73: #{tpu_custom_call.1} parent=63 // pred_check
          %p5147 = pneg %p278
        $region74: #{tpu_custom_call.1} parent=63 // pred_check_branch
          %5149 = sbr.rel (%p5147) target = $region76
        $region75: #{tpu_custom_call.1} parent=63 // pred_region
          _
        $region76: #{tpu_custom_call.1} parent=63 // pred_fallthru
          _
      $region64: #{tpu_custom_call.1} parent=5 // pred_fallthru
        _
      %p5150 = scmp.le.s32.totalorder 2, %s19
      // Predicated region
      $region77: #{tpu_custom_call.1} parent=5 // pred_check
        %p5151 = pneg %p5150
      $region78: #{tpu_custom_call.1} parent=5 // pred_check_branch
        %5153 = sbr.rel (%p5151) target = $region80
      $region79: #{tpu_custom_call.1} parent=5 // pred_region
        %s5154 = ssub.s32 %s19, 2
        // Predicated region
        $region81: #{tpu_custom_call.1} parent=79 // pred_check
          %p5155 = pneg %p284
        $region82: #{tpu_custom_call.1} parent=79 // pred_check_branch
          %5157 = sbr.rel (%p5155) target = $region84
        $region83: #{tpu_custom_call.1} parent=79 // pred_region
          %p5158 = scmp.lt.s32.totalorder %s25, 1
          %s5159 = scalar_select %p5158, %s25, 1
          %s5160 = smul.addr %s5159, 2
          %s5161 = smul.addr %s5160, 8
          %s5162 = scalar_lea.vmem %s11, %s5161
        $region84: #{tpu_custom_call.1} parent=79 // pred_fallthru
          _
      $region80: #{tpu_custom_call.1} parent=5 // pred_fallthru
        _
    $region6: #{tpu_custom_call.1} parent=1 // loop_footer
      %s23 = sadd.s32 1, %s19
    $region7: #{tpu_custom_call.1} parent=1 // loop_footer_branch
      %18 = sbr.rel target = $region3
    $region8: #{tpu_custom_call.1} parent=1 // loop_exit
      _
    %5163 = vsyncpa [#allocation6], 1
    %s5164 = scalar_lea.sflag [#allocation6], 1
    %5165 = vsyncpa %s5164, 1
    %5166 = vsyncpa [#allocation8], 1

</llo_original>
